<compile_context>
chip_gen: v5e
topology: v5e:2x2
jax: 0.10.0
libtpu: 0.0.40
codegen_flags: <defaults>
</compile_context>

<pallas_src>
import jax
import jax.numpy as jnp
from jax.experimental import pallas as pl
from jax.experimental.pallas import tpu as pltpu


def _bias_leaky(acc, b, slope=0.01):
    """Bias add + LeakyReLU, computed in the bias' dtype (bf16 on v6e/v7x, f32 on v5e)."""
    h = acc.astype(b.dtype) + b
    return jnp.where(h > 0, h, slope * h)


def _sigmoid(x):
    # Overflow-safe sigmoid: exp() argument is always <= 0.
    z = jnp.exp(-jnp.abs(x))
    return jnp.where(x >= 0, 1.0 / (1.0 + z), z / (1.0 + z))


def _make_kernel(mxu_layer1):
    def kernel(x_ref,
               w1_ref, b1_ref,
               w2_ref, b2_ref,
               w3_ref, b3_ref,
               w4_ref, b4_ref,
               o_ref):
        # Batch-on-lanes layout: x (2, TILE_B), activations (features, TILE_B).
        if mxu_layer1:
            # v6e/v7x: layer 1 on the MXU. K=2 wastes MXU depth, but the MXU
            # has slack here while the VALU slot is the binding one.
            h = jnp.dot(w1_ref[...], x_ref[...],
                        preferred_element_type=jnp.float32)            # (512, TILE_B)
        else:
            # v5e: MXU is near-binding already; keep layer 1 as two VPU FMAs.
            x = x_ref[...]                                              # (2, TILE_B) f32
            w1 = w1_ref[...]                                            # (512, 2) f32
            h = w1[:, 0:1] * x[0:1, :] + w1[:, 1:2] * x[1:2, :]         # (512, TILE_B)
        h = _bias_leaky(h, b1_ref[...]).astype(jnp.bfloat16)

        # Layer 2: (256,512) @ (512,TILE_B) on the MXU, f32 accumulation.
        h = jnp.dot(w2_ref[...], h, preferred_element_type=jnp.float32)
        h = _bias_leaky(h, b2_ref[...]).astype(jnp.bfloat16)

        # Layer 3: (128,256) @ (256,TILE_B) on the MXU, f32 accumulation.
        h = jnp.dot(w3_ref[...], h, preferred_element_type=jnp.float32)
        h = _bias_leaky(h, b3_ref[...]).astype(jnp.float32)             # (128, TILE_B)

        # Layer 4 (128 -> 1): VPU multiply + cheap sublane reduce; the result
        # (1, TILE_B) is a lane-dense output block.
        logits = jnp.sum(h * w4_ref[...], axis=0, keepdims=True) + b4_ref[...]
        o_ref[...] = _sigmoid(logits).astype(o_ref.dtype)

    return kernel


def _round_up(v, m):
    return ((v + m - 1) // m) * m


def _device_is_v5():
    try:
        return "v5" in jax.devices()[0].device_kind.lower()
    except Exception:
        return False


def discriminator_forward(x, params, *, max_tile_b=2048):
    """x: (B, 2) float32. params: dict name -> (W, b), PyTorch layout W=(out, in)."""
    B = x.shape[0]
    assert x.shape[1] == 2

    v5 = _device_is_v5()
    mxu_layer1 = not v5
    epi_dtype = jnp.float32 if v5 else jnp.bfloat16
    x_dtype = jnp.bfloat16 if mxu_layer1 else jnp.float32

    # Adaptive tiling: round per-tile batch up to 128 lanes, cap at max_tile_b,
    # and use >=2 tiles whenever possible (v7x megacore sharding of the grid).
    num_tiles = max(1, -(-B // max_tile_b))
    if num_tiles == 1 and B > 128:
        num_tiles = 2
    tile_b = _round_up(-(-B // num_tiles), 128)
    b_pad = tile_b * num_tiles

    # Batch-on-lanes input: (2, B_pad), lane-dense tiles.
    x_t = jnp.asarray(x, jnp.float32).T
    if b_pad != B:
        x_t = jnp.pad(x_t, ((0, 0), (0, b_pad - B)))
    x_t = x_t.astype(x_dtype)

    (W1, b1), (W2, b2), (W3, b3), (W4, b4) = (
        params[k] for k in ("l1", "l2", "l3", "l4"))

    # Weights stay in PyTorch (out, in) layout since each layer computes W @ h.
    w1 = jnp.asarray(W1, jnp.float32).astype(x_dtype)          # (512, 2)
    w2 = jnp.asarray(W2, jnp.float32).astype(jnp.bfloat16)     # (256, 512)
    w3 = jnp.asarray(W3, jnp.float32).astype(jnp.bfloat16)     # (128, 256)
    w4 = jnp.asarray(W4, jnp.float32).reshape(128, 1)          # (128, 1) f32 column
    b1c = jnp.asarray(b1, jnp.float32).reshape(512, 1).astype(epi_dtype)
    b2c = jnp.asarray(b2, jnp.float32).reshape(256, 1).astype(epi_dtype)
    b3c = jnp.asarray(b3, jnp.float32).reshape(128, 1).astype(epi_dtype)
    b4c = jnp.asarray(b4, jnp.float32).reshape(1, 1)

    const = lambda i: (0, 0)   # weights / biases: VMEM-resident across grid steps

    out = pl.pallas_call(
        _make_kernel(mxu_layer1),
        out_shape=jax.ShapeDtypeStruct((1, b_pad), jnp.float32),
        grid_spec=pltpu.PrefetchScalarGridSpec(
            num_scalar_prefetch=0,
            grid=(num_tiles,),
            in_specs=[
                pl.BlockSpec((2, tile_b), lambda i: (0, i)),   # x tile (lane-dense)
                pl.BlockSpec((512, 2), const),
                pl.BlockSpec((512, 1), const),
                pl.BlockSpec((256, 512), const),
                pl.BlockSpec((256, 1), const),
                pl.BlockSpec((128, 256), const),
                pl.BlockSpec((128, 1), const),
                pl.BlockSpec((128, 1), const),
                pl.BlockSpec((1, 1), const),
            ],
            out_specs=pl.BlockSpec((1, tile_b), lambda i: (0, i)),  # lane-dense output
        ),
        compiler_params=pltpu.CompilerParams(
            dimension_semantics=("parallel",),   # shard batch tiles across TCs on v7x
            vmem_limit_bytes=32 * 1024 * 1024,   # safe on v5e/v6e (128 MiB) and v7x (64 MiB)
        ),
    )(x_t, w1, b1c, w2, b2c, w3, b3c, w4, b4c)

    return out[0, :B].reshape(B, 1)


def init_params(key):
    """nn.Linear-style shapes with U(-1/sqrt(fan_in), 1/sqrt(fan_in)) init."""
    dims = [(2, 512), (512, 256), (256, 128), (128, 1)]
    params = {}
    for i, (fan_in, fan_out) in enumerate(dims, start=1):
        key, kw, kb = jax.random.split(key, 3)
        bound = 1.0 / jnp.sqrt(jnp.float32(fan_in))
        W = jax.random.uniform(kw, (fan_out, fan_in), jnp.float32, -bound, bound)
        b = jax.random.uniform(kb, (fan_out,), jnp.float32, -bound, bound)
        params[f"l{i}"] = (W, b)
    return params


def reference_forward_f32(x, params):
    """Pure f32 reference, matching the PyTorch module exactly."""
    h = jnp.asarray(x, jnp.float32)
    for name, act in (("l1", True), ("l2", True), ("l3", True), ("l4", False)):
        W, b = params[name]
        h = h @ W.T + b
        if act:
            h = jnp.where(h > 0, h, 0.01 * h)
    return jax.nn.sigmoid(h)


def reference_forward_policy(x, params, *, mxu_layer1, epi_dtype):
    """Reference matching the kernel's precision policy exactly."""
    W1, b1 = params["l1"]; W2, b2 = params["l2"]
    W3, b3 = params["l3"]; W4, b4 = params["l4"]
    x = jnp.asarray(x, jnp.float32)
    if mxu_layer1:
        h = jnp.dot(x.astype(jnp.bfloat16), W1.T.astype(jnp.bfloat16),
                    preferred_element_type=jnp.float32)
    else:
        h = x @ W1.T
    h = _bias_leaky(h, b1.astype(epi_dtype)).astype(jnp.bfloat16)
    h = jnp.dot(h, W2.T.astype(jnp.bfloat16), preferred_element_type=jnp.float32)
    h = _bias_leaky(h, b2.astype(epi_dtype)).astype(jnp.bfloat16)
    h = jnp.dot(h, W3.T.astype(jnp.bfloat16), preferred_element_type=jnp.float32)
    h = _bias_leaky(h, b3.astype(epi_dtype)).astype(jnp.float32)
    logits = jnp.sum(h * jnp.asarray(W4, jnp.float32), axis=-1, keepdims=True) + b4
    return _sigmoid(logits)


if __name__ == "__main__":
    key = jax.random.PRNGKey(0)
    key, kx = jax.random.split(key)
    params = init_params(key)

    v5 = _device_is_v5()
    ref_kwargs = dict(mxu_layer1=not v5,
                      epi_dtype=jnp.float32 if v5 else jnp.bfloat16)

    # Test 1: tiny batch (single 128-lane tile, heavy padding path).
    B = 8
    x = jax.random.normal(kx, (B, 2), jnp.float32)
    out = jax.block_until_ready(discriminator_forward(x, params))
    assert out.shape == (B, 1)
    assert jnp.allclose(out, reference_forward_policy(x, params, **ref_kwargs),
                        atol=3e-3, rtol=3e-3), "mismatch vs precision-matched reference"
    assert jnp.allclose(out, reference_forward_f32(x, params), atol=1e-1), \
        "mismatch vs f32 reference"

    # Test 2: multi-tile grid (2 tiles) with a partially filled (padded) last tile.
    key, kx2 = jax.random.split(key)
    B2 = 300
    x2 = jax.random.normal(kx2, (B2, 2), jnp.float32)
    out2 = jax.block_until_ready(discriminator_forward(x2, params))
    assert out2.shape == (B2, 1)
    assert jnp.allclose(out2, reference_forward_policy(x2, params, **ref_kwargs),
                        atol=3e-3, rtol=3e-3), "mismatch on tiled batch"
    assert jnp.allclose(out2, reference_forward_f32(x2, params), atol=1e-1), \
        "mismatch vs f32 reference (tiled batch)"

    print("KERNEL_OK")
</pallas_src>

<mosaic_0001>
module attributes {stable_mosaic.version = 11 : i64} {
  func.func @kernel(%arg0: i32, %arg1: memref<2x128xbf16, #tpu.memory_space<vmem>>, %arg2: memref<512x2xbf16, #tpu.memory_space<vmem>>, %arg3: memref<512x1xbf16, #tpu.memory_space<vmem>>, %arg4: memref<256x512xbf16, #tpu.memory_space<vmem>>, %arg5: memref<256x1xbf16, #tpu.memory_space<vmem>>, %arg6: memref<128x256xbf16, #tpu.memory_space<vmem>>, %arg7: memref<128x1xbf16, #tpu.memory_space<vmem>>, %arg8: memref<128x1xf32, #tpu.memory_space<vmem>>, %arg9: memref<1x1xf32, #tpu.memory_space<vmem>>, %arg10: memref<1x128xf32, #tpu.memory_space<vmem>>) attributes {dimension_semantics = [#tpu.dimension_semantics<parallel>], iteration_bounds = array<i64: 1>, scalar_prefetch = 0 : i64, scratch_operands = 0 : i64, tpu.core_type = #tpu.core_type<tc>, window_params = [{transform_indices = @transform_0, window_bounds = array<i64: 2, 128>}, {pipeline_mode = #tpu.pipeline_mode<synchronous>, transform_indices = @transform_1, window_bounds = array<i64: 512, 2>}, {pipeline_mode = #tpu.pipeline_mode<synchronous>, transform_indices = @transform_2, window_bounds = array<i64: 512, 1>}, {pipeline_mode = #tpu.pipeline_mode<synchronous>, transform_indices = @transform_3, window_bounds = array<i64: 256, 512>}, {pipeline_mode = #tpu.pipeline_mode<synchronous>, transform_indices = @transform_4, window_bounds = array<i64: 256, 1>}, {pipeline_mode = #tpu.pipeline_mode<synchronous>, transform_indices = @transform_5, window_bounds = array<i64: 128, 256>}, {pipeline_mode = #tpu.pipeline_mode<synchronous>, transform_indices = @transform_6, window_bounds = array<i64: 128, 1>}, {pipeline_mode = #tpu.pipeline_mode<synchronous>, transform_indices = @transform_7, window_bounds = array<i64: 128, 1>}, {pipeline_mode = #tpu.pipeline_mode<synchronous>, transform_indices = @transform_8, window_bounds = array<i64: 1, 1>}, {transform_indices = @transform_9, window_bounds = array<i64: 1, 128>}]} {
    %c0 = arith.constant 0 : index
    %c0_0 = arith.constant 0 : index
    %0 = vector.load %arg2[%c0, %c0_0] : memref<512x2xbf16, #tpu.memory_space<vmem>>, vector<512x2xbf16>
    %c0_1 = arith.constant 0 : index
    %c0_2 = arith.constant 0 : index
    %1 = vector.load %arg1[%c0_1, %c0_2] : memref<2x128xbf16, #tpu.memory_space<vmem>>, vector<2x128xbf16>
    %cst = arith.constant dense<0.000000e+00> : vector<512x128xf32>
    %2 = tpu.matmul %0, %1, %cst {dimension_numbers = #tpu.dot_dimension_numbers<[1], [0], [0], [1], [0, 0, 1, 1], [], []>} : vector<512x2xbf16>, vector<2x128xbf16>, vector<512x128xf32> -> vector<512x128xf32>
    %c0_3 = arith.constant 0 : index
    %c0_4 = arith.constant 0 : index
    %3 = vector.load %arg3[%c0_3, %c0_4] : memref<512x1xbf16, #tpu.memory_space<vmem>>, vector<512x1xbf16>
    %4 = arith.truncf %2 : vector<512x128xf32> to vector<512x128xbf16>
    %5 = vector.broadcast %3 : vector<512x1xbf16> to vector<512x128xbf16>
    %6 = arith.addf %4, %5 : vector<512x128xbf16>
    %cst_5 = arith.constant 0.000000e+00 : bf16
    %7 = vector.broadcast %cst_5 : bf16 to vector<512x128xbf16>
    %8 = arith.cmpf ogt, %6, %7 : vector<512x128xbf16>
    %cst_6 = arith.constant 1.000980e-02 : bf16
    %9 = vector.broadcast %cst_6 : bf16 to vector<512x128xbf16>
    %10 = arith.mulf %9, %6 : vector<512x128xbf16>
    %11 = arith.select %8, %6, %10 : vector<512x128xi1>, vector<512x128xbf16>
    %c0_7 = arith.constant 0 : index
    %c0_8 = arith.constant 0 : index
    %12 = vector.load %arg4[%c0_7, %c0_8] : memref<256x512xbf16, #tpu.memory_space<vmem>>, vector<256x512xbf16>
    %cst_9 = arith.constant dense<0.000000e+00> : vector<256x128xf32>
    %13 = tpu.matmul %12, %11, %cst_9 {dimension_numbers = #tpu.dot_dimension_numbers<[1], [0], [0], [1], [0, 0, 1, 1], [], []>} : vector<256x512xbf16>, vector<512x128xbf16>, vector<256x128xf32> -> vector<256x128xf32>
    %c0_10 = arith.constant 0 : index
    %c0_11 = arith.constant 0 : index
    %14 = vector.load %arg5[%c0_10, %c0_11] : memref<256x1xbf16, #tpu.memory_space<vmem>>, vector<256x1xbf16>
    %15 = arith.truncf %13 : vector<256x128xf32> to vector<256x128xbf16>
    %16 = vector.broadcast %14 : vector<256x1xbf16> to vector<256x128xbf16>
    %17 = arith.addf %15, %16 : vector<256x128xbf16>
    %cst_12 = arith.constant 0.000000e+00 : bf16
    %18 = vector.broadcast %cst_12 : bf16 to vector<256x128xbf16>
    %19 = arith.cmpf ogt, %17, %18 : vector<256x128xbf16>
    %cst_13 = arith.constant 1.000980e-02 : bf16
    %20 = vector.broadcast %cst_13 : bf16 to vector<256x128xbf16>
    %21 = arith.mulf %20, %17 : vector<256x128xbf16>
    %22 = arith.select %19, %17, %21 : vector<256x128xi1>, vector<256x128xbf16>
    %c0_14 = arith.constant 0 : index
    %c0_15 = arith.constant 0 : index
    %23 = vector.load %arg6[%c0_14, %c0_15] : memref<128x256xbf16, #tpu.memory_space<vmem>>, vector<128x256xbf16>
    %cst_16 = arith.constant dense<0.000000e+00> : vector<128x128xf32>
    %24 = tpu.matmul %23, %22, %cst_16 {dimension_numbers = #tpu.dot_dimension_numbers<[1], [0], [0], [1], [0, 0, 1, 1], [], []>} : vector<128x256xbf16>, vector<256x128xbf16>, vector<128x128xf32> -> vector<128x128xf32>
    %c0_17 = arith.constant 0 : index
    %c0_18 = arith.constant 0 : index
    %25 = vector.load %arg7[%c0_17, %c0_18] : memref<128x1xbf16, #tpu.memory_space<vmem>>, vector<128x1xbf16>
    %26 = arith.truncf %24 : vector<128x128xf32> to vector<128x128xbf16>
    %27 = vector.broadcast %25 : vector<128x1xbf16> to vector<128x128xbf16>
    %28 = arith.addf %26, %27 : vector<128x128xbf16>
    %cst_19 = arith.constant 0.000000e+00 : bf16
    %29 = vector.broadcast %cst_19 : bf16 to vector<128x128xbf16>
    %30 = arith.cmpf ogt, %28, %29 : vector<128x128xbf16>
    %cst_20 = arith.constant 1.000980e-02 : bf16
    %31 = vector.broadcast %cst_20 : bf16 to vector<128x128xbf16>
    %32 = arith.mulf %31, %28 : vector<128x128xbf16>
    %33 = arith.select %30, %28, %32 : vector<128x128xi1>, vector<128x128xbf16>
    %34 = arith.extf %33 : vector<128x128xbf16> to vector<128x128xf32>
    %c0_21 = arith.constant 0 : index
    %c0_22 = arith.constant 0 : index
    %35 = vector.load %arg8[%c0_21, %c0_22] : memref<128x1xf32, #tpu.memory_space<vmem>>, vector<128x1xf32>
    %36 = vector.broadcast %35 : vector<128x1xf32> to vector<128x128xf32>
    %37 = arith.mulf %34, %36 : vector<128x128xf32>
    %cst_23 = arith.constant dense<0.000000e+00> : vector<128xf32>
    %38 = vector.multi_reduction <add>, %37, %cst_23 [0] : vector<128x128xf32> to vector<128xf32>
    %39 = vector.shape_cast %38 : vector<128xf32> to vector<1x128xf32>
    %c0_24 = arith.constant 0 : index
    %c0_25 = arith.constant 0 : index
    %40 = vector.load %arg9[%c0_24, %c0_25] : memref<1x1xf32, #tpu.memory_space<vmem>>, vector<1x1xf32>
    %41 = vector.broadcast %40 : vector<1x1xf32> to vector<1x128xf32>
    %42 = arith.addf %39, %41 : vector<1x128xf32>
    %43 = math.absf %42 : vector<1x128xf32>
    %cst_26 = arith.constant 0.000000e+00 : f32
    %44 = vector.broadcast %cst_26 : f32 to vector<1x128xf32>
    %45 = arith.subf %44, %43 : vector<1x128xf32>
    %46 = math.exp %45 : vector<1x128xf32>
    %cst_27 = arith.constant 0.000000e+00 : f32
    %47 = vector.broadcast %cst_27 : f32 to vector<1x128xf32>
    %48 = arith.cmpf oge, %42, %47 : vector<1x128xf32>
    %cst_28 = arith.constant 1.000000e+00 : f32
    %49 = vector.broadcast %cst_28 : f32 to vector<1x128xf32>
    %50 = arith.addf %49, %46 : vector<1x128xf32>
    %cst_29 = arith.constant 1.000000e+00 : f32
    %51 = vector.broadcast %cst_29 : f32 to vector<1x128xf32>
    %52 = arith.divf %51, %50 : vector<1x128xf32>
    %cst_30 = arith.constant 1.000000e+00 : f32
    %53 = vector.broadcast %cst_30 : f32 to vector<1x128xf32>
    %54 = arith.addf %53, %46 : vector<1x128xf32>
    %55 = arith.divf %46, %54 : vector<1x128xf32>
    %56 = arith.select %48, %52, %55 : vector<1x128xi1>, vector<1x128xf32>
    %c0_31 = arith.constant 0 : index
    %c0_32 = arith.constant 0 : index
    %57 = vector.load %arg10[%c0_31, %c0_32] : memref<1x128xf32, #tpu.memory_space<vmem>>, vector<1x128xf32>
    tpu.vector_store %arg10[%c0_31, %c0_32], %56 {strides = array<i32>} : memref<1x128xf32, #tpu.memory_space<vmem>>, vector<1x128xf32>,
    return
  }
  func.func @transform_0(%arg0: i32) -> (i32, i32) {
    %c0_i32 = arith.constant 0 : i32
    %c0_i32_0 = arith.constant 0 : i32
    return %c0_i32, %arg0 : i32, i32
  }
  func.func @transform_1(%arg0: i32) -> (i32, i32) {
    %c0_i32 = arith.constant 0 : i32
    %c0_i32_0 = arith.constant 0 : i32
    %c0_i32_1 = arith.constant 0 : i32
    return %c0_i32, %c0_i32_0 : i32, i32
  }
  func.func @transform_2(%arg0: i32) -> (i32, i32) {
    %c0_i32 = arith.constant 0 : i32
    %c0_i32_0 = arith.constant 0 : i32
    %c0_i32_1 = arith.constant 0 : i32
    return %c0_i32, %c0_i32_0 : i32, i32
  }
  func.func @transform_3(%arg0: i32) -> (i32, i32) {
    %c0_i32 = arith.constant 0 : i32
    %c0_i32_0 = arith.constant 0 : i32
    %c0_i32_1 = arith.constant 0 : i32
    return %c0_i32, %c0_i32_0 : i32, i32
  }
  func.func @transform_4(%arg0: i32) -> (i32, i32) {
    %c0_i32 = arith.constant 0 : i32
    %c0_i32_0 = arith.constant 0 : i32
    %c0_i32_1 = arith.constant 0 : i32
    return %c0_i32, %c0_i32_0 : i32, i32
  }
  func.func @transform_5(%arg0: i32) -> (i32, i32) {
    %c0_i32 = arith.constant 0 : i32
    %c0_i32_0 = arith.constant 0 : i32
    %c0_i32_1 = arith.constant 0 : i32
    return %c0_i32, %c0_i32_0 : i32, i32
  }
  func.func @transform_6(%arg0: i32) -> (i32, i32) {
    %c0_i32 = arith.constant 0 : i32
    %c0_i32_0 = arith.constant 0 : i32
    %c0_i32_1 = arith.constant 0 : i32
    return %c0_i32, %c0_i32_0 : i32, i32
  }
  func.func @transform_7(%arg0: i32) -> (i32, i32) {
    %c0_i32 = arith.constant 0 : i32
    %c0_i32_0 = arith.constant 0 : i32
    %c0_i32_1 = arith.constant 0 : i32
    return %c0_i32, %c0_i32_0 : i32, i32
  }
  func.func @transform_8(%arg0: i32) -> (i32, i32) {
    %c0_i32 = arith.constant 0 : i32
    %c0_i32_0 = arith.constant 0 : i32
    %c0_i32_1 = arith.constant 0 : i32
    return %c0_i32, %c0_i32_0 : i32, i32
  }
  func.func @transform_9(%arg0: i32) -> (i32, i32) {
    %c0_i32 = arith.constant 0 : i32
    %c0_i32_0 = arith.constant 0 : i32
    return %c0_i32, %arg0 : i32, i32
  }
}

</mosaic_0001>

<llo_original>
// kernel: tpu_custom_call.1
$region0: #{tpu_custom_call.1}
  #allocation0 [shape = 'u32[]', space=smem, size = 0x4, offset = 0x4, fixed_abs, tag = 'smem constant byte address 0x4 - core index']
  #allocation1 [shape = 'u32[72,128]{1,0:T(1,128)}', space=vmem, size = 0x9000, scoped, tag = 'internal scratch']
  #allocation2 [shape = 'f32[1,1]{1,0:T(1,128)S(1)}', space=vmem, size = 0x200, scoped, tag = 'scoped memory for tpu_custom_call.1']
  %s0 = inlined_call_operand.vmem [shape: bf16[2,128], index: 0, kind: input, shape index: {}]
  %s1 = inlined_call_operand.vmem [shape: bf16[512,2], index: 1, kind: input, shape index: {}]
  %s2 = inlined_call_operand.vmem [shape: bf16[512,1], index: 2, kind: input, shape index: {}]
  %s3 = inlined_call_operand.vmem [shape: bf16[256,512], index: 3, kind: input, shape index: {}]
  %s4 = inlined_call_operand.vmem [shape: bf16[256,1], index: 4, kind: input, shape index: {}]
  %s5 = inlined_call_operand.vmem [shape: bf16[128,256], index: 5, kind: input, shape index: {}]
  %s6 = inlined_call_operand.vmem [shape: bf16[128,1], index: 6, kind: input, shape index: {}]
  %s7 = inlined_call_operand.vmem [shape: f32[128,1], index: 7, kind: input, shape index: {}]
  %s8 = inlined_call_operand.<no memory space> [shape: f32[1,1], index: 8, kind: input, shape index: {}]
  %s9 = inlined_call_operand.hbm [shape: f32[1,128], index: 9, kind: output, shape index: {}]
  %s10 = sld [smem:[#allocation0]]
  $region46: #{tpu_custom_call.1} parent=0
    _
  %s12 = ssub.s32 1, %s10
  %s13 = scalar_select 0, %s12, %s10
  %v14 = vstv %s8
  %15 = vst [vmem:[#allocation2] sm:$0x1] %v14
  $region1: #{tpu_custom_call.1} parent=0
    #allocation3 [shape = 'u8[512]{0}', space=vmem, size = 0x400, scoped, tag = 'output window, operand 0, single buffered']
    #allocation4 [shape = 's32[1]{0}', space=sflag, size = 0x4, scoped, tag = 'scoped memory for tpu_custom_call.1']
    %16 = vsyncpa [#allocation4], 0
    // Predicated region
    $region2: #{tpu_custom_call.1} parent=1 // pred_check
      _
    $region3: #{tpu_custom_call.1} parent=1 // pred_check_branch
      %18 = sbr.rel (0) target = $region5
    $region4: #{tpu_custom_call.1} parent=1 // pred_region
      _
    $region5: #{tpu_custom_call.1} parent=1 // pred_fallthru
      _
    // Predicated region
    $region6: #{tpu_custom_call.1} parent=1 // pred_check
      _
    $region7: #{tpu_custom_call.1} parent=1 // pred_check_branch
      %20 = sbr.rel (0) target = $region9
    $region8: #{tpu_custom_call.1} parent=1 // pred_region
      _
    $region9: #{tpu_custom_call.1} parent=1 // pred_fallthru
      _
    // Predicated region
    $region10: #{tpu_custom_call.1} parent=1 // pred_check
      _
    $region11: #{tpu_custom_call.1} parent=1 // pred_check_branch
      %22 = sbr.rel (0) target = $region13
    $region12: #{tpu_custom_call.1} parent=1 // pred_region
      _
    $region13: #{tpu_custom_call.1} parent=1 // pred_fallthru
      _
    // Predicated region
    $region14: #{tpu_custom_call.1} parent=1 // pred_check
      _
    $region15: #{tpu_custom_call.1} parent=1 // pred_check_branch
      %24 = sbr.rel (0) target = $region17
    $region16: #{tpu_custom_call.1} parent=1 // pred_region
      _
    $region17: #{tpu_custom_call.1} parent=1 // pred_fallthru
      _
    // Predicated region
    $region18: #{tpu_custom_call.1} parent=1 // pred_check
      _
    $region19: #{tpu_custom_call.1} parent=1 // pred_check_branch
      %26 = sbr.rel (0) target = $region21
    $region20: #{tpu_custom_call.1} parent=1 // pred_region
      _
    $region21: #{tpu_custom_call.1} parent=1 // pred_fallthru
      _
    // Predicated region
    $region22: #{tpu_custom_call.1} parent=1 // pred_check
      _
    $region23: #{tpu_custom_call.1} parent=1 // pred_check_branch
      %28 = sbr.rel (0) target = $region25
    $region24: #{tpu_custom_call.1} parent=1 // pred_region
      _
    $region25: #{tpu_custom_call.1} parent=1 // pred_fallthru
      _
    // Predicated region
    $region26: #{tpu_custom_call.1} parent=1 // pred_check
      _
    $region27: #{tpu_custom_call.1} parent=1 // pred_check_branch
      %30 = sbr.rel (0) target = $region29
    $region28: #{tpu_custom_call.1} parent=1 // pred_region
      _
    $region29: #{tpu_custom_call.1} parent=1 // pred_fallthru
      _
    // Predicated region
    $region30: #{tpu_custom_call.1} parent=1 // pred_check
      _
    $region31: #{tpu_custom_call.1} parent=1 // pred_check_branch
      %32 = sbr.rel (0) target = $region33
    $region32: #{tpu_custom_call.1} parent=1 // pred_region
      _
    $region33: #{tpu_custom_call.1} parent=1 // pred_fallthru
      _
    // Predicated region
    $region34: #{tpu_custom_call.1} parent=1 // pred_check
      _
    $region35: #{tpu_custom_call.1} parent=1 // pred_check_branch
      %34 = sbr.rel (0) target = $region37
    $region36: #{tpu_custom_call.1} parent=1 // pred_region
      _
    $region37: #{tpu_custom_call.1} parent=1 // pred_fallthru
      _
    %v36 = vld [vmem:[%s1] sm:$0xf]
    %v37 = vld [vmem:[%s1 + $0x4] sm:$0xf]
    %v38 = vld [vmem:[%s1 + $0x8] sm:$0xf]
    %v39 = vld [vmem:[%s1 + $0xc] sm:$0xf]
    %v40 = vld [vmem:[%s1 + $0x10] sm:$0xf]
    %v41 = vld [vmem:[%s1 + $0x14] sm:$0xf]
    %v42 = vld [vmem:[%s1 + $0x18] sm:$0xf]
    %v43 = vld [vmem:[%s1 + $0x1c] sm:$0xf]
    %v44 = vld [vmem:[%s1 + $0x20] sm:$0xf]
    %v45 = vld [vmem:[%s1 + $0x24] sm:$0xf]
    %v46 = vld [vmem:[%s1 + $0x28] sm:$0xf]
    %v47 = vld [vmem:[%s1 + $0x2c] sm:$0xf]
    %v48 = vld [vmem:[%s1 + $0x30] sm:$0xf]
    %v49 = vld [vmem:[%s1 + $0x34] sm:$0xf]
    %v50 = vld [vmem:[%s1 + $0x38] sm:$0xf]
    %v51 = vld [vmem:[%s1 + $0x3c] sm:$0xf]
    %v52 = vld [vmem:[%s1 + $0x40] sm:$0xf]
    %v53 = vld [vmem:[%s1 + $0x44] sm:$0xf]
    %v54 = vld [vmem:[%s1 + $0x48] sm:$0xf]
    %v55 = vld [vmem:[%s1 + $0x4c] sm:$0xf]
    %v56 = vld [vmem:[%s1 + $0x50] sm:$0xf]
    %v57 = vld [vmem:[%s1 + $0x54] sm:$0xf]
    %v58 = vld [vmem:[%s1 + $0x58] sm:$0xf]
    %v59 = vld [vmem:[%s1 + $0x5c] sm:$0xf]
    %v60 = vld [vmem:[%s1 + $0x60] sm:$0xf]
    %v61 = vld [vmem:[%s1 + $0x64] sm:$0xf]
    %v62 = vld [vmem:[%s1 + $0x68] sm:$0xf]
    %v63 = vld [vmem:[%s1 + $0x6c] sm:$0xf]
    %v64 = vld [vmem:[%s1 + $0x70] sm:$0xf]
    %v65 = vld [vmem:[%s1 + $0x74] sm:$0xf]
    %v66 = vld [vmem:[%s1 + $0x78] sm:$0xf]
    %v67 = vld [vmem:[%s1 + $0x7c] sm:$0xf]
    %v68 = vld [vmem:[%s1 + $0x80] sm:$0xf]
    %v69 = vld [vmem:[%s1 + $0x84] sm:$0xf]
    %v70 = vld [vmem:[%s1 + $0x88] sm:$0xf]
    %v71 = vld [vmem:[%s1 + $0x8c] sm:$0xf]
    %v72 = vld [vmem:[%s1 + $0x90] sm:$0xf]
    %v73 = vld [vmem:[%s1 + $0x94] sm:$0xf]
    %v74 = vld [vmem:[%s1 + $0x98] sm:$0xf]
    %v75 = vld [vmem:[%s1 + $0x9c] sm:$0xf]
    %v76 = vld [vmem:[%s1 + $0xa0] sm:$0xf]
    %v77 = vld [vmem:[%s1 + $0xa4] sm:$0xf]
    %v78 = vld [vmem:[%s1 + $0xa8] sm:$0xf]
    %v79 = vld [vmem:[%s1 + $0xac] sm:$0xf]
    %v80 = vld [vmem:[%s1 + $0xb0] sm:$0xf]
    %v81 = vld [vmem:[%s1 + $0xb4] sm:$0xf]
    %v82 = vld [vmem:[%s1 + $0xb8] sm:$0xf]
    %v83 = vld [vmem:[%s1 + $0xbc] sm:$0xf]
    %v84 = vld [vmem:[%s1 + $0xc0] sm:$0xf]
    %v85 = vld [vmem:[%s1 + $0xc4] sm:$0xf]
    %v86 = vld [vmem:[%s1 + $0xc8] sm:$0xf]
    %v87 = vld [vmem:[%s1 + $0xcc] sm:$0xf]
    %v88 = vld [vmem:[%s1 + $0xd0] sm:$0xf]
    %v89 = vld [vmem:[%s1 + $0xd4] sm:$0xf]
    %v90 = vld [vmem:[%s1 + $0xd8] sm:$0xf]
    %v91 = vld [vmem:[%s1 + $0xdc] sm:$0xf]
    %v92 = vld [vmem:[%s1 + $0xe0] sm:$0xf]
    %v93 = vld [vmem:[%s1 + $0xe4] sm:$0xf]
    %v94 = vld [vmem:[%s1 + $0xe8] sm:$0xf]
    %v95 = vld [vmem:[%s1 + $0xec] sm:$0xf]
    %v96 = vld [vmem:[%s1 + $0xf0] sm:$0xf]
    %v97 = vld [vmem:[%s1 + $0xf4] sm:$0xf]
    %v98 = vld [vmem:[%s1 + $0xf8] sm:$0xf]
    %v99 = vld [vmem:[%s1 + $0xfc] sm:$0xf]
    %v100 = vld [vmem:[%s0] sm:$0x1]
    %v165 = vunpack.c.l.b16 %v36
    %v166 = vunpack.c.l.b16 %v37
    %v167 = vunpack.c.l.b16 %v38
    %v168 = vunpack.c.l.b16 %v39
    %v169 = vunpack.c.l.b16 %v40
    %v170 = vunpack.c.l.b16 %v41
    %v171 = vunpack.c.l.b16 %v42
    %v172 = vunpack.c.l.b16 %v43
    %v173 = vunpack.c.l.b16 %v44
    %v174 = vunpack.c.l.b16 %v45
    %v175 = vunpack.c.l.b16 %v46
    %v176 = vunpack.c.l.b16 %v47
    %v177 = vunpack.c.l.b16 %v48
    %v178 = vunpack.c.l.b16 %v49
    %v179 = vunpack.c.l.b16 %v50
    %v180 = vunpack.c.l.b16 %v51
    %v181 = vunpack.c.l.b16 %v52
    %v182 = vunpack.c.l.b16 %v53
    %v183 = vunpack.c.l.b16 %v54
    %v184 = vunpack.c.l.b16 %v55
    %v185 = vunpack.c.l.b16 %v56
    %v186 = vunpack.c.l.b16 %v57
    %v187 = vunpack.c.l.b16 %v58
    %v188 = vunpack.c.l.b16 %v59
    %v189 = vunpack.c.l.b16 %v60
    %v190 = vunpack.c.l.b16 %v61
    %v191 = vunpack.c.l.b16 %v62
    %v192 = vunpack.c.l.b16 %v63
    %v193 = vunpack.c.l.b16 %v64
    %v194 = vunpack.c.l.b16 %v65
    %v195 = vunpack.c.l.b16 %v66
    %v196 = vunpack.c.l.b16 %v67
    %v197 = vunpack.c.l.b16 %v68
    %v198 = vunpack.c.l.b16 %v69
    %v199 = vunpack.c.l.b16 %v70
    %v200 = vunpack.c.l.b16 %v71
    %v201 = vunpack.c.l.b16 %v72
    %v202 = vunpack.c.l.b16 %v73
    %v203 = vunpack.c.l.b16 %v74
    %v204 = vunpack.c.l.b16 %v75
    %v205 = vunpack.c.l.b16 %v76
    %v206 = vunpack.c.l.b16 %v77
    %v207 = vunpack.c.l.b16 %v78
    %v208 = vunpack.c.l.b16 %v79
    %v209 = vunpack.c.l.b16 %v80
    %v210 = vunpack.c.l.b16 %v81
    %v211 = vunpack.c.l.b16 %v82
    %v212 = vunpack.c.l.b16 %v83
    %v213 = vunpack.c.l.b16 %v84
    %v214 = vunpack.c.l.b16 %v85
    %v215 = vunpack.c.l.b16 %v86
    %v216 = vunpack.c.l.b16 %v87
    %v217 = vunpack.c.l.b16 %v88
    %v218 = vunpack.c.l.b16 %v89
    %v219 = vunpack.c.l.b16 %v90
    %v220 = vunpack.c.l.b16 %v91
    %v221 = vunpack.c.l.b16 %v92
    %v222 = vunpack.c.l.b16 %v93
    %v223 = vunpack.c.l.b16 %v94
    %v224 = vunpack.c.l.b16 %v95
    %v225 = vunpack.c.l.b16 %v96
    %v226 = vunpack.c.l.b16 %v97
    %v227 = vunpack.c.l.b16 %v98
    %v228 = vunpack.c.l.b16 %v99
    %v229 = vpack.c.b16 %v166, %v165
    %v230 = vpack.c.b16 %v168, %v167
    %v231 = vpack.c.b16 %v170, %v169
    %v232 = vpack.c.b16 %v172, %v171
    %v233 = vpack.c.b16 %v174, %v173
    %v234 = vpack.c.b16 %v176, %v175
    %v235 = vpack.c.b16 %v178, %v177
    %v236 = vpack.c.b16 %v180, %v179
    %v237 = vpack.c.b16 %v182, %v181
    %v238 = vpack.c.b16 %v184, %v183
    %v239 = vpack.c.b16 %v186, %v185
    %v240 = vpack.c.b16 %v188, %v187
    %v241 = vpack.c.b16 %v190, %v189
    %v242 = vpack.c.b16 %v192, %v191
    %v243 = vpack.c.b16 %v194, %v193
    %v244 = vpack.c.b16 %v196, %v195
    %v245 = vpack.c.b16 %v198, %v197
    %v246 = vpack.c.b16 %v200, %v199
    %v247 = vpack.c.b16 %v202, %v201
    %v248 = vpack.c.b16 %v204, %v203
    %v249 = vpack.c.b16 %v206, %v205
    %v250 = vpack.c.b16 %v208, %v207
    %v251 = vpack.c.b16 %v210, %v209
    %v252 = vpack.c.b16 %v212, %v211
    %v253 = vpack.c.b16 %v214, %v213
    %v254 = vpack.c.b16 %v216, %v215
    %v255 = vpack.c.b16 %v218, %v217
    %v256 = vpack.c.b16 %v220, %v219
    %v257 = vpack.c.b16 %v222, %v221
    %v258 = vpack.c.b16 %v224, %v223
    %v259 = vpack.c.b16 %v226, %v225
    %v260 = vpack.c.b16 %v228, %v227
    %vm261 = vcmask 15360
    %v263 = vsel %vm261, %v229, 0
    %v266 = vsel %vm261, %v230, 0
    %v269 = vsel %vm261, %v231, 0
    %v272 = vsel %vm261, %v232, 0
    %v275 = vsel %vm261, %v233, 0
    %v278 = vsel %vm261, %v234, 0
    %v281 = vsel %vm261, %v235, 0
    %v284 = vsel %vm261, %v236, 0
    %v287 = vsel %vm261, %v237, 0
    %v290 = vsel %vm261, %v238, 0
    %v293 = vsel %vm261, %v239, 0
    %v296 = vsel %vm261, %v240, 0
    %v299 = vsel %vm261, %v241, 0
    %v302 = vsel %vm261, %v242, 0
    %v305 = vsel %vm261, %v243, 0
    %v308 = vsel %vm261, %v244, 0
    %v311 = vsel %vm261, %v245, 0
    %v314 = vsel %vm261, %v246, 0
    %v317 = vsel %vm261, %v247, 0
    %v320 = vsel %vm261, %v248, 0
    %v323 = vsel %vm261, %v249, 0
    %v326 = vsel %vm261, %v250, 0
    %v329 = vsel %vm261, %v251, 0
    %v332 = vsel %vm261, %v252, 0
    %v335 = vsel %vm261, %v253, 0
    %v338 = vsel %vm261, %v254, 0
    %v341 = vsel %vm261, %v255, 0
    %v344 = vsel %vm261, %v256, 0
    %v347 = vsel %vm261, %v257, 0
    %v350 = vsel %vm261, %v258, 0
    %v353 = vsel %vm261, %v259, 0
    %v356 = vsel %vm261, %v260, 0
    %vm358 = vcmask 1040384
    %v360 = vsel %vm358, %v100, 0
    %362 = vmatpush.bf16.msra.mxu0 0
    %363 = vmatpush.bf16.msra.mxu0 0
    %364 = vmatpush.bf16.msra.mxu0 0
    %365 = vmatpush.bf16.msra.mxu0 0
    %366 = vmatpush.bf16.msra.mxu0 0
    %367 = vmatpush.bf16.msra.mxu0 0
    %368 = vmatpush.bf16.msra.mxu0 0
    %369 = vmatpush.bf16.msra.mxu0 %v360
    %370 = vmatmul.bf16.gmra.mxu0 %v263
    %v371 = vpop.f32.mrf.mxu0
    %v372 = vadd.f32 0.0, %v371
    %v373 = vpop.f32.mrf.mxu0
    %v374 = vadd.f32 0.0, %v373
    %375 = vmatmul.bf16.gmra.mxu0 %v266
    %v376 = vpop.f32.mrf.mxu0
    %v377 = vadd.f32 0.0, %v376
    %v378 = vpop.f32.mrf.mxu0
    %v379 = vadd.f32 0.0, %v378
    %380 = vmatmul.bf16.gmra.mxu0 %v269
    %v381 = vpop.f32.mrf.mxu0
    %v382 = vadd.f32 0.0, %v381
    %v383 = vpop.f32.mrf.mxu0
    %v384 = vadd.f32 0.0, %v383
    %385 = vmatmul.bf16.gmra.mxu0 %v272
    %v386 = vpop.f32.mrf.mxu0
    %v387 = vadd.f32 0.0, %v386
    %v388 = vpop.f32.mrf.mxu0
    %v389 = vadd.f32 0.0, %v388
    %390 = vmatmul.bf16.gmra.mxu0 %v275
    %v391 = vpop.f32.mrf.mxu0
    %v392 = vadd.f32 0.0, %v391
    %v393 = vpop.f32.mrf.mxu0
    %v394 = vadd.f32 0.0, %v393
    %395 = vmatmul.bf16.gmra.mxu0 %v278
    %v396 = vpop.f32.mrf.mxu0
    %v397 = vadd.f32 0.0, %v396
    %v398 = vpop.f32.mrf.mxu0
    %v399 = vadd.f32 0.0, %v398
    %400 = vmatmul.bf16.gmra.mxu0 %v281
    %v401 = vpop.f32.mrf.mxu0
    %v402 = vadd.f32 0.0, %v401
    %v403 = vpop.f32.mrf.mxu0
    %v404 = vadd.f32 0.0, %v403
    %405 = vmatmul.bf16.gmra.mxu0 %v284
    %v406 = vpop.f32.mrf.mxu0
    %v407 = vadd.f32 0.0, %v406
    %v408 = vpop.f32.mrf.mxu0
    %v409 = vadd.f32 0.0, %v408
    %410 = vmatmul.bf16.gmra.mxu0 %v287
    %v411 = vpop.f32.mrf.mxu0
    %v412 = vadd.f32 0.0, %v411
    %v413 = vpop.f32.mrf.mxu0
    %v414 = vadd.f32 0.0, %v413
    %415 = vmatmul.bf16.gmra.mxu0 %v290
    %v416 = vpop.f32.mrf.mxu0
    %v417 = vadd.f32 0.0, %v416
    %v418 = vpop.f32.mrf.mxu0
    %v419 = vadd.f32 0.0, %v418
    %420 = vmatmul.bf16.gmra.mxu0 %v293
    %v421 = vpop.f32.mrf.mxu0
    %v422 = vadd.f32 0.0, %v421
    %v423 = vpop.f32.mrf.mxu0
    %v424 = vadd.f32 0.0, %v423
    %425 = vmatmul.bf16.gmra.mxu0 %v296
    %v426 = vpop.f32.mrf.mxu0
    %v427 = vadd.f32 0.0, %v426
    %v428 = vpop.f32.mrf.mxu0
    %v429 = vadd.f32 0.0, %v428
    %430 = vmatmul.bf16.gmra.mxu0 %v299
    %v431 = vpop.f32.mrf.mxu0
    %v432 = vadd.f32 0.0, %v431
    %v433 = vpop.f32.mrf.mxu0
    %v434 = vadd.f32 0.0, %v433
    %435 = vmatmul.bf16.gmra.mxu0 %v302
    %v436 = vpop.f32.mrf.mxu0
    %v437 = vadd.f32 0.0, %v436
    %v438 = vpop.f32.mrf.mxu0
    %v439 = vadd.f32 0.0, %v438
    %440 = vmatmul.bf16.gmra.mxu0 %v305
    %v441 = vpop.f32.mrf.mxu0
    %v442 = vadd.f32 0.0, %v441
    %v443 = vpop.f32.mrf.mxu0
    %v444 = vadd.f32 0.0, %v443
    %445 = vmatmul.bf16.gmra.mxu0 %v308
    %v446 = vpop.f32.mrf.mxu0
    %v447 = vadd.f32 0.0, %v446
    %v448 = vpop.f32.mrf.mxu0
    %v449 = vadd.f32 0.0, %v448
    %450 = vmatmul.bf16.gmra.mxu0 %v311
    %v451 = vpop.f32.mrf.mxu0
    %v452 = vadd.f32 0.0, %v451
    %v453 = vpop.f32.mrf.mxu0
    %v454 = vadd.f32 0.0, %v453
    %455 = vmatmul.bf16.gmra.mxu0 %v314
    %v456 = vpop.f32.mrf.mxu0
    %v457 = vadd.f32 0.0, %v456
    %v458 = vpop.f32.mrf.mxu0
    %v459 = vadd.f32 0.0, %v458
    %460 = vmatmul.bf16.gmra.mxu0 %v317
    %v461 = vpop.f32.mrf.mxu0
    %v462 = vadd.f32 0.0, %v461
    %v463 = vpop.f32.mrf.mxu0
    %v464 = vadd.f32 0.0, %v463
    %465 = vmatmul.bf16.gmra.mxu0 %v320
    %v466 = vpop.f32.mrf.mxu0
    %v467 = vadd.f32 0.0, %v466
    %v468 = vpop.f32.mrf.mxu0
    %v469 = vadd.f32 0.0, %v468
    %470 = vmatmul.bf16.gmra.mxu0 %v323
    %v471 = vpop.f32.mrf.mxu0
    %v472 = vadd.f32 0.0, %v471
    %v473 = vpop.f32.mrf.mxu0
    %v474 = vadd.f32 0.0, %v473
    %475 = vmatmul.bf16.gmra.mxu0 %v326
    %v476 = vpop.f32.mrf.mxu0
    %v477 = vadd.f32 0.0, %v476
    %v478 = vpop.f32.mrf.mxu0
    %v479 = vadd.f32 0.0, %v478
    %480 = vmatmul.bf16.gmra.mxu0 %v329
    %v481 = vpop.f32.mrf.mxu0
    %v482 = vadd.f32 0.0, %v481
    %v483 = vpop.f32.mrf.mxu0
    %v484 = vadd.f32 0.0, %v483
    %485 = vmatmul.bf16.gmra.mxu0 %v332
    %v486 = vpop.f32.mrf.mxu0
    %v487 = vadd.f32 0.0, %v486
    %v488 = vpop.f32.mrf.mxu0
    %v489 = vadd.f32 0.0, %v488
    %490 = vmatmul.bf16.gmra.mxu0 %v335
    %v491 = vpop.f32.mrf.mxu0
    %v492 = vadd.f32 0.0, %v491
    %v493 = vpop.f32.mrf.mxu0
    %v494 = vadd.f32 0.0, %v493
    %495 = vmatmul.bf16.gmra.mxu0 %v338
    %v496 = vpop.f32.mrf.mxu0
    %v497 = vadd.f32 0.0, %v496
    %v498 = vpop.f32.mrf.mxu0
    %v499 = vadd.f32 0.0, %v498
    %500 = vmatmul.bf16.gmra.mxu0 %v341
    %v501 = vpop.f32.mrf.mxu0
    %v502 = vadd.f32 0.0, %v501
    %v503 = vpop.f32.mrf.mxu0
    %v504 = vadd.f32 0.0, %v503
    %505 = vmatmul.bf16.gmra.mxu0 %v344
    %v506 = vpop.f32.mrf.mxu0
    %v507 = vadd.f32 0.0, %v506
    %v508 = vpop.f32.mrf.mxu0
    %v509 = vadd.f32 0.0, %v508
    %510 = vmatmul.bf16.gmra.mxu0 %v347
    %v511 = vpop.f32.mrf.mxu0
    %v512 = vadd.f32 0.0, %v511
    %v513 = vpop.f32.mrf.mxu0
    %v514 = vadd.f32 0.0, %v513
    %515 = vmatmul.bf16.gmra.mxu0 %v350
    %v516 = vpop.f32.mrf.mxu0
    %v517 = vadd.f32 0.0, %v516
    %v518 = vpop.f32.mrf.mxu0
    %v519 = vadd.f32 0.0, %v518
    %520 = vmatmul.bf16.gmra.mxu0 %v353
    %v521 = vpop.f32.mrf.mxu0
    %v522 = vadd.f32 0.0, %v521
    %v523 = vpop.f32.mrf.mxu0
    %v524 = vadd.f32 0.0, %v523
    %525 = vmatmul.bf16.gmra.mxu0 %v356
    %v526 = vpop.f32.mrf.mxu0
    %v527 = vadd.f32 0.0, %v526
    %v528 = vpop.f32.mrf.mxu0
    %v529 = vadd.f32 0.0, %v528
    %530 = vdwg.mxu0
    %v531 = vld [vmem:[%s2] sm:$0xf]
    %v532 = vld [vmem:[%s2 + $0x4] sm:$0xf]
    %v533 = vld [vmem:[%s2 + $0x8] sm:$0xf]
    %v534 = vld [vmem:[%s2 + $0xc] sm:$0xf]
    %v535 = vld [vmem:[%s2 + $0x10] sm:$0xf]
    %v536 = vld [vmem:[%s2 + $0x14] sm:$0xf]
    %v537 = vld [vmem:[%s2 + $0x18] sm:$0xf]
    %v538 = vld [vmem:[%s2 + $0x1c] sm:$0xf]
    %v539 = vld [vmem:[%s2 + $0x20] sm:$0xf]
    %v540 = vld [vmem:[%s2 + $0x24] sm:$0xf]
    %v541 = vld [vmem:[%s2 + $0x28] sm:$0xf]
    %v542 = vld [vmem:[%s2 + $0x2c] sm:$0xf]
    %v543 = vld [vmem:[%s2 + $0x30] sm:$0xf]
    %v544 = vld [vmem:[%s2 + $0x34] sm:$0xf]
    %v545 = vld [vmem:[%s2 + $0x38] sm:$0xf]
    %v546 = vld [vmem:[%s2 + $0x3c] sm:$0xf]
    %v547 = vld [vmem:[%s2 + $0x40] sm:$0xf]
    %v548 = vld [vmem:[%s2 + $0x44] sm:$0xf]
    %v549 = vld [vmem:[%s2 + $0x48] sm:$0xf]
    %v550 = vld [vmem:[%s2 + $0x4c] sm:$0xf]
    %v551 = vld [vmem:[%s2 + $0x50] sm:$0xf]
    %v552 = vld [vmem:[%s2 + $0x54] sm:$0xf]
    %v553 = vld [vmem:[%s2 + $0x58] sm:$0xf]
    %v554 = vld [vmem:[%s2 + $0x5c] sm:$0xf]
    %v555 = vld [vmem:[%s2 + $0x60] sm:$0xf]
    %v556 = vld [vmem:[%s2 + $0x64] sm:$0xf]
    %v557 = vld [vmem:[%s2 + $0x68] sm:$0xf]
    %v558 = vld [vmem:[%s2 + $0x6c] sm:$0xf]
    %v559 = vld [vmem:[%s2 + $0x70] sm:$0xf]
    %v560 = vld [vmem:[%s2 + $0x74] sm:$0xf]
    %v561 = vld [vmem:[%s2 + $0x78] sm:$0xf]
    %v562 = vld [vmem:[%s2 + $0x7c] sm:$0xf]
    %v563 = vld [vmem:[%s2 + $0x80] sm:$0xf]
    %v564 = vld [vmem:[%s2 + $0x84] sm:$0xf]
    %v565 = vld [vmem:[%s2 + $0x88] sm:$0xf]
    %v566 = vld [vmem:[%s2 + $0x8c] sm:$0xf]
    %v567 = vld [vmem:[%s2 + $0x90] sm:$0xf]
    %v568 = vld [vmem:[%s2 + $0x94] sm:$0xf]
    %v569 = vld [vmem:[%s2 + $0x98] sm:$0xf]
    %v570 = vld [vmem:[%s2 + $0x9c] sm:$0xf]
    %v571 = vld [vmem:[%s2 + $0xa0] sm:$0xf]
    %v572 = vld [vmem:[%s2 + $0xa4] sm:$0xf]
    %v573 = vld [vmem:[%s2 + $0xa8] sm:$0xf]
    %v574 = vld [vmem:[%s2 + $0xac] sm:$0xf]
    %v575 = vld [vmem:[%s2 + $0xb0] sm:$0xf]
    %v576 = vld [vmem:[%s2 + $0xb4] sm:$0xf]
    %v577 = vld [vmem:[%s2 + $0xb8] sm:$0xf]
    %v578 = vld [vmem:[%s2 + $0xbc] sm:$0xf]
    %v579 = vld [vmem:[%s2 + $0xc0] sm:$0xf]
    %v580 = vld [vmem:[%s2 + $0xc4] sm:$0xf]
    %v581 = vld [vmem:[%s2 + $0xc8] sm:$0xf]
    %v582 = vld [vmem:[%s2 + $0xcc] sm:$0xf]
    %v583 = vld [vmem:[%s2 + $0xd0] sm:$0xf]
    %v584 = vld [vmem:[%s2 + $0xd4] sm:$0xf]
    %v585 = vld [vmem:[%s2 + $0xd8] sm:$0xf]
    %v586 = vld [vmem:[%s2 + $0xdc] sm:$0xf]
    %v587 = vld [vmem:[%s2 + $0xe0] sm:$0xf]
    %v588 = vld [vmem:[%s2 + $0xe4] sm:$0xf]
    %v589 = vld [vmem:[%s2 + $0xe8] sm:$0xf]
    %v590 = vld [vmem:[%s2 + $0xec] sm:$0xf]
    %v591 = vld [vmem:[%s2 + $0xf0] sm:$0xf]
    %v592 = vld [vmem:[%s2 + $0xf4] sm:$0xf]
    %v593 = vld [vmem:[%s2 + $0xf8] sm:$0xf]
    %v594 = vld [vmem:[%s2 + $0xfc] sm:$0xf]
    %v595 = vpack.c.bf16 %v372, %v372
    %v596 = vpack.c.bf16 %v374, %v374
    %v597 = vpack.c.bf16 %v377, %v377
    %v598 = vpack.c.bf16 %v379, %v379
    %v599 = vpack.c.bf16 %v382, %v382
    %v600 = vpack.c.bf16 %v384, %v384
    %v601 = vpack.c.bf16 %v387, %v387
    %v602 = vpack.c.bf16 %v389, %v389
    %v603 = vpack.c.bf16 %v392, %v392
    %v604 = vpack.c.bf16 %v394, %v394
    %v605 = vpack.c.bf16 %v397, %v397
    %v606 = vpack.c.bf16 %v399, %v399
    %v607 = vpack.c.bf16 %v402, %v402
    %v608 = vpack.c.bf16 %v404, %v404
    %v609 = vpack.c.bf16 %v407, %v407
    %v610 = vpack.c.bf16 %v409, %v409
    %v611 = vpack.c.bf16 %v412, %v412
    %v612 = vpack.c.bf16 %v414, %v414
    %v613 = vpack.c.bf16 %v417, %v417
    %v614 = vpack.c.bf16 %v419, %v419
    %v615 = vpack.c.bf16 %v422, %v422
    %v616 = vpack.c.bf16 %v424, %v424
    %v617 = vpack.c.bf16 %v427, %v427
    %v618 = vpack.c.bf16 %v429, %v429
    %v619 = vpack.c.bf16 %v432, %v432
    %v620 = vpack.c.bf16 %v434, %v434
    %v621 = vpack.c.bf16 %v437, %v437
    %v622 = vpack.c.bf16 %v439, %v439
    %v623 = vpack.c.bf16 %v442, %v442
    %v624 = vpack.c.bf16 %v444, %v444
    %v625 = vpack.c.bf16 %v447, %v447
    %v626 = vpack.c.bf16 %v449, %v449
    %v627 = vpack.c.bf16 %v452, %v452
    %v628 = vpack.c.bf16 %v454, %v454
    %v629 = vpack.c.bf16 %v457, %v457
    %v630 = vpack.c.bf16 %v459, %v459
    %v631 = vpack.c.bf16 %v462, %v462
    %v632 = vpack.c.bf16 %v464, %v464
    %v633 = vpack.c.bf16 %v467, %v467
    %v634 = vpack.c.bf16 %v469, %v469
    %v635 = vpack.c.bf16 %v472, %v472
    %v636 = vpack.c.bf16 %v474, %v474
    %v637 = vpack.c.bf16 %v477, %v477
    %v638 = vpack.c.bf16 %v479, %v479
    %v639 = vpack.c.bf16 %v482, %v482
    %v640 = vpack.c.bf16 %v484, %v484
    %v641 = vpack.c.bf16 %v487, %v487
    %v642 = vpack.c.bf16 %v489, %v489
    %v643 = vpack.c.bf16 %v492, %v492
    %v644 = vpack.c.bf16 %v494, %v494
    %v645 = vpack.c.bf16 %v497, %v497
    %v646 = vpack.c.bf16 %v499, %v499
    %v647 = vpack.c.bf16 %v502, %v502
    %v648 = vpack.c.bf16 %v504, %v504
    %v649 = vpack.c.bf16 %v507, %v507
    %v650 = vpack.c.bf16 %v509, %v509
    %v651 = vpack.c.bf16 %v512, %v512
    %v652 = vpack.c.bf16 %v514, %v514
    %v653 = vpack.c.bf16 %v517, %v517
    %v654 = vpack.c.bf16 %v519, %v519
    %v655 = vpack.c.bf16 %v522, %v522
    %v656 = vpack.c.bf16 %v524, %v524
    %v657 = vpack.c.bf16 %v527, %v527
    %v658 = vpack.c.bf16 %v529, %v529
    %660 = vset.pattern.permute.xlu0 0
    %661 = vperm.xlu0 %660, %v531
    %v662 = vpop.permute.xlu0 %661
    %v665 = vunpack.c.l.s4 839922192
    %v666 = vunpack.c.0.s8 %v665
    %v667 = vperm.slane %v662, %v666
    %669 = vset.pattern.permute.xlu0 0
    %670 = vperm.xlu0 %669, %v532
    %v671 = vpop.permute.xlu0 %670
    %v674 = vunpack.c.l.s4 839922192
    %v675 = vunpack.c.0.s8 %v674
    %v676 = vperm.slane %v671, %v675
    %678 = vset.pattern.permute.xlu0 0
    %679 = vperm.xlu0 %678, %v533
    %v680 = vpop.permute.xlu0 %679
    %v683 = vunpack.c.l.s4 839922192
    %v684 = vunpack.c.0.s8 %v683
    %v685 = vperm.slane %v680, %v684
    %687 = vset.pattern.permute.xlu0 0
    %688 = vperm.xlu0 %687, %v534
    %v689 = vpop.permute.xlu0 %688
    %v692 = vunpack.c.l.s4 839922192
    %v693 = vunpack.c.0.s8 %v692
    %v694 = vperm.slane %v689, %v693
    %696 = vset.pattern.permute.xlu0 0
    %697 = vperm.xlu0 %696, %v535
    %v698 = vpop.permute.xlu0 %697
    %v701 = vunpack.c.l.s4 839922192
    %v702 = vunpack.c.0.s8 %v701
    %v703 = vperm.slane %v698, %v702
    %705 = vset.pattern.permute.xlu0 0
    %706 = vperm.xlu0 %705, %v536
    %v707 = vpop.permute.xlu0 %706
    %v710 = vunpack.c.l.s4 839922192
    %v711 = vunpack.c.0.s8 %v710
    %v712 = vperm.slane %v707, %v711
    %714 = vset.pattern.permute.xlu0 0
    %715 = vperm.xlu0 %714, %v537
    %v716 = vpop.permute.xlu0 %715
    %v719 = vunpack.c.l.s4 839922192
    %v720 = vunpack.c.0.s8 %v719
    %v721 = vperm.slane %v716, %v720
    %723 = vset.pattern.permute.xlu0 0
    %724 = vperm.xlu0 %723, %v538
    %v725 = vpop.permute.xlu0 %724
    %v728 = vunpack.c.l.s4 839922192
    %v729 = vunpack.c.0.s8 %v728
    %v730 = vperm.slane %v725, %v729
    %732 = vset.pattern.permute.xlu0 0
    %733 = vperm.xlu0 %732, %v539
    %v734 = vpop.permute.xlu0 %733
    %v737 = vunpack.c.l.s4 839922192
    %v738 = vunpack.c.0.s8 %v737
    %v739 = vperm.slane %v734, %v738
    %741 = vset.pattern.permute.xlu0 0
    %742 = vperm.xlu0 %741, %v540
    %v743 = vpop.permute.xlu0 %742
    %v746 = vunpack.c.l.s4 839922192
    %v747 = vunpack.c.0.s8 %v746
    %v748 = vperm.slane %v743, %v747
    %750 = vset.pattern.permute.xlu0 0
    %751 = vperm.xlu0 %750, %v541
    %v752 = vpop.permute.xlu0 %751
    %v755 = vunpack.c.l.s4 839922192
    %v756 = vunpack.c.0.s8 %v755
    %v757 = vperm.slane %v752, %v756
    %759 = vset.pattern.permute.xlu0 0
    %760 = vperm.xlu0 %759, %v542
    %v761 = vpop.permute.xlu0 %760
    %v764 = vunpack.c.l.s4 839922192
    %v765 = vunpack.c.0.s8 %v764
    %v766 = vperm.slane %v761, %v765
    %768 = vset.pattern.permute.xlu0 0
    %769 = vperm.xlu0 %768, %v543
    %v770 = vpop.permute.xlu0 %769
    %v773 = vunpack.c.l.s4 839922192
    %v774 = vunpack.c.0.s8 %v773
    %v775 = vperm.slane %v770, %v774
    %777 = vset.pattern.permute.xlu0 0
    %778 = vperm.xlu0 %777, %v544
    %v779 = vpop.permute.xlu0 %778
    %v782 = vunpack.c.l.s4 839922192
    %v783 = vunpack.c.0.s8 %v782
    %v784 = vperm.slane %v779, %v783
    %786 = vset.pattern.permute.xlu0 0
    %787 = vperm.xlu0 %786, %v545
    %v788 = vpop.permute.xlu0 %787
    %v791 = vunpack.c.l.s4 839922192
    %v792 = vunpack.c.0.s8 %v791
    %v793 = vperm.slane %v788, %v792
    %795 = vset.pattern.permute.xlu0 0
    %796 = vperm.xlu0 %795, %v546
    %v797 = vpop.permute.xlu0 %796
    %v800 = vunpack.c.l.s4 839922192
    %v801 = vunpack.c.0.s8 %v800
    %v802 = vperm.slane %v797, %v801
    %804 = vset.pattern.permute.xlu0 0
    %805 = vperm.xlu0 %804, %v547
    %v806 = vpop.permute.xlu0 %805
    %v809 = vunpack.c.l.s4 839922192
    %v810 = vunpack.c.0.s8 %v809
    %v811 = vperm.slane %v806, %v810
    %813 = vset.pattern.permute.xlu0 0
    %814 = vperm.xlu0 %813, %v548
    %v815 = vpop.permute.xlu0 %814
    %v818 = vunpack.c.l.s4 839922192
    %v819 = vunpack.c.0.s8 %v818
    %v820 = vperm.slane %v815, %v819
    %822 = vset.pattern.permute.xlu0 0
    %823 = vperm.xlu0 %822, %v549
    %v824 = vpop.permute.xlu0 %823
    %v827 = vunpack.c.l.s4 839922192
    %v828 = vunpack.c.0.s8 %v827
    %v829 = vperm.slane %v824, %v828
    %831 = vset.pattern.permute.xlu0 0
    %832 = vperm.xlu0 %831, %v550
    %v833 = vpop.permute.xlu0 %832
    %v836 = vunpack.c.l.s4 839922192
    %v837 = vunpack.c.0.s8 %v836
    %v838 = vperm.slane %v833, %v837
    %840 = vset.pattern.permute.xlu0 0
    %841 = vperm.xlu0 %840, %v551
    %v842 = vpop.permute.xlu0 %841
    %v845 = vunpack.c.l.s4 839922192
    %v846 = vunpack.c.0.s8 %v845
    %v847 = vperm.slane %v842, %v846
    %849 = vset.pattern.permute.xlu0 0
    %850 = vperm.xlu0 %849, %v552
    %v851 = vpop.permute.xlu0 %850
    %v854 = vunpack.c.l.s4 839922192
    %v855 = vunpack.c.0.s8 %v854
    %v856 = vperm.slane %v851, %v855
    %858 = vset.pattern.permute.xlu0 0
    %859 = vperm.xlu0 %858, %v553
    %v860 = vpop.permute.xlu0 %859
    %v863 = vunpack.c.l.s4 839922192
    %v864 = vunpack.c.0.s8 %v863
    %v865 = vperm.slane %v860, %v864
    %867 = vset.pattern.permute.xlu0 0
    %868 = vperm.xlu0 %867, %v554
    %v869 = vpop.permute.xlu0 %868
    %v872 = vunpack.c.l.s4 839922192
    %v873 = vunpack.c.0.s8 %v872
    %v874 = vperm.slane %v869, %v873
    %876 = vset.pattern.permute.xlu0 0
    %877 = vperm.xlu0 %876, %v555
    %v878 = vpop.permute.xlu0 %877
    %v881 = vunpack.c.l.s4 839922192
    %v882 = vunpack.c.0.s8 %v881
    %v883 = vperm.slane %v878, %v882
    %885 = vset.pattern.permute.xlu0 0
    %886 = vperm.xlu0 %885, %v556
    %v887 = vpop.permute.xlu0 %886
    %v890 = vunpack.c.l.s4 839922192
    %v891 = vunpack.c.0.s8 %v890
    %v892 = vperm.slane %v887, %v891
    %894 = vset.pattern.permute.xlu0 0
    %895 = vperm.xlu0 %894, %v557
    %v896 = vpop.permute.xlu0 %895
    %v899 = vunpack.c.l.s4 839922192
    %v900 = vunpack.c.0.s8 %v899
    %v901 = vperm.slane %v896, %v900
    %903 = vset.pattern.permute.xlu0 0
    %904 = vperm.xlu0 %903, %v558
    %v905 = vpop.permute.xlu0 %904
    %v908 = vunpack.c.l.s4 839922192
    %v909 = vunpack.c.0.s8 %v908
    %v910 = vperm.slane %v905, %v909
    %912 = vset.pattern.permute.xlu0 0
    %913 = vperm.xlu0 %912, %v559
    %v914 = vpop.permute.xlu0 %913
    %v917 = vunpack.c.l.s4 839922192
    %v918 = vunpack.c.0.s8 %v917
    %v919 = vperm.slane %v914, %v918
    %921 = vset.pattern.permute.xlu0 0
    %922 = vperm.xlu0 %921, %v560
    %v923 = vpop.permute.xlu0 %922
    %v926 = vunpack.c.l.s4 839922192
    %v927 = vunpack.c.0.s8 %v926
    %v928 = vperm.slane %v923, %v927
    %930 = vset.pattern.permute.xlu0 0
    %931 = vperm.xlu0 %930, %v561
    %v932 = vpop.permute.xlu0 %931
    %v935 = vunpack.c.l.s4 839922192
    %v936 = vunpack.c.0.s8 %v935
    %v937 = vperm.slane %v932, %v936
    %939 = vset.pattern.permute.xlu0 0
    %940 = vperm.xlu0 %939, %v562
    %v941 = vpop.permute.xlu0 %940
    %v944 = vunpack.c.l.s4 839922192
    %v945 = vunpack.c.0.s8 %v944
    %v946 = vperm.slane %v941, %v945
    %948 = vset.pattern.permute.xlu0 0
    %949 = vperm.xlu0 %948, %v563
    %v950 = vpop.permute.xlu0 %949
    %v953 = vunpack.c.l.s4 839922192
    %v954 = vunpack.c.0.s8 %v953
    %v955 = vperm.slane %v950, %v954
    %957 = vset.pattern.permute.xlu0 0
    %958 = vperm.xlu0 %957, %v564
    %v959 = vpop.permute.xlu0 %958
    %v962 = vunpack.c.l.s4 839922192
    %v963 = vunpack.c.0.s8 %v962
    %v964 = vperm.slane %v959, %v963
    %966 = vset.pattern.permute.xlu0 0
    %967 = vperm.xlu0 %966, %v565
    %v968 = vpop.permute.xlu0 %967
    %v971 = vunpack.c.l.s4 839922192
    %v972 = vunpack.c.0.s8 %v971
    %v973 = vperm.slane %v968, %v972
    %975 = vset.pattern.permute.xlu0 0
    %976 = vperm.xlu0 %975, %v566
    %v977 = vpop.permute.xlu0 %976
    %v980 = vunpack.c.l.s4 839922192
    %v981 = vunpack.c.0.s8 %v980
    %v982 = vperm.slane %v977, %v981
    %984 = vset.pattern.permute.xlu0 0
    %985 = vperm.xlu0 %984, %v567
    %v986 = vpop.permute.xlu0 %985
    %v989 = vunpack.c.l.s4 839922192
    %v990 = vunpack.c.0.s8 %v989
    %v991 = vperm.slane %v986, %v990
    %993 = vset.pattern.permute.xlu0 0
    %994 = vperm.xlu0 %993, %v568
    %v995 = vpop.permute.xlu0 %994
    %v998 = vunpack.c.l.s4 839922192
    %v999 = vunpack.c.0.s8 %v998
    %v1000 = vperm.slane %v995, %v999
    %1002 = vset.pattern.permute.xlu0 0
    %1003 = vperm.xlu0 %1002, %v569
    %v1004 = vpop.permute.xlu0 %1003
    %v1007 = vunpack.c.l.s4 839922192
    %v1008 = vunpack.c.0.s8 %v1007
    %v1009 = vperm.slane %v1004, %v1008
    %1011 = vset.pattern.permute.xlu0 0
    %1012 = vperm.xlu0 %1011, %v570
    %v1013 = vpop.permute.xlu0 %1012
    %v1016 = vunpack.c.l.s4 839922192
    %v1017 = vunpack.c.0.s8 %v1016
    %v1018 = vperm.slane %v1013, %v1017
    %1020 = vset.pattern.permute.xlu0 0
    %1021 = vperm.xlu0 %1020, %v571
    %v1022 = vpop.permute.xlu0 %1021
    %v1025 = vunpack.c.l.s4 839922192
    %v1026 = vunpack.c.0.s8 %v1025
    %v1027 = vperm.slane %v1022, %v1026
    %1029 = vset.pattern.permute.xlu0 0
    %1030 = vperm.xlu0 %1029, %v572
    %v1031 = vpop.permute.xlu0 %1030
    %v1034 = vunpack.c.l.s4 839922192
    %v1035 = vunpack.c.0.s8 %v1034
    %v1036 = vperm.slane %v1031, %v1035
    %1038 = vset.pattern.permute.xlu0 0
    %1039 = vperm.xlu0 %1038, %v573
    %v1040 = vpop.permute.xlu0 %1039
    %v1043 = vunpack.c.l.s4 839922192
    %v1044 = vunpack.c.0.s8 %v1043
    %v1045 = vperm.slane %v1040, %v1044
    %1047 = vset.pattern.permute.xlu0 0
    %1048 = vperm.xlu0 %1047, %v574
    %v1049 = vpop.permute.xlu0 %1048
    %v1052 = vunpack.c.l.s4 839922192
    %v1053 = vunpack.c.0.s8 %v1052
    %v1054 = vperm.slane %v1049, %v1053
    %1056 = vset.pattern.permute.xlu0 0
    %1057 = vperm.xlu0 %1056, %v575
    %v1058 = vpop.permute.xlu0 %1057
    %v1061 = vunpack.c.l.s4 839922192
    %v1062 = vunpack.c.0.s8 %v1061
    %v1063 = vperm.slane %v1058, %v1062
    %1065 = vset.pattern.permute.xlu0 0
    %1066 = vperm.xlu0 %1065, %v576
    %v1067 = vpop.permute.xlu0 %1066
    %v1070 = vunpack.c.l.s4 839922192
    %v1071 = vunpack.c.0.s8 %v1070
    %v1072 = vperm.slane %v1067, %v1071
    %1074 = vset.pattern.permute.xlu0 0
    %1075 = vperm.xlu0 %1074, %v577
    %v1076 = vpop.permute.xlu0 %1075
    %v1079 = vunpack.c.l.s4 839922192
    %v1080 = vunpack.c.0.s8 %v1079
    %v1081 = vperm.slane %v1076, %v1080
    %1083 = vset.pattern.permute.xlu0 0
    %1084 = vperm.xlu0 %1083, %v578
    %v1085 = vpop.permute.xlu0 %1084
    %v1088 = vunpack.c.l.s4 839922192
    %v1089 = vunpack.c.0.s8 %v1088
    %v1090 = vperm.slane %v1085, %v1089
    %1092 = vset.pattern.permute.xlu0 0
    %1093 = vperm.xlu0 %1092, %v579
    %v1094 = vpop.permute.xlu0 %1093
    %v1097 = vunpack.c.l.s4 839922192
    %v1098 = vunpack.c.0.s8 %v1097
    %v1099 = vperm.slane %v1094, %v1098
    %1101 = vset.pattern.permute.xlu0 0
    %1102 = vperm.xlu0 %1101, %v580
    %v1103 = vpop.permute.xlu0 %1102
    %v1106 = vunpack.c.l.s4 839922192
    %v1107 = vunpack.c.0.s8 %v1106
    %v1108 = vperm.slane %v1103, %v1107
    %1110 = vset.pattern.permute.xlu0 0
    %1111 = vperm.xlu0 %1110, %v581
    %v1112 = vpop.permute.xlu0 %1111
    %v1115 = vunpack.c.l.s4 839922192
    %v1116 = vunpack.c.0.s8 %v1115
    %v1117 = vperm.slane %v1112, %v1116
    %1119 = vset.pattern.permute.xlu0 0
    %1120 = vperm.xlu0 %1119, %v582
    %v1121 = vpop.permute.xlu0 %1120
    %v1124 = vunpack.c.l.s4 839922192
    %v1125 = vunpack.c.0.s8 %v1124
    %v1126 = vperm.slane %v1121, %v1125
    %1128 = vset.pattern.permute.xlu0 0
    %1129 = vperm.xlu0 %1128, %v583
    %v1130 = vpop.permute.xlu0 %1129
    %v1133 = vunpack.c.l.s4 839922192
    %v1134 = vunpack.c.0.s8 %v1133
    %v1135 = vperm.slane %v1130, %v1134
    %1137 = vset.pattern.permute.xlu0 0
    %1138 = vperm.xlu0 %1137, %v584
    %v1139 = vpop.permute.xlu0 %1138
    %v1142 = vunpack.c.l.s4 839922192
    %v1143 = vunpack.c.0.s8 %v1142
    %v1144 = vperm.slane %v1139, %v1143
    %1146 = vset.pattern.permute.xlu0 0
    %1147 = vperm.xlu0 %1146, %v585
    %v1148 = vpop.permute.xlu0 %1147
    %v1151 = vunpack.c.l.s4 839922192
    %v1152 = vunpack.c.0.s8 %v1151
    %v1153 = vperm.slane %v1148, %v1152
    %1155 = vset.pattern.permute.xlu0 0
    %1156 = vperm.xlu0 %1155, %v586
    %v1157 = vpop.permute.xlu0 %1156
    %v1160 = vunpack.c.l.s4 839922192
    %v1161 = vunpack.c.0.s8 %v1160
    %v1162 = vperm.slane %v1157, %v1161
    %1164 = vset.pattern.permute.xlu0 0
    %1165 = vperm.xlu0 %1164, %v587
    %v1166 = vpop.permute.xlu0 %1165
    %v1169 = vunpack.c.l.s4 839922192
    %v1170 = vunpack.c.0.s8 %v1169
    %v1171 = vperm.slane %v1166, %v1170
    %1173 = vset.pattern.permute.xlu0 0
    %1174 = vperm.xlu0 %1173, %v588
    %v1175 = vpop.permute.xlu0 %1174
    %v1178 = vunpack.c.l.s4 839922192
    %v1179 = vunpack.c.0.s8 %v1178
    %v1180 = vperm.slane %v1175, %v1179
    %1182 = vset.pattern.permute.xlu0 0
    %1183 = vperm.xlu0 %1182, %v589
    %v1184 = vpop.permute.xlu0 %1183
    %v1187 = vunpack.c.l.s4 839922192
    %v1188 = vunpack.c.0.s8 %v1187
    %v1189 = vperm.slane %v1184, %v1188
    %1191 = vset.pattern.permute.xlu0 0
    %1192 = vperm.xlu0 %1191, %v590
    %v1193 = vpop.permute.xlu0 %1192
    %v1196 = vunpack.c.l.s4 839922192
    %v1197 = vunpack.c.0.s8 %v1196
    %v1198 = vperm.slane %v1193, %v1197
    %1200 = vset.pattern.permute.xlu0 0
    %1201 = vperm.xlu0 %1200, %v591
    %v1202 = vpop.permute.xlu0 %1201
    %v1205 = vunpack.c.l.s4 839922192
    %v1206 = vunpack.c.0.s8 %v1205
    %v1207 = vperm.slane %v1202, %v1206
    %1209 = vset.pattern.permute.xlu0 0
    %1210 = vperm.xlu0 %1209, %v592
    %v1211 = vpop.permute.xlu0 %1210
    %v1214 = vunpack.c.l.s4 839922192
    %v1215 = vunpack.c.0.s8 %v1214
    %v1216 = vperm.slane %v1211, %v1215
    %1218 = vset.pattern.permute.xlu0 0
    %1219 = vperm.xlu0 %1218, %v593
    %v1220 = vpop.permute.xlu0 %1219
    %v1223 = vunpack.c.l.s4 839922192
    %v1224 = vunpack.c.0.s8 %v1223
    %v1225 = vperm.slane %v1220, %v1224
    %1227 = vset.pattern.permute.xlu0 0
    %1228 = vperm.xlu0 %1227, %v594
    %v1229 = vpop.permute.xlu0 %1228
    %v1232 = vunpack.c.l.s4 839922192
    %v1233 = vunpack.c.0.s8 %v1232
    %v1234 = vperm.slane %v1229, %v1233
    %v1235 = vunpack.c.l.bf16 %v595
    %v1236 = vunpack.c.l.bf16 %v596
    %v1237 = vunpack.c.l.bf16 %v597
    %v1238 = vunpack.c.l.bf16 %v598
    %v1239 = vunpack.c.l.bf16 %v599
    %v1240 = vunpack.c.l.bf16 %v600
    %v1241 = vunpack.c.l.bf16 %v601
    %v1242 = vunpack.c.l.bf16 %v602
    %v1243 = vunpack.c.l.bf16 %v603
    %v1244 = vunpack.c.l.bf16 %v604
    %v1245 = vunpack.c.l.bf16 %v605
    %v1246 = vunpack.c.l.bf16 %v606
    %v1247 = vunpack.c.l.bf16 %v607
    %v1248 = vunpack.c.l.bf16 %v608
    %v1249 = vunpack.c.l.bf16 %v609
    %v1250 = vunpack.c.l.bf16 %v610
    %v1251 = vunpack.c.l.bf16 %v611
    %v1252 = vunpack.c.l.bf16 %v612
    %v1253 = vunpack.c.l.bf16 %v613
    %v1254 = vunpack.c.l.bf16 %v614
    %v1255 = vunpack.c.l.bf16 %v615
    %v1256 = vunpack.c.l.bf16 %v616
    %v1257 = vunpack.c.l.bf16 %v617
    %v1258 = vunpack.c.l.bf16 %v618
    %v1259 = vunpack.c.l.bf16 %v619
    %v1260 = vunpack.c.l.bf16 %v620
    %v1261 = vunpack.c.l.bf16 %v621
    %v1262 = vunpack.c.l.bf16 %v622
    %v1263 = vunpack.c.l.bf16 %v623
    %v1264 = vunpack.c.l.bf16 %v624
    %v1265 = vunpack.c.l.bf16 %v625
    %v1266 = vunpack.c.l.bf16 %v626
    %v1267 = vunpack.c.l.bf16 %v627
    %v1268 = vunpack.c.l.bf16 %v628
    %v1269 = vunpack.c.l.bf16 %v629
    %v1270 = vunpack.c.l.bf16 %v630
    %v1271 = vunpack.c.l.bf16 %v631
    %v1272 = vunpack.c.l.bf16 %v632
    %v1273 = vunpack.c.l.bf16 %v633
    %v1274 = vunpack.c.l.bf16 %v634
    %v1275 = vunpack.c.l.bf16 %v635
    %v1276 = vunpack.c.l.bf16 %v636
    %v1277 = vunpack.c.l.bf16 %v637
    %v1278 = vunpack.c.l.bf16 %v638
    %v1279 = vunpack.c.l.bf16 %v639
    %v1280 = vunpack.c.l.bf16 %v640
    %v1281 = vunpack.c.l.bf16 %v641
    %v1282 = vunpack.c.l.bf16 %v642
    %v1283 = vunpack.c.l.bf16 %v643
    %v1284 = vunpack.c.l.bf16 %v644
    %v1285 = vunpack.c.l.bf16 %v645
    %v1286 = vunpack.c.l.bf16 %v646
    %v1287 = vunpack.c.l.bf16 %v647
    %v1288 = vunpack.c.l.bf16 %v648
    %v1289 = vunpack.c.l.bf16 %v649
    %v1290 = vunpack.c.l.bf16 %v650
    %v1291 = vunpack.c.l.bf16 %v651
    %v1292 = vunpack.c.l.bf16 %v652
    %v1293 = vunpack.c.l.bf16 %v653
    %v1294 = vunpack.c.l.bf16 %v654
    %v1295 = vunpack.c.l.bf16 %v655
    %v1296 = vunpack.c.l.bf16 %v656
    %v1297 = vunpack.c.l.bf16 %v657
    %v1298 = vunpack.c.l.bf16 %v658
    %v1299 = vunpack.c.l.bf16 %v667
    %v1300 = vunpack.c.l.bf16 %v676
    %v1301 = vunpack.c.l.bf16 %v685
    %v1302 = vunpack.c.l.bf16 %v694
    %v1303 = vunpack.c.l.bf16 %v703
    %v1304 = vunpack.c.l.bf16 %v712
    %v1305 = vunpack.c.l.bf16 %v721
    %v1306 = vunpack.c.l.bf16 %v730
    %v1307 = vunpack.c.l.bf16 %v739
    %v1308 = vunpack.c.l.bf16 %v748
    %v1309 = vunpack.c.l.bf16 %v757
    %v1310 = vunpack.c.l.bf16 %v766
    %v1311 = vunpack.c.l.bf16 %v775
    %v1312 = vunpack.c.l.bf16 %v784
    %v1313 = vunpack.c.l.bf16 %v793
    %v1314 = vunpack.c.l.bf16 %v802
    %v1315 = vunpack.c.l.bf16 %v811
    %v1316 = vunpack.c.l.bf16 %v820
    %v1317 = vunpack.c.l.bf16 %v829
    %v1318 = vunpack.c.l.bf16 %v838
    %v1319 = vunpack.c.l.bf16 %v847
    %v1320 = vunpack.c.l.bf16 %v856
    %v1321 = vunpack.c.l.bf16 %v865
    %v1322 = vunpack.c.l.bf16 %v874
    %v1323 = vunpack.c.l.bf16 %v883
    %v1324 = vunpack.c.l.bf16 %v892
    %v1325 = vunpack.c.l.bf16 %v901
    %v1326 = vunpack.c.l.bf16 %v910
    %v1327 = vunpack.c.l.bf16 %v919
    %v1328 = vunpack.c.l.bf16 %v928
    %v1329 = vunpack.c.l.bf16 %v937
    %v1330 = vunpack.c.l.bf16 %v946
    %v1331 = vunpack.c.l.bf16 %v955
    %v1332 = vunpack.c.l.bf16 %v964
    %v1333 = vunpack.c.l.bf16 %v973
    %v1334 = vunpack.c.l.bf16 %v982
    %v1335 = vunpack.c.l.bf16 %v991
    %v1336 = vunpack.c.l.bf16 %v1000
    %v1337 = vunpack.c.l.bf16 %v1009
    %v1338 = vunpack.c.l.bf16 %v1018
    %v1339 = vunpack.c.l.bf16 %v1027
    %v1340 = vunpack.c.l.bf16 %v1036
    %v1341 = vunpack.c.l.bf16 %v1045
    %v1342 = vunpack.c.l.bf16 %v1054
    %v1343 = vunpack.c.l.bf16 %v1063
    %v1344 = vunpack.c.l.bf16 %v1072
    %v1345 = vunpack.c.l.bf16 %v1081
    %v1346 = vunpack.c.l.bf16 %v1090
    %v1347 = vunpack.c.l.bf16 %v1099
    %v1348 = vunpack.c.l.bf16 %v1108
    %v1349 = vunpack.c.l.bf16 %v1117
    %v1350 = vunpack.c.l.bf16 %v1126
    %v1351 = vunpack.c.l.bf16 %v1135
    %v1352 = vunpack.c.l.bf16 %v1144
    %v1353 = vunpack.c.l.bf16 %v1153
    %v1354 = vunpack.c.l.bf16 %v1162
    %v1355 = vunpack.c.l.bf16 %v1171
    %v1356 = vunpack.c.l.bf16 %v1180
    %v1357 = vunpack.c.l.bf16 %v1189
    %v1358 = vunpack.c.l.bf16 %v1198
    %v1359 = vunpack.c.l.bf16 %v1207
    %v1360 = vunpack.c.l.bf16 %v1216
    %v1361 = vunpack.c.l.bf16 %v1225
    %v1362 = vunpack.c.l.bf16 %v1234
    %v1363 = vadd.f32 %v1235, %v1299
    %v1364 = vadd.f32 %v1236, %v1300
    %v1365 = vadd.f32 %v1237, %v1301
    %v1366 = vadd.f32 %v1238, %v1302
    %v1367 = vadd.f32 %v1239, %v1303
    %v1368 = vadd.f32 %v1240, %v1304
    %v1369 = vadd.f32 %v1241, %v1305
    %v1370 = vadd.f32 %v1242, %v1306
    %v1371 = vadd.f32 %v1243, %v1307
    %v1372 = vadd.f32 %v1244, %v1308
    %v1373 = vadd.f32 %v1245, %v1309
    %v1374 = vadd.f32 %v1246, %v1310
    %v1375 = vadd.f32 %v1247, %v1311
    %v1376 = vadd.f32 %v1248, %v1312
    %v1377 = vadd.f32 %v1249, %v1313
    %v1378 = vadd.f32 %v1250, %v1314
    %v1379 = vadd.f32 %v1251, %v1315
    %v1380 = vadd.f32 %v1252, %v1316
    %v1381 = vadd.f32 %v1253, %v1317
    %v1382 = vadd.f32 %v1254, %v1318
    %v1383 = vadd.f32 %v1255, %v1319
    %v1384 = vadd.f32 %v1256, %v1320
    %v1385 = vadd.f32 %v1257, %v1321
    %v1386 = vadd.f32 %v1258, %v1322
    %v1387 = vadd.f32 %v1259, %v1323
    %v1388 = vadd.f32 %v1260, %v1324
    %v1389 = vadd.f32 %v1261, %v1325
    %v1390 = vadd.f32 %v1262, %v1326
    %v1391 = vadd.f32 %v1263, %v1327
    %v1392 = vadd.f32 %v1264, %v1328
    %v1393 = vadd.f32 %v1265, %v1329
    %v1394 = vadd.f32 %v1266, %v1330
    %v1395 = vadd.f32 %v1267, %v1331
    %v1396 = vadd.f32 %v1268, %v1332
    %v1397 = vadd.f32 %v1269, %v1333
    %v1398 = vadd.f32 %v1270, %v1334
    %v1399 = vadd.f32 %v1271, %v1335
    %v1400 = vadd.f32 %v1272, %v1336
    %v1401 = vadd.f32 %v1273, %v1337
    %v1402 = vadd.f32 %v1274, %v1338
    %v1403 = vadd.f32 %v1275, %v1339
    %v1404 = vadd.f32 %v1276, %v1340
    %v1405 = vadd.f32 %v1277, %v1341
    %v1406 = vadd.f32 %v1278, %v1342
    %v1407 = vadd.f32 %v1279, %v1343
    %v1408 = vadd.f32 %v1280, %v1344
    %v1409 = vadd.f32 %v1281, %v1345
    %v1410 = vadd.f32 %v1282, %v1346
    %v1411 = vadd.f32 %v1283, %v1347
    %v1412 = vadd.f32 %v1284, %v1348
    %v1413 = vadd.f32 %v1285, %v1349
    %v1414 = vadd.f32 %v1286, %v1350
    %v1415 = vadd.f32 %v1287, %v1351
    %v1416 = vadd.f32 %v1288, %v1352
    %v1417 = vadd.f32 %v1289, %v1353
    %v1418 = vadd.f32 %v1290, %v1354
    %v1419 = vadd.f32 %v1291, %v1355
    %v1420 = vadd.f32 %v1292, %v1356
    %v1421 = vadd.f32 %v1293, %v1357
    %v1422 = vadd.f32 %v1294, %v1358
    %v1423 = vadd.f32 %v1295, %v1359
    %v1424 = vadd.f32 %v1296, %v1360
    %v1425 = vadd.f32 %v1297, %v1361
    %v1426 = vadd.f32 %v1298, %v1362
    %v1427 = vpack.c.bf16 %v1363, %v1363
    %v1428 = vpack.c.bf16 %v1364, %v1364
    %v1429 = vpack.c.bf16 %v1365, %v1365
    %v1430 = vpack.c.bf16 %v1366, %v1366
    %v1431 = vpack.c.bf16 %v1367, %v1367
    %v1432 = vpack.c.bf16 %v1368, %v1368
    %v1433 = vpack.c.bf16 %v1369, %v1369
    %v1434 = vpack.c.bf16 %v1370, %v1370
    %v1435 = vpack.c.bf16 %v1371, %v1371
    %v1436 = vpack.c.bf16 %v1372, %v1372
    %v1437 = vpack.c.bf16 %v1373, %v1373
    %v1438 = vpack.c.bf16 %v1374, %v1374
    %v1439 = vpack.c.bf16 %v1375, %v1375
    %v1440 = vpack.c.bf16 %v1376, %v1376
    %v1441 = vpack.c.bf16 %v1377, %v1377
    %v1442 = vpack.c.bf16 %v1378, %v1378
    %v1443 = vpack.c.bf16 %v1379, %v1379
    %v1444 = vpack.c.bf16 %v1380, %v1380
    %v1445 = vpack.c.bf16 %v1381, %v1381
    %v1446 = vpack.c.bf16 %v1382, %v1382
    %v1447 = vpack.c.bf16 %v1383, %v1383
    %v1448 = vpack.c.bf16 %v1384, %v1384
    %v1449 = vpack.c.bf16 %v1385, %v1385
    %v1450 = vpack.c.bf16 %v1386, %v1386
    %v1451 = vpack.c.bf16 %v1387, %v1387
    %v1452 = vpack.c.bf16 %v1388, %v1388
    %v1453 = vpack.c.bf16 %v1389, %v1389
    %v1454 = vpack.c.bf16 %v1390, %v1390
    %v1455 = vpack.c.bf16 %v1391, %v1391
    %v1456 = vpack.c.bf16 %v1392, %v1392
    %v1457 = vpack.c.bf16 %v1393, %v1393
    %v1458 = vpack.c.bf16 %v1394, %v1394
    %v1459 = vpack.c.bf16 %v1395, %v1395
    %v1460 = vpack.c.bf16 %v1396, %v1396
    %v1461 = vpack.c.bf16 %v1397, %v1397
    %v1462 = vpack.c.bf16 %v1398, %v1398
    %v1463 = vpack.c.bf16 %v1399, %v1399
    %v1464 = vpack.c.bf16 %v1400, %v1400
    %v1465 = vpack.c.bf16 %v1401, %v1401
    %v1466 = vpack.c.bf16 %v1402, %v1402
    %v1467 = vpack.c.bf16 %v1403, %v1403
    %v1468 = vpack.c.bf16 %v1404, %v1404
    %v1469 = vpack.c.bf16 %v1405, %v1405
    %v1470 = vpack.c.bf16 %v1406, %v1406
    %v1471 = vpack.c.bf16 %v1407, %v1407
    %v1472 = vpack.c.bf16 %v1408, %v1408
    %v1473 = vpack.c.bf16 %v1409, %v1409
    %v1474 = vpack.c.bf16 %v1410, %v1410
    %v1475 = vpack.c.bf16 %v1411, %v1411
    %v1476 = vpack.c.bf16 %v1412, %v1412
    %v1477 = vpack.c.bf16 %v1413, %v1413
    %v1478 = vpack.c.bf16 %v1414, %v1414
    %v1479 = vpack.c.bf16 %v1415, %v1415
    %v1480 = vpack.c.bf16 %v1416, %v1416
    %v1481 = vpack.c.bf16 %v1417, %v1417
    %v1482 = vpack.c.bf16 %v1418, %v1418
    %v1483 = vpack.c.bf16 %v1419, %v1419
    %v1484 = vpack.c.bf16 %v1420, %v1420
    %v1485 = vpack.c.bf16 %v1421, %v1421
    %v1486 = vpack.c.bf16 %v1422, %v1422
    %v1487 = vpack.c.bf16 %v1423, %v1423
    %v1488 = vpack.c.bf16 %v1424, %v1424
    %v1489 = vpack.c.bf16 %v1425, %v1425
    %v1490 = vpack.c.bf16 %v1426, %v1426
    %v1491 = vunpack.c.l.bf16 %v1427
    %v1492 = vunpack.c.l.bf16 %v1428
    %v1493 = vunpack.c.l.bf16 %v1429
    %v1494 = vunpack.c.l.bf16 %v1430
    %v1495 = vunpack.c.l.bf16 %v1431
    %v1496 = vunpack.c.l.bf16 %v1432
    %v1497 = vunpack.c.l.bf16 %v1433
    %v1498 = vunpack.c.l.bf16 %v1434
    %v1499 = vunpack.c.l.bf16 %v1435
    %v1500 = vunpack.c.l.bf16 %v1436
    %v1501 = vunpack.c.l.bf16 %v1437
    %v1502 = vunpack.c.l.bf16 %v1438
    %v1503 = vunpack.c.l.bf16 %v1439
    %v1504 = vunpack.c.l.bf16 %v1440
    %v1505 = vunpack.c.l.bf16 %v1441
    %v1506 = vunpack.c.l.bf16 %v1442
    %v1507 = vunpack.c.l.bf16 %v1443
    %v1508 = vunpack.c.l.bf16 %v1444
    %v1509 = vunpack.c.l.bf16 %v1445
    %v1510 = vunpack.c.l.bf16 %v1446
    %v1511 = vunpack.c.l.bf16 %v1447
    %v1512 = vunpack.c.l.bf16 %v1448
    %v1513 = vunpack.c.l.bf16 %v1449
    %v1514 = vunpack.c.l.bf16 %v1450
    %v1515 = vunpack.c.l.bf16 %v1451
    %v1516 = vunpack.c.l.bf16 %v1452
    %v1517 = vunpack.c.l.bf16 %v1453
    %v1518 = vunpack.c.l.bf16 %v1454
    %v1519 = vunpack.c.l.bf16 %v1455
    %v1520 = vunpack.c.l.bf16 %v1456
    %v1521 = vunpack.c.l.bf16 %v1457
    %v1522 = vunpack.c.l.bf16 %v1458
    %v1523 = vunpack.c.l.bf16 %v1459
    %v1524 = vunpack.c.l.bf16 %v1460
    %v1525 = vunpack.c.l.bf16 %v1461
    %v1526 = vunpack.c.l.bf16 %v1462
    %v1527 = vunpack.c.l.bf16 %v1463
    %v1528 = vunpack.c.l.bf16 %v1464
    %v1529 = vunpack.c.l.bf16 %v1465
    %v1530 = vunpack.c.l.bf16 %v1466
    %v1531 = vunpack.c.l.bf16 %v1467
    %v1532 = vunpack.c.l.bf16 %v1468
    %v1533 = vunpack.c.l.bf16 %v1469
    %v1534 = vunpack.c.l.bf16 %v1470
    %v1535 = vunpack.c.l.bf16 %v1471
    %v1536 = vunpack.c.l.bf16 %v1472
    %v1537 = vunpack.c.l.bf16 %v1473
    %v1538 = vunpack.c.l.bf16 %v1474
    %v1539 = vunpack.c.l.bf16 %v1475
    %v1540 = vunpack.c.l.bf16 %v1476
    %v1541 = vunpack.c.l.bf16 %v1477
    %v1542 = vunpack.c.l.bf16 %v1478
    %v1543 = vunpack.c.l.bf16 %v1479
    %v1544 = vunpack.c.l.bf16 %v1480
    %v1545 = vunpack.c.l.bf16 %v1481
    %v1546 = vunpack.c.l.bf16 %v1482
    %v1547 = vunpack.c.l.bf16 %v1483
    %v1548 = vunpack.c.l.bf16 %v1484
    %v1549 = vunpack.c.l.bf16 %v1485
    %v1550 = vunpack.c.l.bf16 %v1486
    %v1551 = vunpack.c.l.bf16 %v1487
    %v1552 = vunpack.c.l.bf16 %v1488
    %v1553 = vunpack.c.l.bf16 %v1489
    %v1554 = vunpack.c.l.bf16 %v1490
    %vm1555 = vcmp.gt.f32.partialorder %v1491, 0.0
    %vm1556 = vcmp.gt.f32.partialorder %v1492, 0.0
    %vm1557 = vcmp.gt.f32.partialorder %v1493, 0.0
    %vm1558 = vcmp.gt.f32.partialorder %v1494, 0.0
    %vm1559 = vcmp.gt.f32.partialorder %v1495, 0.0
    %vm1560 = vcmp.gt.f32.partialorder %v1496, 0.0
    %vm1561 = vcmp.gt.f32.partialorder %v1497, 0.0
    %vm1562 = vcmp.gt.f32.partialorder %v1498, 0.0
    %vm1563 = vcmp.gt.f32.partialorder %v1499, 0.0
    %vm1564 = vcmp.gt.f32.partialorder %v1500, 0.0
    %vm1565 = vcmp.gt.f32.partialorder %v1501, 0.0
    %vm1566 = vcmp.gt.f32.partialorder %v1502, 0.0
    %vm1567 = vcmp.gt.f32.partialorder %v1503, 0.0
    %vm1568 = vcmp.gt.f32.partialorder %v1504, 0.0
    %vm1569 = vcmp.gt.f32.partialorder %v1505, 0.0
    %vm1570 = vcmp.gt.f32.partialorder %v1506, 0.0
    %vm1571 = vcmp.gt.f32.partialorder %v1507, 0.0
    %vm1572 = vcmp.gt.f32.partialorder %v1508, 0.0
    %vm1573 = vcmp.gt.f32.partialorder %v1509, 0.0
    %vm1574 = vcmp.gt.f32.partialorder %v1510, 0.0
    %vm1575 = vcmp.gt.f32.partialorder %v1511, 0.0
    %vm1576 = vcmp.gt.f32.partialorder %v1512, 0.0
    %vm1577 = vcmp.gt.f32.partialorder %v1513, 0.0
    %vm1578 = vcmp.gt.f32.partialorder %v1514, 0.0
    %vm1579 = vcmp.gt.f32.partialorder %v1515, 0.0
    %vm1580 = vcmp.gt.f32.partialorder %v1516, 0.0
    %vm1581 = vcmp.gt.f32.partialorder %v1517, 0.0
    %vm1582 = vcmp.gt.f32.partialorder %v1518, 0.0
    %vm1583 = vcmp.gt.f32.partialorder %v1519, 0.0
    %vm1584 = vcmp.gt.f32.partialorder %v1520, 0.0
    %vm1585 = vcmp.gt.f32.partialorder %v1521, 0.0
    %vm1586 = vcmp.gt.f32.partialorder %v1522, 0.0
    %vm1587 = vcmp.gt.f32.partialorder %v1523, 0.0
    %vm1588 = vcmp.gt.f32.partialorder %v1524, 0.0
    %vm1589 = vcmp.gt.f32.partialorder %v1525, 0.0
    %vm1590 = vcmp.gt.f32.partialorder %v1526, 0.0
    %vm1591 = vcmp.gt.f32.partialorder %v1527, 0.0
    %vm1592 = vcmp.gt.f32.partialorder %v1528, 0.0
    %vm1593 = vcmp.gt.f32.partialorder %v1529, 0.0
    %vm1594 = vcmp.gt.f32.partialorder %v1530, 0.0
    %vm1595 = vcmp.gt.f32.partialorder %v1531, 0.0
    %vm1596 = vcmp.gt.f32.partialorder %v1532, 0.0
    %vm1597 = vcmp.gt.f32.partialorder %v1533, 0.0
    %vm1598 = vcmp.gt.f32.partialorder %v1534, 0.0
    %vm1599 = vcmp.gt.f32.partialorder %v1535, 0.0
    %vm1600 = vcmp.gt.f32.partialorder %v1536, 0.0
    %vm1601 = vcmp.gt.f32.partialorder %v1537, 0.0
    %vm1602 = vcmp.gt.f32.partialorder %v1538, 0.0
    %vm1603 = vcmp.gt.f32.partialorder %v1539, 0.0
    %vm1604 = vcmp.gt.f32.partialorder %v1540, 0.0
    %vm1605 = vcmp.gt.f32.partialorder %v1541, 0.0
    %vm1606 = vcmp.gt.f32.partialorder %v1542, 0.0
    %vm1607 = vcmp.gt.f32.partialorder %v1543, 0.0
    %vm1608 = vcmp.gt.f32.partialorder %v1544, 0.0
    %vm1609 = vcmp.gt.f32.partialorder %v1545, 0.0
    %vm1610 = vcmp.gt.f32.partialorder %v1546, 0.0
    %vm1611 = vcmp.gt.f32.partialorder %v1547, 0.0
    %vm1612 = vcmp.gt.f32.partialorder %v1548, 0.0
    %vm1613 = vcmp.gt.f32.partialorder %v1549, 0.0
    %vm1614 = vcmp.gt.f32.partialorder %v1550, 0.0
    %vm1615 = vcmp.gt.f32.partialorder %v1551, 0.0
    %vm1616 = vcmp.gt.f32.partialorder %v1552, 0.0
    %vm1617 = vcmp.gt.f32.partialorder %v1553, 0.0
    %vm1618 = vcmp.gt.f32.partialorder %v1554, 0.0
    %v1619 = vmul.f32 %v1491, 0.010009766
    %v1620 = vmul.f32 %v1492, 0.010009766
    %v1621 = vmul.f32 %v1493, 0.010009766
    %v1622 = vmul.f32 %v1494, 0.010009766
    %v1623 = vmul.f32 %v1495, 0.010009766
    %v1624 = vmul.f32 %v1496, 0.010009766
    %v1625 = vmul.f32 %v1497, 0.010009766
    %v1626 = vmul.f32 %v1498, 0.010009766
    %v1627 = vmul.f32 %v1499, 0.010009766
    %v1628 = vmul.f32 %v1500, 0.010009766
    %v1629 = vmul.f32 %v1501, 0.010009766
    %v1630 = vmul.f32 %v1502, 0.010009766
    %v1631 = vmul.f32 %v1503, 0.010009766
    %v1632 = vmul.f32 %v1504, 0.010009766
    %v1633 = vmul.f32 %v1505, 0.010009766
    %v1634 = vmul.f32 %v1506, 0.010009766
    %v1635 = vmul.f32 %v1507, 0.010009766
    %v1636 = vmul.f32 %v1508, 0.010009766
    %v1637 = vmul.f32 %v1509, 0.010009766
    %v1638 = vmul.f32 %v1510, 0.010009766
    %v1639 = vmul.f32 %v1511, 0.010009766
    %v1640 = vmul.f32 %v1512, 0.010009766
    %v1641 = vmul.f32 %v1513, 0.010009766
    %v1642 = vmul.f32 %v1514, 0.010009766
    %v1643 = vmul.f32 %v1515, 0.010009766
    %v1644 = vmul.f32 %v1516, 0.010009766
    %v1645 = vmul.f32 %v1517, 0.010009766
    %v1646 = vmul.f32 %v1518, 0.010009766
    %v1647 = vmul.f32 %v1519, 0.010009766
    %v1648 = vmul.f32 %v1520, 0.010009766
    %v1649 = vmul.f32 %v1521, 0.010009766
    %v1650 = vmul.f32 %v1522, 0.010009766
    %v1651 = vmul.f32 %v1523, 0.010009766
    %v1652 = vmul.f32 %v1524, 0.010009766
    %v1653 = vmul.f32 %v1525, 0.010009766
    %v1654 = vmul.f32 %v1526, 0.010009766
    %v1655 = vmul.f32 %v1527, 0.010009766
    %v1656 = vmul.f32 %v1528, 0.010009766
    %v1657 = vmul.f32 %v1529, 0.010009766
    %v1658 = vmul.f32 %v1530, 0.010009766
    %v1659 = vmul.f32 %v1531, 0.010009766
    %v1660 = vmul.f32 %v1532, 0.010009766
    %v1661 = vmul.f32 %v1533, 0.010009766
    %v1662 = vmul.f32 %v1534, 0.010009766
    %v1663 = vmul.f32 %v1535, 0.010009766
    %v1664 = vmul.f32 %v1536, 0.010009766
    %v1665 = vmul.f32 %v1537, 0.010009766
    %v1666 = vmul.f32 %v1538, 0.010009766
    %v1667 = vmul.f32 %v1539, 0.010009766
    %v1668 = vmul.f32 %v1540, 0.010009766
    %v1669 = vmul.f32 %v1541, 0.010009766
    %v1670 = vmul.f32 %v1542, 0.010009766
    %v1671 = vmul.f32 %v1543, 0.010009766
    %v1672 = vmul.f32 %v1544, 0.010009766
    %v1673 = vmul.f32 %v1545, 0.010009766
    %v1674 = vmul.f32 %v1546, 0.010009766
    %v1675 = vmul.f32 %v1547, 0.010009766
    %v1676 = vmul.f32 %v1548, 0.010009766
    %v1677 = vmul.f32 %v1549, 0.010009766
    %v1678 = vmul.f32 %v1550, 0.010009766
    %v1679 = vmul.f32 %v1551, 0.010009766
    %v1680 = vmul.f32 %v1552, 0.010009766
    %v1681 = vmul.f32 %v1553, 0.010009766
    %v1682 = vmul.f32 %v1554, 0.010009766
    %v1683 = vpack.c.bf16 %v1619, %v1619
    %v1684 = vpack.c.bf16 %v1620, %v1620
    %v1685 = vpack.c.bf16 %v1621, %v1621
    %v1686 = vpack.c.bf16 %v1622, %v1622
    %v1687 = vpack.c.bf16 %v1623, %v1623
    %v1688 = vpack.c.bf16 %v1624, %v1624
    %v1689 = vpack.c.bf16 %v1625, %v1625
    %v1690 = vpack.c.bf16 %v1626, %v1626
    %v1691 = vpack.c.bf16 %v1627, %v1627
    %v1692 = vpack.c.bf16 %v1628, %v1628
    %v1693 = vpack.c.bf16 %v1629, %v1629
    %v1694 = vpack.c.bf16 %v1630, %v1630
    %v1695 = vpack.c.bf16 %v1631, %v1631
    %v1696 = vpack.c.bf16 %v1632, %v1632
    %v1697 = vpack.c.bf16 %v1633, %v1633
    %v1698 = vpack.c.bf16 %v1634, %v1634
    %v1699 = vpack.c.bf16 %v1635, %v1635
    %v1700 = vpack.c.bf16 %v1636, %v1636
    %v1701 = vpack.c.bf16 %v1637, %v1637
    %v1702 = vpack.c.bf16 %v1638, %v1638
    %v1703 = vpack.c.bf16 %v1639, %v1639
    %v1704 = vpack.c.bf16 %v1640, %v1640
    %v1705 = vpack.c.bf16 %v1641, %v1641
    %v1706 = vpack.c.bf16 %v1642, %v1642
    %v1707 = vpack.c.bf16 %v1643, %v1643
    %v1708 = vpack.c.bf16 %v1644, %v1644
    %v1709 = vpack.c.bf16 %v1645, %v1645
    %v1710 = vpack.c.bf16 %v1646, %v1646
    %v1711 = vpack.c.bf16 %v1647, %v1647
    %v1712 = vpack.c.bf16 %v1648, %v1648
    %v1713 = vpack.c.bf16 %v1649, %v1649
    %v1714 = vpack.c.bf16 %v1650, %v1650
    %v1715 = vpack.c.bf16 %v1651, %v1651
    %v1716 = vpack.c.bf16 %v1652, %v1652
    %v1717 = vpack.c.bf16 %v1653, %v1653
    %v1718 = vpack.c.bf16 %v1654, %v1654
    %v1719 = vpack.c.bf16 %v1655, %v1655
    %v1720 = vpack.c.bf16 %v1656, %v1656
    %v1721 = vpack.c.bf16 %v1657, %v1657
    %v1722 = vpack.c.bf16 %v1658, %v1658
    %v1723 = vpack.c.bf16 %v1659, %v1659
    %v1724 = vpack.c.bf16 %v1660, %v1660
    %v1725 = vpack.c.bf16 %v1661, %v1661
    %v1726 = vpack.c.bf16 %v1662, %v1662
    %v1727 = vpack.c.bf16 %v1663, %v1663
    %v1728 = vpack.c.bf16 %v1664, %v1664
    %v1729 = vpack.c.bf16 %v1665, %v1665
    %v1730 = vpack.c.bf16 %v1666, %v1666
    %v1731 = vpack.c.bf16 %v1667, %v1667
    %v1732 = vpack.c.bf16 %v1668, %v1668
    %v1733 = vpack.c.bf16 %v1669, %v1669
    %v1734 = vpack.c.bf16 %v1670, %v1670
    %v1735 = vpack.c.bf16 %v1671, %v1671
    %v1736 = vpack.c.bf16 %v1672, %v1672
    %v1737 = vpack.c.bf16 %v1673, %v1673
    %v1738 = vpack.c.bf16 %v1674, %v1674
    %v1739 = vpack.c.bf16 %v1675, %v1675
    %v1740 = vpack.c.bf16 %v1676, %v1676
    %v1741 = vpack.c.bf16 %v1677, %v1677
    %v1742 = vpack.c.bf16 %v1678, %v1678
    %v1743 = vpack.c.bf16 %v1679, %v1679
    %v1744 = vpack.c.bf16 %v1680, %v1680
    %v1745 = vpack.c.bf16 %v1681, %v1681
    %v1746 = vpack.c.bf16 %v1682, %v1682
    %vm1747 = vmpackc.low %vm1555, %vm1555
    %vm1748 = vmpackc.low %vm1556, %vm1556
    %vm1749 = vmpackc.low %vm1557, %vm1557
    %vm1750 = vmpackc.low %vm1558, %vm1558
    %vm1751 = vmpackc.low %vm1559, %vm1559
    %vm1752 = vmpackc.low %vm1560, %vm1560
    %vm1753 = vmpackc.low %vm1561, %vm1561
    %vm1754 = vmpackc.low %vm1562, %vm1562
    %vm1755 = vmpackc.low %vm1563, %vm1563
    %vm1756 = vmpackc.low %vm1564, %vm1564
    %vm1757 = vmpackc.low %vm1565, %vm1565
    %vm1758 = vmpackc.low %vm1566, %vm1566
    %vm1759 = vmpackc.low %vm1567, %vm1567
    %vm1760 = vmpackc.low %vm1568, %vm1568
    %vm1761 = vmpackc.low %vm1569, %vm1569
    %vm1762 = vmpackc.low %vm1570, %vm1570
    %vm1763 = vmpackc.low %vm1571, %vm1571
    %vm1764 = vmpackc.low %vm1572, %vm1572
    %vm1765 = vmpackc.low %vm1573, %vm1573
    %vm1766 = vmpackc.low %vm1574, %vm1574
    %vm1767 = vmpackc.low %vm1575, %vm1575
    %vm1768 = vmpackc.low %vm1576, %vm1576
    %vm1769 = vmpackc.low %vm1577, %vm1577
    %vm1770 = vmpackc.low %vm1578, %vm1578
    %vm1771 = vmpackc.low %vm1579, %vm1579
    %vm1772 = vmpackc.low %vm1580, %vm1580
    %vm1773 = vmpackc.low %vm1581, %vm1581
    %vm1774 = vmpackc.low %vm1582, %vm1582
    %vm1775 = vmpackc.low %vm1583, %vm1583
    %vm1776 = vmpackc.low %vm1584, %vm1584
    %vm1777 = vmpackc.low %vm1585, %vm1585
    %vm1778 = vmpackc.low %vm1586, %vm1586
    %vm1779 = vmpackc.low %vm1587, %vm1587
    %vm1780 = vmpackc.low %vm1588, %vm1588
    %vm1781 = vmpackc.low %vm1589, %vm1589
    %vm1782 = vmpackc.low %vm1590, %vm1590
    %vm1783 = vmpackc.low %vm1591, %vm1591
    %vm1784 = vmpackc.low %vm1592, %vm1592
    %vm1785 = vmpackc.low %vm1593, %vm1593
    %vm1786 = vmpackc.low %vm1594, %vm1594
    %vm1787 = vmpackc.low %vm1595, %vm1595
    %vm1788 = vmpackc.low %vm1596, %vm1596
    %vm1789 = vmpackc.low %vm1597, %vm1597
    %vm1790 = vmpackc.low %vm1598, %vm1598
    %vm1791 = vmpackc.low %vm1599, %vm1599
    %vm1792 = vmpackc.low %vm1600, %vm1600
    %vm1793 = vmpackc.low %vm1601, %vm1601
    %vm1794 = vmpackc.low %vm1602, %vm1602
    %vm1795 = vmpackc.low %vm1603, %vm1603
    %vm1796 = vmpackc.low %vm1604, %vm1604
    %vm1797 = vmpackc.low %vm1605, %vm1605
    %vm1798 = vmpackc.low %vm1606, %vm1606
    %vm1799 = vmpackc.low %vm1607, %vm1607
    %vm1800 = vmpackc.low %vm1608, %vm1608
    %vm1801 = vmpackc.low %vm1609, %vm1609
    %vm1802 = vmpackc.low %vm1610, %vm1610
    %vm1803 = vmpackc.low %vm1611, %vm1611
    %vm1804 = vmpackc.low %vm1612, %vm1612
    %vm1805 = vmpackc.low %vm1613, %vm1613
    %vm1806 = vmpackc.low %vm1614, %vm1614
    %vm1807 = vmpackc.low %vm1615, %vm1615
    %vm1808 = vmpackc.low %vm1616, %vm1616
    %vm1809 = vmpackc.low %vm1617, %vm1617
    %vm1810 = vmpackc.low %vm1618, %vm1618
    %v1811 = vsel %vm1747, %v1427, %v1683
    %v1812 = vsel %vm1748, %v1428, %v1684
    %v1813 = vsel %vm1749, %v1429, %v1685
    %v1814 = vsel %vm1750, %v1430, %v1686
    %v1815 = vsel %vm1751, %v1431, %v1687
    %v1816 = vsel %vm1752, %v1432, %v1688
    %v1817 = vsel %vm1753, %v1433, %v1689
    %v1818 = vsel %vm1754, %v1434, %v1690
    %v1819 = vsel %vm1755, %v1435, %v1691
    %v1820 = vsel %vm1756, %v1436, %v1692
    %v1821 = vsel %vm1757, %v1437, %v1693
    %v1822 = vsel %vm1758, %v1438, %v1694
    %v1823 = vsel %vm1759, %v1439, %v1695
    %v1824 = vsel %vm1760, %v1440, %v1696
    %v1825 = vsel %vm1761, %v1441, %v1697
    %v1826 = vsel %vm1762, %v1442, %v1698
    %v1827 = vsel %vm1763, %v1443, %v1699
    %v1828 = vsel %vm1764, %v1444, %v1700
    %v1829 = vsel %vm1765, %v1445, %v1701
    %v1830 = vsel %vm1766, %v1446, %v1702
    %v1831 = vsel %vm1767, %v1447, %v1703
    %v1832 = vsel %vm1768, %v1448, %v1704
    %v1833 = vsel %vm1769, %v1449, %v1705
    %v1834 = vsel %vm1770, %v1450, %v1706
    %v1835 = vsel %vm1771, %v1451, %v1707
    %v1836 = vsel %vm1772, %v1452, %v1708
    %v1837 = vsel %vm1773, %v1453, %v1709
    %v1838 = vsel %vm1774, %v1454, %v1710
    %v1839 = vsel %vm1775, %v1455, %v1711
    %v1840 = vsel %vm1776, %v1456, %v1712
    %v1841 = vsel %vm1777, %v1457, %v1713
    %v1842 = vsel %vm1778, %v1458, %v1714
    %v1843 = vsel %vm1779, %v1459, %v1715
    %v1844 = vsel %vm1780, %v1460, %v1716
    %v1845 = vsel %vm1781, %v1461, %v1717
    %v1846 = vsel %vm1782, %v1462, %v1718
    %v1847 = vsel %vm1783, %v1463, %v1719
    %v1848 = vsel %vm1784, %v1464, %v1720
    %v1849 = vsel %vm1785, %v1465, %v1721
    %v1850 = vsel %vm1786, %v1466, %v1722
    %v1851 = vsel %vm1787, %v1467, %v1723
    %v1852 = vsel %vm1788, %v1468, %v1724
    %v1853 = vsel %vm1789, %v1469, %v1725
    %v1854 = vsel %vm1790, %v1470, %v1726
    %v1855 = vsel %vm1791, %v1471, %v1727
    %v1856 = vsel %vm1792, %v1472, %v1728
    %v1857 = vsel %vm1793, %v1473, %v1729
    %v1858 = vsel %vm1794, %v1474, %v1730
    %v1859 = vsel %vm1795, %v1475, %v1731
    %v1860 = vsel %vm1796, %v1476, %v1732
    %v1861 = vsel %vm1797, %v1477, %v1733
    %v1862 = vsel %vm1798, %v1478, %v1734
    %v1863 = vsel %vm1799, %v1479, %v1735
    %v1864 = vsel %vm1800, %v1480, %v1736
    %v1865 = vsel %vm1801, %v1481, %v1737
    %v1866 = vsel %vm1802, %v1482, %v1738
    %v1867 = vsel %vm1803, %v1483, %v1739
    %v1868 = vsel %vm1804, %v1484, %v1740
    %v1869 = vsel %vm1805, %v1485, %v1741
    %v1870 = vsel %vm1806, %v1486, %v1742
    %v1871 = vsel %vm1807, %v1487, %v1743
    %v1872 = vsel %vm1808, %v1488, %v1744
    %v1873 = vsel %vm1809, %v1489, %v1745
    %v1874 = vsel %vm1810, %v1490, %v1746
    %v1875 = vld [vmem:[%s3] sm:$0xff]
    %v1876 = vld [vmem:[%s3 + $0x8] sm:$0xff]
    %v1877 = vld [vmem:[%s3 + $0x10] sm:$0xff]
    %v1878 = vld [vmem:[%s3 + $0x18] sm:$0xff]
    %v1879 = vld [vmem:[%s3 + $0x20] sm:$0xff]
    %v1880 = vld [vmem:[%s3 + $0x28] sm:$0xff]
    %v1881 = vld [vmem:[%s3 + $0x30] sm:$0xff]
    %v1882 = vld [vmem:[%s3 + $0x38] sm:$0xff]
    %v1883 = vld [vmem:[%s3 + $0x40] sm:$0xff]
    %v1884 = vld [vmem:[%s3 + $0x48] sm:$0xff]
    %v1885 = vld [vmem:[%s3 + $0x50] sm:$0xff]
    %v1886 = vld [vmem:[%s3 + $0x58] sm:$0xff]
    %v1887 = vld [vmem:[%s3 + $0x60] sm:$0xff]
    %v1888 = vld [vmem:[%s3 + $0x68] sm:$0xff]
    %v1889 = vld [vmem:[%s3 + $0x70] sm:$0xff]
    %v1890 = vld [vmem:[%s3 + $0x78] sm:$0xff]
    %v1891 = vld [vmem:[%s3 + $0x80] sm:$0xff]
    %v1892 = vld [vmem:[%s3 + $0x88] sm:$0xff]
    %v1893 = vld [vmem:[%s3 + $0x90] sm:$0xff]
    %v1894 = vld [vmem:[%s3 + $0x98] sm:$0xff]
    %v1895 = vld [vmem:[%s3 + $0xa0] sm:$0xff]
    %v1896 = vld [vmem:[%s3 + $0xa8] sm:$0xff]
    %v1897 = vld [vmem:[%s3 + $0xb0] sm:$0xff]
    %v1898 = vld [vmem:[%s3 + $0xb8] sm:$0xff]
    %v1899 = vld [vmem:[%s3 + $0xc0] sm:$0xff]
    %v1900 = vld [vmem:[%s3 + $0xc8] sm:$0xff]
    %v1901 = vld [vmem:[%s3 + $0xd0] sm:$0xff]
    %v1902 = vld [vmem:[%s3 + $0xd8] sm:$0xff]
    %v1903 = vld [vmem:[%s3 + $0xe0] sm:$0xff]
    %v1904 = vld [vmem:[%s3 + $0xe8] sm:$0xff]
    %v1905 = vld [vmem:[%s3 + $0xf0] sm:$0xff]
    %v1906 = vld [vmem:[%s3 + $0xf8] sm:$0xff]
    %v1907 = vld [vmem:[%s3 + $0x100] sm:$0xff]
    %v1908 = vld [vmem:[%s3 + $0x108] sm:$0xff]
    %v1909 = vld [vmem:[%s3 + $0x110] sm:$0xff]
    %v1910 = vld [vmem:[%s3 + $0x118] sm:$0xff]
    %v1911 = vld [vmem:[%s3 + $0x120] sm:$0xff]
    %v1912 = vld [vmem:[%s3 + $0x128] sm:$0xff]
    %v1913 = vld [vmem:[%s3 + $0x130] sm:$0xff]
    %v1914 = vld [vmem:[%s3 + $0x138] sm:$0xff]
    %v1915 = vld [vmem:[%s3 + $0x140] sm:$0xff]
    %v1916 = vld [vmem:[%s3 + $0x148] sm:$0xff]
    %v1917 = vld [vmem:[%s3 + $0x150] sm:$0xff]
    %v1918 = vld [vmem:[%s3 + $0x158] sm:$0xff]
    %v1919 = vld [vmem:[%s3 + $0x160] sm:$0xff]
    %v1920 = vld [vmem:[%s3 + $0x168] sm:$0xff]
    %v1921 = vld [vmem:[%s3 + $0x170] sm:$0xff]
    %v1922 = vld [vmem:[%s3 + $0x178] sm:$0xff]
    %v1923 = vld [vmem:[%s3 + $0x180] sm:$0xff]
    %v1924 = vld [vmem:[%s3 + $0x188] sm:$0xff]
    %v1925 = vld [vmem:[%s3 + $0x190] sm:$0xff]
    %v1926 = vld [vmem:[%s3 + $0x198] sm:$0xff]
    %v1927 = vld [vmem:[%s3 + $0x1a0] sm:$0xff]
    %v1928 = vld [vmem:[%s3 + $0x1a8] sm:$0xff]
    %v1929 = vld [vmem:[%s3 + $0x1b0] sm:$0xff]
    %v1930 = vld [vmem:[%s3 + $0x1b8] sm:$0xff]
    %v1931 = vld [vmem:[%s3 + $0x1c0] sm:$0xff]
    %v1932 = vld [vmem:[%s3 + $0x1c8] sm:$0xff]
    %v1933 = vld [vmem:[%s3 + $0x1d0] sm:$0xff]
    %v1934 = vld [vmem:[%s3 + $0x1d8] sm:$0xff]
    %v1935 = vld [vmem:[%s3 + $0x1e0] sm:$0xff]
    %v1936 = vld [vmem:[%s3 + $0x1e8] sm:$0xff]
    %v1937 = vld [vmem:[%s3 + $0x1f0] sm:$0xff]
    %v1938 = vld [vmem:[%s3 + $0x1f8] sm:$0xff]
    %v2003 = vunpack.c.l.b16 %v1875
    %v2004 = vunpack.c.h.b16 %v1875
    %v2005 = vunpack.c.l.b16 %v1876
    %v2006 = vunpack.c.h.b16 %v1876
    %v2007 = vunpack.c.l.b16 %v1877
    %v2008 = vunpack.c.h.b16 %v1877
    %v2009 = vunpack.c.l.b16 %v1878
    %v2010 = vunpack.c.h.b16 %v1878
    %v2011 = vunpack.c.l.b16 %v1879
    %v2012 = vunpack.c.h.b16 %v1879
    %v2013 = vunpack.c.l.b16 %v1880
    %v2014 = vunpack.c.h.b16 %v1880
    %v2015 = vunpack.c.l.b16 %v1881
    %v2016 = vunpack.c.h.b16 %v1881
    %v2017 = vunpack.c.l.b16 %v1882
    %v2018 = vunpack.c.h.b16 %v1882
    %v2019 = vunpack.c.l.b16 %v1883
    %v2020 = vunpack.c.h.b16 %v1883
    %v2021 = vunpack.c.l.b16 %v1884
    %v2022 = vunpack.c.h.b16 %v1884
    %v2023 = vunpack.c.l.b16 %v1885
    %v2024 = vunpack.c.h.b16 %v1885
    %v2025 = vunpack.c.l.b16 %v1886
    %v2026 = vunpack.c.h.b16 %v1886
    %v2027 = vunpack.c.l.b16 %v1887
    %v2028 = vunpack.c.h.b16 %v1887
    %v2029 = vunpack.c.l.b16 %v1888
    %v2030 = vunpack.c.h.b16 %v1888
    %v2031 = vunpack.c.l.b16 %v1889
    %v2032 = vunpack.c.h.b16 %v1889
    %v2033 = vunpack.c.l.b16 %v1890
    %v2034 = vunpack.c.h.b16 %v1890
    %v2035 = vunpack.c.l.b16 %v1891
    %v2036 = vunpack.c.h.b16 %v1891
    %v2037 = vunpack.c.l.b16 %v1892
    %v2038 = vunpack.c.h.b16 %v1892
    %v2039 = vunpack.c.l.b16 %v1893
    %v2040 = vunpack.c.h.b16 %v1893
    %v2041 = vunpack.c.l.b16 %v1894
    %v2042 = vunpack.c.h.b16 %v1894
    %v2043 = vunpack.c.l.b16 %v1895
    %v2044 = vunpack.c.h.b16 %v1895
    %v2045 = vunpack.c.l.b16 %v1896
    %v2046 = vunpack.c.h.b16 %v1896
    %v2047 = vunpack.c.l.b16 %v1897
    %v2048 = vunpack.c.h.b16 %v1897
    %v2049 = vunpack.c.l.b16 %v1898
    %v2050 = vunpack.c.h.b16 %v1898
    %v2051 = vunpack.c.l.b16 %v1899
    %v2052 = vunpack.c.h.b16 %v1899
    %v2053 = vunpack.c.l.b16 %v1900
    %v2054 = vunpack.c.h.b16 %v1900
    %v2055 = vunpack.c.l.b16 %v1901
    %v2056 = vunpack.c.h.b16 %v1901
    %v2057 = vunpack.c.l.b16 %v1902
    %v2058 = vunpack.c.h.b16 %v1902
    %v2059 = vunpack.c.l.b16 %v1903
    %v2060 = vunpack.c.h.b16 %v1903
    %v2061 = vunpack.c.l.b16 %v1904
    %v2062 = vunpack.c.h.b16 %v1904
    %v2063 = vunpack.c.l.b16 %v1905
    %v2064 = vunpack.c.h.b16 %v1905
    %v2065 = vunpack.c.l.b16 %v1906
    %v2066 = vunpack.c.h.b16 %v1906
    %v2067 = vunpack.c.l.b16 %v1907
    %v2068 = vunpack.c.h.b16 %v1907
    %v2069 = vunpack.c.l.b16 %v1908
    %v2070 = vunpack.c.h.b16 %v1908
    %v2071 = vunpack.c.l.b16 %v1909
    %v2072 = vunpack.c.h.b16 %v1909
    %v2073 = vunpack.c.l.b16 %v1910
    %v2074 = vunpack.c.h.b16 %v1910
    %v2075 = vunpack.c.l.b16 %v1911
    %v2076 = vunpack.c.h.b16 %v1911
    %v2077 = vunpack.c.l.b16 %v1912
    %v2078 = vunpack.c.h.b16 %v1912
    %v2079 = vunpack.c.l.b16 %v1913
    %v2080 = vunpack.c.h.b16 %v1913
    %v2081 = vunpack.c.l.b16 %v1914
    %v2082 = vunpack.c.h.b16 %v1914
    %v2083 = vunpack.c.l.b16 %v1915
    %v2084 = vunpack.c.h.b16 %v1915
    %v2085 = vunpack.c.l.b16 %v1916
    %v2086 = vunpack.c.h.b16 %v1916
    %v2087 = vunpack.c.l.b16 %v1917
    %v2088 = vunpack.c.h.b16 %v1917
    %v2089 = vunpack.c.l.b16 %v1918
    %v2090 = vunpack.c.h.b16 %v1918
    %v2091 = vunpack.c.l.b16 %v1919
    %v2092 = vunpack.c.h.b16 %v1919
    %v2093 = vunpack.c.l.b16 %v1920
    %v2094 = vunpack.c.h.b16 %v1920
    %v2095 = vunpack.c.l.b16 %v1921
    %v2096 = vunpack.c.h.b16 %v1921
    %v2097 = vunpack.c.l.b16 %v1922
    %v2098 = vunpack.c.h.b16 %v1922
    %v2099 = vunpack.c.l.b16 %v1923
    %v2100 = vunpack.c.h.b16 %v1923
    %v2101 = vunpack.c.l.b16 %v1924
    %v2102 = vunpack.c.h.b16 %v1924
    %v2103 = vunpack.c.l.b16 %v1925
    %v2104 = vunpack.c.h.b16 %v1925
    %v2105 = vunpack.c.l.b16 %v1926
    %v2106 = vunpack.c.h.b16 %v1926
    %v2107 = vunpack.c.l.b16 %v1927
    %v2108 = vunpack.c.h.b16 %v1927
    %v2109 = vunpack.c.l.b16 %v1928
    %v2110 = vunpack.c.h.b16 %v1928
    %v2111 = vunpack.c.l.b16 %v1929
    %v2112 = vunpack.c.h.b16 %v1929
    %v2113 = vunpack.c.l.b16 %v1930
    %v2114 = vunpack.c.h.b16 %v1930
    %v2115 = vunpack.c.l.b16 %v1931
    %v2116 = vunpack.c.h.b16 %v1931
    %v2117 = vunpack.c.l.b16 %v1932
    %v2118 = vunpack.c.h.b16 %v1932
    %v2119 = vunpack.c.l.b16 %v1933
    %v2120 = vunpack.c.h.b16 %v1933
    %v2121 = vunpack.c.l.b16 %v1934
    %v2122 = vunpack.c.h.b16 %v1934
    %v2123 = vunpack.c.l.b16 %v1935
    %v2124 = vunpack.c.h.b16 %v1935
    %v2125 = vunpack.c.l.b16 %v1936
    %v2126 = vunpack.c.h.b16 %v1936
    %v2127 = vunpack.c.l.b16 %v1937
    %v2128 = vunpack.c.h.b16 %v1937
    %v2129 = vunpack.c.l.b16 %v1938
    %v2130 = vunpack.c.h.b16 %v1938
    %v2131 = vpack.c.b16 %v2007, %v2003
    %v2132 = vpack.c.b16 %v2008, %v2004
    %v2133 = vpack.c.b16 %v2009, %v2005
    %v2134 = vpack.c.b16 %v2010, %v2006
    %v2135 = vpack.c.b16 %v2015, %v2011
    %v2136 = vpack.c.b16 %v2016, %v2012
    %v2137 = vpack.c.b16 %v2017, %v2013
    %v2138 = vpack.c.b16 %v2018, %v2014
    %v2139 = vpack.c.b16 %v2023, %v2019
    %v2140 = vpack.c.b16 %v2024, %v2020
    %v2141 = vpack.c.b16 %v2025, %v2021
    %v2142 = vpack.c.b16 %v2026, %v2022
    %v2143 = vpack.c.b16 %v2031, %v2027
    %v2144 = vpack.c.b16 %v2032, %v2028
    %v2145 = vpack.c.b16 %v2033, %v2029
    %v2146 = vpack.c.b16 %v2034, %v2030
    %v2147 = vpack.c.b16 %v2039, %v2035
    %v2148 = vpack.c.b16 %v2040, %v2036
    %v2149 = vpack.c.b16 %v2041, %v2037
    %v2150 = vpack.c.b16 %v2042, %v2038
    %v2151 = vpack.c.b16 %v2047, %v2043
    %v2152 = vpack.c.b16 %v2048, %v2044
    %v2153 = vpack.c.b16 %v2049, %v2045
    %v2154 = vpack.c.b16 %v2050, %v2046
    %v2155 = vpack.c.b16 %v2055, %v2051
    %v2156 = vpack.c.b16 %v2056, %v2052
    %v2157 = vpack.c.b16 %v2057, %v2053
    %v2158 = vpack.c.b16 %v2058, %v2054
    %v2159 = vpack.c.b16 %v2063, %v2059
    %v2160 = vpack.c.b16 %v2064, %v2060
    %v2161 = vpack.c.b16 %v2065, %v2061
    %v2162 = vpack.c.b16 %v2066, %v2062
    %v2163 = vpack.c.b16 %v2071, %v2067
    %v2164 = vpack.c.b16 %v2072, %v2068
    %v2165 = vpack.c.b16 %v2073, %v2069
    %v2166 = vpack.c.b16 %v2074, %v2070
    %v2167 = vpack.c.b16 %v2079, %v2075
    %v2168 = vpack.c.b16 %v2080, %v2076
    %v2169 = vpack.c.b16 %v2081, %v2077
    %v2170 = vpack.c.b16 %v2082, %v2078
    %v2171 = vpack.c.b16 %v2087, %v2083
    %v2172 = vpack.c.b16 %v2088, %v2084
    %v2173 = vpack.c.b16 %v2089, %v2085
    %v2174 = vpack.c.b16 %v2090, %v2086
    %v2175 = vpack.c.b16 %v2095, %v2091
    %v2176 = vpack.c.b16 %v2096, %v2092
    %v2177 = vpack.c.b16 %v2097, %v2093
    %v2178 = vpack.c.b16 %v2098, %v2094
    %v2179 = vpack.c.b16 %v2103, %v2099
    %v2180 = vpack.c.b16 %v2104, %v2100
    %v2181 = vpack.c.b16 %v2105, %v2101
    %v2182 = vpack.c.b16 %v2106, %v2102
    %v2183 = vpack.c.b16 %v2111, %v2107
    %v2184 = vpack.c.b16 %v2112, %v2108
    %v2185 = vpack.c.b16 %v2113, %v2109
    %v2186 = vpack.c.b16 %v2114, %v2110
    %v2187 = vpack.c.b16 %v2119, %v2115
    %v2188 = vpack.c.b16 %v2120, %v2116
    %v2189 = vpack.c.b16 %v2121, %v2117
    %v2190 = vpack.c.b16 %v2122, %v2118
    %v2191 = vpack.c.b16 %v2127, %v2123
    %v2192 = vpack.c.b16 %v2128, %v2124
    %v2193 = vpack.c.b16 %v2129, %v2125
    %v2194 = vpack.c.b16 %v2130, %v2126
    %v2323 = vunpack.c.l.b16 %v1811
    %v2324 = vunpack.c.l.b16 %v1812
    %v2325 = vunpack.c.l.b16 %v1813
    %v2326 = vunpack.c.l.b16 %v1814
    %v2327 = vunpack.c.l.b16 %v1815
    %v2328 = vunpack.c.l.b16 %v1816
    %v2329 = vunpack.c.l.b16 %v1817
    %v2330 = vunpack.c.l.b16 %v1818
    %v2331 = vunpack.c.l.b16 %v1819
    %v2332 = vunpack.c.l.b16 %v1820
    %v2333 = vunpack.c.l.b16 %v1821
    %v2334 = vunpack.c.l.b16 %v1822
    %v2335 = vunpack.c.l.b16 %v1823
    %v2336 = vunpack.c.l.b16 %v1824
    %v2337 = vunpack.c.l.b16 %v1825
    %v2338 = vunpack.c.l.b16 %v1826
    %v2339 = vunpack.c.l.b16 %v1827
    %v2340 = vunpack.c.l.b16 %v1828
    %v2341 = vunpack.c.l.b16 %v1829
    %v2342 = vunpack.c.l.b16 %v1830
    %v2343 = vunpack.c.l.b16 %v1831
    %v2344 = vunpack.c.l.b16 %v1832
    %v2345 = vunpack.c.l.b16 %v1833
    %v2346 = vunpack.c.l.b16 %v1834
    %v2347 = vunpack.c.l.b16 %v1835
    %v2348 = vunpack.c.l.b16 %v1836
    %v2349 = vunpack.c.l.b16 %v1837
    %v2350 = vunpack.c.l.b16 %v1838
    %v2351 = vunpack.c.l.b16 %v1839
    %v2352 = vunpack.c.l.b16 %v1840
    %v2353 = vunpack.c.l.b16 %v1841
    %v2354 = vunpack.c.l.b16 %v1842
    %v2355 = vunpack.c.l.b16 %v1843
    %v2356 = vunpack.c.l.b16 %v1844
    %v2357 = vunpack.c.l.b16 %v1845
    %v2358 = vunpack.c.l.b16 %v1846
    %v2359 = vunpack.c.l.b16 %v1847
    %v2360 = vunpack.c.l.b16 %v1848
    %v2361 = vunpack.c.l.b16 %v1849
    %v2362 = vunpack.c.l.b16 %v1850
    %v2363 = vunpack.c.l.b16 %v1851
    %v2364 = vunpack.c.l.b16 %v1852
    %v2365 = vunpack.c.l.b16 %v1853
    %v2366 = vunpack.c.l.b16 %v1854
    %v2367 = vunpack.c.l.b16 %v1855
    %v2368 = vunpack.c.l.b16 %v1856
    %v2369 = vunpack.c.l.b16 %v1857
    %v2370 = vunpack.c.l.b16 %v1858
    %v2371 = vunpack.c.l.b16 %v1859
    %v2372 = vunpack.c.l.b16 %v1860
    %v2373 = vunpack.c.l.b16 %v1861
    %v2374 = vunpack.c.l.b16 %v1862
    %v2375 = vunpack.c.l.b16 %v1863
    %v2376 = vunpack.c.l.b16 %v1864
    %v2377 = vunpack.c.l.b16 %v1865
    %v2378 = vunpack.c.l.b16 %v1866
    %v2379 = vunpack.c.l.b16 %v1867
    %v2380 = vunpack.c.l.b16 %v1868
    %v2381 = vunpack.c.l.b16 %v1869
    %v2382 = vunpack.c.l.b16 %v1870
    %v2383 = vunpack.c.l.b16 %v1871
    %v2384 = vunpack.c.l.b16 %v1872
    %v2385 = vunpack.c.l.b16 %v1873
    %v2386 = vunpack.c.l.b16 %v1874
    %v2387 = vpack.c.b16 %v2324, %v2323
    %v2388 = vpack.c.b16 %v2326, %v2325
    %v2389 = vpack.c.b16 %v2328, %v2327
    %v2390 = vpack.c.b16 %v2330, %v2329
    %v2391 = vpack.c.b16 %v2332, %v2331
    %v2392 = vpack.c.b16 %v2334, %v2333
    %v2393 = vpack.c.b16 %v2336, %v2335
    %v2394 = vpack.c.b16 %v2338, %v2337
    %v2395 = vpack.c.b16 %v2340, %v2339
    %v2396 = vpack.c.b16 %v2342, %v2341
    %v2397 = vpack.c.b16 %v2344, %v2343
    %v2398 = vpack.c.b16 %v2346, %v2345
    %v2399 = vpack.c.b16 %v2348, %v2347
    %v2400 = vpack.c.b16 %v2350, %v2349
    %v2401 = vpack.c.b16 %v2352, %v2351
    %v2402 = vpack.c.b16 %v2354, %v2353
    %v2403 = vpack.c.b16 %v2356, %v2355
    %v2404 = vpack.c.b16 %v2358, %v2357
    %v2405 = vpack.c.b16 %v2360, %v2359
    %v2406 = vpack.c.b16 %v2362, %v2361
    %v2407 = vpack.c.b16 %v2364, %v2363
    %v2408 = vpack.c.b16 %v2366, %v2365
    %v2409 = vpack.c.b16 %v2368, %v2367
    %v2410 = vpack.c.b16 %v2370, %v2369
    %v2411 = vpack.c.b16 %v2372, %v2371
    %v2412 = vpack.c.b16 %v2374, %v2373
    %v2413 = vpack.c.b16 %v2376, %v2375
    %v2414 = vpack.c.b16 %v2378, %v2377
    %v2415 = vpack.c.b16 %v2380, %v2379
    %v2416 = vpack.c.b16 %v2382, %v2381
    %v2417 = vpack.c.b16 %v2384, %v2383
    %v2418 = vpack.c.b16 %v2386, %v2385
    %2451 = vmatpush.bf16.msra.mxu0 %v2394
    %2452 = vmatpush.bf16.msra.mxu0 %v2393
    %2453 = vmatpush.bf16.msra.mxu0 %v2392
    %2454 = vmatpush.bf16.msra.mxu0 %v2391
    %2455 = vmatpush.bf16.msra.mxu0 %v2390
    %2456 = vmatpush.bf16.msra.mxu0 %v2389
    %2457 = vmatpush.bf16.msra.mxu0 %v2388
    %2458 = vmatpush.bf16.msra.mxu0 %v2387
    %2459 = vmatmul.bf16.gmra.mxu0 %v2131
    %v2460 = vpop.f32.mrf.mxu0
    %v2461 = vadd.f32 0.0, %v2460
    %v2462 = vpop.f32.mrf.mxu0
    %v2463 = vadd.f32 0.0, %v2462
    %2464 = vmatmul.bf16.gmra.mxu0 %v2135
    %v2465 = vpop.f32.mrf.mxu0
    %v2466 = vadd.f32 0.0, %v2465
    %v2467 = vpop.f32.mrf.mxu0
    %v2468 = vadd.f32 0.0, %v2467
    %2469 = vmatmul.bf16.gmra.mxu0 %v2139
    %v2470 = vpop.f32.mrf.mxu0
    %v2471 = vadd.f32 0.0, %v2470
    %v2472 = vpop.f32.mrf.mxu0
    %v2473 = vadd.f32 0.0, %v2472
    %2474 = vmatmul.bf16.gmra.mxu0 %v2143
    %v2475 = vpop.f32.mrf.mxu0
    %v2476 = vadd.f32 0.0, %v2475
    %v2477 = vpop.f32.mrf.mxu0
    %v2478 = vadd.f32 0.0, %v2477
    %2479 = vmatmul.bf16.gmra.mxu0 %v2147
    %v2480 = vpop.f32.mrf.mxu0
    %v2481 = vadd.f32 0.0, %v2480
    %v2482 = vpop.f32.mrf.mxu0
    %v2483 = vadd.f32 0.0, %v2482
    %2484 = vmatmul.bf16.gmra.mxu0 %v2151
    %v2485 = vpop.f32.mrf.mxu0
    %v2486 = vadd.f32 0.0, %v2485
    %v2487 = vpop.f32.mrf.mxu0
    %v2488 = vadd.f32 0.0, %v2487
    %2489 = vmatmul.bf16.gmra.mxu0 %v2155
    %v2490 = vpop.f32.mrf.mxu0
    %v2491 = vadd.f32 0.0, %v2490
    %v2492 = vpop.f32.mrf.mxu0
    %v2493 = vadd.f32 0.0, %v2492
    %2494 = vmatmul.bf16.gmra.mxu0 %v2159
    %v2495 = vpop.f32.mrf.mxu0
    %v2496 = vadd.f32 0.0, %v2495
    %v2497 = vpop.f32.mrf.mxu0
    %v2498 = vadd.f32 0.0, %v2497
    %2499 = vmatmul.bf16.gmra.mxu0 %v2163
    %v2500 = vpop.f32.mrf.mxu0
    %v2501 = vadd.f32 0.0, %v2500
    %v2502 = vpop.f32.mrf.mxu0
    %v2503 = vadd.f32 0.0, %v2502
    %2504 = vmatmul.bf16.gmra.mxu0 %v2167
    %v2505 = vpop.f32.mrf.mxu0
    %v2506 = vadd.f32 0.0, %v2505
    %v2507 = vpop.f32.mrf.mxu0
    %v2508 = vadd.f32 0.0, %v2507
    %2509 = vmatmul.bf16.gmra.mxu0 %v2171
    %v2510 = vpop.f32.mrf.mxu0
    %v2511 = vadd.f32 0.0, %v2510
    %v2512 = vpop.f32.mrf.mxu0
    %v2513 = vadd.f32 0.0, %v2512
    %2514 = vmatmul.bf16.gmra.mxu0 %v2175
    %v2515 = vpop.f32.mrf.mxu0
    %v2516 = vadd.f32 0.0, %v2515
    %v2517 = vpop.f32.mrf.mxu0
    %v2518 = vadd.f32 0.0, %v2517
    %2519 = vmatmul.bf16.gmra.mxu0 %v2179
    %v2520 = vpop.f32.mrf.mxu0
    %v2521 = vadd.f32 0.0, %v2520
    %v2522 = vpop.f32.mrf.mxu0
    %v2523 = vadd.f32 0.0, %v2522
    %2524 = vmatmul.bf16.gmra.mxu0 %v2183
    %v2525 = vpop.f32.mrf.mxu0
    %v2526 = vadd.f32 0.0, %v2525
    %v2527 = vpop.f32.mrf.mxu0
    %v2528 = vadd.f32 0.0, %v2527
    %2529 = vmatmul.bf16.gmra.mxu0 %v2187
    %v2530 = vpop.f32.mrf.mxu0
    %v2531 = vadd.f32 0.0, %v2530
    %v2532 = vpop.f32.mrf.mxu0
    %v2533 = vadd.f32 0.0, %v2532
    %2534 = vmatmul.bf16.gmra.mxu0 %v2191
    %v2535 = vpop.f32.mrf.mxu0
    %v2536 = vadd.f32 0.0, %v2535
    %v2537 = vpop.f32.mrf.mxu0
    %v2538 = vadd.f32 0.0, %v2537
    %2539 = vdwg.mxu0
    %2540 = vmatpush.bf16.msra.mxu0 %v2402
    %2541 = vmatpush.bf16.msra.mxu0 %v2401
    %2542 = vmatpush.bf16.msra.mxu0 %v2400
    %2543 = vmatpush.bf16.msra.mxu0 %v2399
    %2544 = vmatpush.bf16.msra.mxu0 %v2398
    %2545 = vmatpush.bf16.msra.mxu0 %v2397
    %2546 = vmatpush.bf16.msra.mxu0 %v2396
    %2547 = vmatpush.bf16.msra.mxu0 %v2395
    %2548 = vmatmul.bf16.gmra.mxu0 %v2132
    %v2549 = vpop.f32.mrf.mxu0
    %v2550 = vadd.f32 %v2461, %v2549
    %v2551 = vpop.f32.mrf.mxu0
    %v2552 = vadd.f32 %v2463, %v2551
    %2553 = vmatmul.bf16.gmra.mxu0 %v2136
    %v2554 = vpop.f32.mrf.mxu0
    %v2555 = vadd.f32 %v2466, %v2554
    %v2556 = vpop.f32.mrf.mxu0
    %v2557 = vadd.f32 %v2468, %v2556
    %2558 = vmatmul.bf16.gmra.mxu0 %v2140
    %v2559 = vpop.f32.mrf.mxu0
    %v2560 = vadd.f32 %v2471, %v2559
    %v2561 = vpop.f32.mrf.mxu0
    %v2562 = vadd.f32 %v2473, %v2561
    %2563 = vmatmul.bf16.gmra.mxu0 %v2144
    %v2564 = vpop.f32.mrf.mxu0
    %v2565 = vadd.f32 %v2476, %v2564
    %v2566 = vpop.f32.mrf.mxu0
    %v2567 = vadd.f32 %v2478, %v2566
    %2568 = vmatmul.bf16.gmra.mxu0 %v2148
    %v2569 = vpop.f32.mrf.mxu0
    %v2570 = vadd.f32 %v2481, %v2569
    %v2571 = vpop.f32.mrf.mxu0
    %v2572 = vadd.f32 %v2483, %v2571
    %2573 = vmatmul.bf16.gmra.mxu0 %v2152
    %v2574 = vpop.f32.mrf.mxu0
    %v2575 = vadd.f32 %v2486, %v2574
    %v2576 = vpop.f32.mrf.mxu0
    %v2577 = vadd.f32 %v2488, %v2576
    %2578 = vmatmul.bf16.gmra.mxu0 %v2156
    %v2579 = vpop.f32.mrf.mxu0
    %v2580 = vadd.f32 %v2491, %v2579
    %v2581 = vpop.f32.mrf.mxu0
    %v2582 = vadd.f32 %v2493, %v2581
    %2583 = vmatmul.bf16.gmra.mxu0 %v2160
    %v2584 = vpop.f32.mrf.mxu0
    %v2585 = vadd.f32 %v2496, %v2584
    %v2586 = vpop.f32.mrf.mxu0
    %v2587 = vadd.f32 %v2498, %v2586
    %2588 = vmatmul.bf16.gmra.mxu0 %v2164
    %v2589 = vpop.f32.mrf.mxu0
    %v2590 = vadd.f32 %v2501, %v2589
    %v2591 = vpop.f32.mrf.mxu0
    %v2592 = vadd.f32 %v2503, %v2591
    %2593 = vmatmul.bf16.gmra.mxu0 %v2168
    %v2594 = vpop.f32.mrf.mxu0
    %v2595 = vadd.f32 %v2506, %v2594
    %v2596 = vpop.f32.mrf.mxu0
    %v2597 = vadd.f32 %v2508, %v2596
    %2598 = vmatmul.bf16.gmra.mxu0 %v2172
    %v2599 = vpop.f32.mrf.mxu0
    %v2600 = vadd.f32 %v2511, %v2599
    %v2601 = vpop.f32.mrf.mxu0
    %v2602 = vadd.f32 %v2513, %v2601
    %2603 = vmatmul.bf16.gmra.mxu0 %v2176
    %v2604 = vpop.f32.mrf.mxu0
    %v2605 = vadd.f32 %v2516, %v2604
    %v2606 = vpop.f32.mrf.mxu0
    %v2607 = vadd.f32 %v2518, %v2606
    %2608 = vmatmul.bf16.gmra.mxu0 %v2180
    %v2609 = vpop.f32.mrf.mxu0
    %v2610 = vadd.f32 %v2521, %v2609
    %v2611 = vpop.f32.mrf.mxu0
    %v2612 = vadd.f32 %v2523, %v2611
    %2613 = vmatmul.bf16.gmra.mxu0 %v2184
    %v2614 = vpop.f32.mrf.mxu0
    %v2615 = vadd.f32 %v2526, %v2614
    %v2616 = vpop.f32.mrf.mxu0
    %v2617 = vadd.f32 %v2528, %v2616
    %2618 = vmatmul.bf16.gmra.mxu0 %v2188
    %v2619 = vpop.f32.mrf.mxu0
    %v2620 = vadd.f32 %v2531, %v2619
    %v2621 = vpop.f32.mrf.mxu0
    %v2622 = vadd.f32 %v2533, %v2621
    %2623 = vmatmul.bf16.gmra.mxu0 %v2192
    %v2624 = vpop.f32.mrf.mxu0
    %v2625 = vadd.f32 %v2536, %v2624
    %v2626 = vpop.f32.mrf.mxu0
    %v2627 = vadd.f32 %v2538, %v2626
    %2628 = vdwg.mxu0
    %2629 = vmatpush.bf16.msra.mxu0 %v2410
    %2630 = vmatpush.bf16.msra.mxu0 %v2409
    %2631 = vmatpush.bf16.msra.mxu0 %v2408
    %2632 = vmatpush.bf16.msra.mxu0 %v2407
    %2633 = vmatpush.bf16.msra.mxu0 %v2406
    %2634 = vmatpush.bf16.msra.mxu0 %v2405
    %2635 = vmatpush.bf16.msra.mxu0 %v2404
    %2636 = vmatpush.bf16.msra.mxu0 %v2403
    %2637 = vmatmul.bf16.gmra.mxu0 %v2133
    %v2638 = vpop.f32.mrf.mxu0
    %v2639 = vadd.f32 %v2550, %v2638
    %v2640 = vpop.f32.mrf.mxu0
    %v2641 = vadd.f32 %v2552, %v2640
    %2642 = vmatmul.bf16.gmra.mxu0 %v2137
    %v2643 = vpop.f32.mrf.mxu0
    %v2644 = vadd.f32 %v2555, %v2643
    %v2645 = vpop.f32.mrf.mxu0
    %v2646 = vadd.f32 %v2557, %v2645
    %2647 = vmatmul.bf16.gmra.mxu0 %v2141
    %v2648 = vpop.f32.mrf.mxu0
    %v2649 = vadd.f32 %v2560, %v2648
    %v2650 = vpop.f32.mrf.mxu0
    %v2651 = vadd.f32 %v2562, %v2650
    %2652 = vmatmul.bf16.gmra.mxu0 %v2145
    %v2653 = vpop.f32.mrf.mxu0
    %v2654 = vadd.f32 %v2565, %v2653
    %v2655 = vpop.f32.mrf.mxu0
    %v2656 = vadd.f32 %v2567, %v2655
    %2657 = vmatmul.bf16.gmra.mxu0 %v2149
    %v2658 = vpop.f32.mrf.mxu0
    %v2659 = vadd.f32 %v2570, %v2658
    %v2660 = vpop.f32.mrf.mxu0
    %v2661 = vadd.f32 %v2572, %v2660
    %2662 = vmatmul.bf16.gmra.mxu0 %v2153
    %v2663 = vpop.f32.mrf.mxu0
    %v2664 = vadd.f32 %v2575, %v2663
    %v2665 = vpop.f32.mrf.mxu0
    %v2666 = vadd.f32 %v2577, %v2665
    %2667 = vmatmul.bf16.gmra.mxu0 %v2157
    %v2668 = vpop.f32.mrf.mxu0
    %v2669 = vadd.f32 %v2580, %v2668
    %v2670 = vpop.f32.mrf.mxu0
    %v2671 = vadd.f32 %v2582, %v2670
    %2672 = vmatmul.bf16.gmra.mxu0 %v2161
    %v2673 = vpop.f32.mrf.mxu0
    %v2674 = vadd.f32 %v2585, %v2673
    %v2675 = vpop.f32.mrf.mxu0
    %v2676 = vadd.f32 %v2587, %v2675
    %2677 = vmatmul.bf16.gmra.mxu0 %v2165
    %v2678 = vpop.f32.mrf.mxu0
    %v2679 = vadd.f32 %v2590, %v2678
    %v2680 = vpop.f32.mrf.mxu0
    %v2681 = vadd.f32 %v2592, %v2680
    %2682 = vmatmul.bf16.gmra.mxu0 %v2169
    %v2683 = vpop.f32.mrf.mxu0
    %v2684 = vadd.f32 %v2595, %v2683
    %v2685 = vpop.f32.mrf.mxu0
    %v2686 = vadd.f32 %v2597, %v2685
    %2687 = vmatmul.bf16.gmra.mxu0 %v2173
    %v2688 = vpop.f32.mrf.mxu0
    %v2689 = vadd.f32 %v2600, %v2688
    %v2690 = vpop.f32.mrf.mxu0
    %v2691 = vadd.f32 %v2602, %v2690
    %2692 = vmatmul.bf16.gmra.mxu0 %v2177
    %v2693 = vpop.f32.mrf.mxu0
    %v2694 = vadd.f32 %v2605, %v2693
    %v2695 = vpop.f32.mrf.mxu0
    %v2696 = vadd.f32 %v2607, %v2695
    %2697 = vmatmul.bf16.gmra.mxu0 %v2181
    %v2698 = vpop.f32.mrf.mxu0
    %v2699 = vadd.f32 %v2610, %v2698
    %v2700 = vpop.f32.mrf.mxu0
    %v2701 = vadd.f32 %v2612, %v2700
    %2702 = vmatmul.bf16.gmra.mxu0 %v2185
    %v2703 = vpop.f32.mrf.mxu0
    %v2704 = vadd.f32 %v2615, %v2703
    %v2705 = vpop.f32.mrf.mxu0
    %v2706 = vadd.f32 %v2617, %v2705
    %2707 = vmatmul.bf16.gmra.mxu0 %v2189
    %v2708 = vpop.f32.mrf.mxu0
    %v2709 = vadd.f32 %v2620, %v2708
    %v2710 = vpop.f32.mrf.mxu0
    %v2711 = vadd.f32 %v2622, %v2710
    %2712 = vmatmul.bf16.gmra.mxu0 %v2193
    %v2713 = vpop.f32.mrf.mxu0
    %v2714 = vadd.f32 %v2625, %v2713
    %v2715 = vpop.f32.mrf.mxu0
    %v2716 = vadd.f32 %v2627, %v2715
    %2717 = vdwg.mxu0
    %2718 = vmatpush.bf16.msra.mxu0 %v2418
    %2719 = vmatpush.bf16.msra.mxu0 %v2417
    %2720 = vmatpush.bf16.msra.mxu0 %v2416
    %2721 = vmatpush.bf16.msra.mxu0 %v2415
    %2722 = vmatpush.bf16.msra.mxu0 %v2414
    %2723 = vmatpush.bf16.msra.mxu0 %v2413
    %2724 = vmatpush.bf16.msra.mxu0 %v2412
    %2725 = vmatpush.bf16.msra.mxu0 %v2411
    %2726 = vmatmul.bf16.gmra.mxu0 %v2134
    %v2727 = vpop.f32.mrf.mxu0
    %v2728 = vadd.f32 %v2639, %v2727
    %v2729 = vpop.f32.mrf.mxu0
    %v2730 = vadd.f32 %v2641, %v2729
    %2731 = vmatmul.bf16.gmra.mxu0 %v2138
    %v2732 = vpop.f32.mrf.mxu0
    %v2733 = vadd.f32 %v2644, %v2732
    %v2734 = vpop.f32.mrf.mxu0
    %v2735 = vadd.f32 %v2646, %v2734
    %2736 = vmatmul.bf16.gmra.mxu0 %v2142
    %v2737 = vpop.f32.mrf.mxu0
    %v2738 = vadd.f32 %v2649, %v2737
    %v2739 = vpop.f32.mrf.mxu0
    %v2740 = vadd.f32 %v2651, %v2739
    %2741 = vmatmul.bf16.gmra.mxu0 %v2146
    %v2742 = vpop.f32.mrf.mxu0
    %v2743 = vadd.f32 %v2654, %v2742
    %v2744 = vpop.f32.mrf.mxu0
    %v2745 = vadd.f32 %v2656, %v2744
    %2746 = vmatmul.bf16.gmra.mxu0 %v2150
    %v2747 = vpop.f32.mrf.mxu0
    %v2748 = vadd.f32 %v2659, %v2747
    %v2749 = vpop.f32.mrf.mxu0
    %v2750 = vadd.f32 %v2661, %v2749
    %2751 = vmatmul.bf16.gmra.mxu0 %v2154
    %v2752 = vpop.f32.mrf.mxu0
    %v2753 = vadd.f32 %v2664, %v2752
    %v2754 = vpop.f32.mrf.mxu0
    %v2755 = vadd.f32 %v2666, %v2754
    %2756 = vmatmul.bf16.gmra.mxu0 %v2158
    %v2757 = vpop.f32.mrf.mxu0
    %v2758 = vadd.f32 %v2669, %v2757
    %v2759 = vpop.f32.mrf.mxu0
    %v2760 = vadd.f32 %v2671, %v2759
    %2761 = vmatmul.bf16.gmra.mxu0 %v2162
    %v2762 = vpop.f32.mrf.mxu0
    %v2763 = vadd.f32 %v2674, %v2762
    %v2764 = vpop.f32.mrf.mxu0
    %v2765 = vadd.f32 %v2676, %v2764
    %2766 = vmatmul.bf16.gmra.mxu0 %v2166
    %v2767 = vpop.f32.mrf.mxu0
    %v2768 = vadd.f32 %v2679, %v2767
    %v2769 = vpop.f32.mrf.mxu0
    %v2770 = vadd.f32 %v2681, %v2769
    %2771 = vmatmul.bf16.gmra.mxu0 %v2170
    %v2772 = vpop.f32.mrf.mxu0
    %v2773 = vadd.f32 %v2684, %v2772
    %v2774 = vpop.f32.mrf.mxu0
    %v2775 = vadd.f32 %v2686, %v2774
    %2776 = vmatmul.bf16.gmra.mxu0 %v2174
    %v2777 = vpop.f32.mrf.mxu0
    %v2778 = vadd.f32 %v2689, %v2777
    %v2779 = vpop.f32.mrf.mxu0
    %v2780 = vadd.f32 %v2691, %v2779
    %2781 = vmatmul.bf16.gmra.mxu0 %v2178
    %v2782 = vpop.f32.mrf.mxu0
    %v2783 = vadd.f32 %v2694, %v2782
    %v2784 = vpop.f32.mrf.mxu0
    %v2785 = vadd.f32 %v2696, %v2784
    %2786 = vmatmul.bf16.gmra.mxu0 %v2182
    %v2787 = vpop.f32.mrf.mxu0
    %v2788 = vadd.f32 %v2699, %v2787
    %v2789 = vpop.f32.mrf.mxu0
    %v2790 = vadd.f32 %v2701, %v2789
    %2791 = vmatmul.bf16.gmra.mxu0 %v2186
    %v2792 = vpop.f32.mrf.mxu0
    %v2793 = vadd.f32 %v2704, %v2792
    %v2794 = vpop.f32.mrf.mxu0
    %v2795 = vadd.f32 %v2706, %v2794
    %2796 = vmatmul.bf16.gmra.mxu0 %v2190
    %v2797 = vpop.f32.mrf.mxu0
    %v2798 = vadd.f32 %v2709, %v2797
    %v2799 = vpop.f32.mrf.mxu0
    %v2800 = vadd.f32 %v2711, %v2799
    %2801 = vmatmul.bf16.gmra.mxu0 %v2194
    %v2802 = vpop.f32.mrf.mxu0
    %v2803 = vadd.f32 %v2714, %v2802
    %v2804 = vpop.f32.mrf.mxu0
    %v2805 = vadd.f32 %v2716, %v2804
    %2806 = vdwg.mxu0
    %v2807 = vld [vmem:[%s4] sm:$0xf]
    %v2808 = vld [vmem:[%s4 + $0x4] sm:$0xf]
    %v2809 = vld [vmem:[%s4 + $0x8] sm:$0xf]
    %v2810 = vld [vmem:[%s4 + $0xc] sm:$0xf]
    %v2811 = vld [vmem:[%s4 + $0x10] sm:$0xf]
    %v2812 = vld [vmem:[%s4 + $0x14] sm:$0xf]
    %v2813 = vld [vmem:[%s4 + $0x18] sm:$0xf]
    %v2814 = vld [vmem:[%s4 + $0x1c] sm:$0xf]
    %v2815 = vld [vmem:[%s4 + $0x20] sm:$0xf]
    %v2816 = vld [vmem:[%s4 + $0x24] sm:$0xf]
    %v2817 = vld [vmem:[%s4 + $0x28] sm:$0xf]
    %v2818 = vld [vmem:[%s4 + $0x2c] sm:$0xf]
    %v2819 = vld [vmem:[%s4 + $0x30] sm:$0xf]
    %v2820 = vld [vmem:[%s4 + $0x34] sm:$0xf]
    %v2821 = vld [vmem:[%s4 + $0x38] sm:$0xf]
    %v2822 = vld [vmem:[%s4 + $0x3c] sm:$0xf]
    %v2823 = vld [vmem:[%s4 + $0x40] sm:$0xf]
    %v2824 = vld [vmem:[%s4 + $0x44] sm:$0xf]
    %v2825 = vld [vmem:[%s4 + $0x48] sm:$0xf]
    %v2826 = vld [vmem:[%s4 + $0x4c] sm:$0xf]
    %v2827 = vld [vmem:[%s4 + $0x50] sm:$0xf]
    %v2828 = vld [vmem:[%s4 + $0x54] sm:$0xf]
    %v2829 = vld [vmem:[%s4 + $0x58] sm:$0xf]
    %v2830 = vld [vmem:[%s4 + $0x5c] sm:$0xf]
    %v2831 = vld [vmem:[%s4 + $0x60] sm:$0xf]
    %v2832 = vld [vmem:[%s4 + $0x64] sm:$0xf]
    %v2833 = vld [vmem:[%s4 + $0x68] sm:$0xf]
    %v2834 = vld [vmem:[%s4 + $0x6c] sm:$0xf]
    %v2835 = vld [vmem:[%s4 + $0x70] sm:$0xf]
    %v2836 = vld [vmem:[%s4 + $0x74] sm:$0xf]
    %v2837 = vld [vmem:[%s4 + $0x78] sm:$0xf]
    %v2838 = vld [vmem:[%s4 + $0x7c] sm:$0xf]
    %v2839 = vpack.c.bf16 %v2728, %v2728
    %v2840 = vpack.c.bf16 %v2730, %v2730
    %v2841 = vpack.c.bf16 %v2733, %v2733
    %v2842 = vpack.c.bf16 %v2735, %v2735
    %v2843 = vpack.c.bf16 %v2738, %v2738
    %v2844 = vpack.c.bf16 %v2740, %v2740
    %v2845 = vpack.c.bf16 %v2743, %v2743
    %v2846 = vpack.c.bf16 %v2745, %v2745
    %v2847 = vpack.c.bf16 %v2748, %v2748
    %v2848 = vpack.c.bf16 %v2750, %v2750
    %v2849 = vpack.c.bf16 %v2753, %v2753
    %v2850 = vpack.c.bf16 %v2755, %v2755
    %v2851 = vpack.c.bf16 %v2758, %v2758
    %v2852 = vpack.c.bf16 %v2760, %v2760
    %v2853 = vpack.c.bf16 %v2763, %v2763
    %v2854 = vpack.c.bf16 %v2765, %v2765
    %v2855 = vpack.c.bf16 %v2768, %v2768
    %v2856 = vpack.c.bf16 %v2770, %v2770
    %v2857 = vpack.c.bf16 %v2773, %v2773
    %v2858 = vpack.c.bf16 %v2775, %v2775
    %v2859 = vpack.c.bf16 %v2778, %v2778
    %v2860 = vpack.c.bf16 %v2780, %v2780
    %v2861 = vpack.c.bf16 %v2783, %v2783
    %v2862 = vpack.c.bf16 %v2785, %v2785
    %v2863 = vpack.c.bf16 %v2788, %v2788
    %v2864 = vpack.c.bf16 %v2790, %v2790
    %v2865 = vpack.c.bf16 %v2793, %v2793
    %v2866 = vpack.c.bf16 %v2795, %v2795
    %v2867 = vpack.c.bf16 %v2798, %v2798
    %v2868 = vpack.c.bf16 %v2800, %v2800
    %v2869 = vpack.c.bf16 %v2803, %v2803
    %v2870 = vpack.c.bf16 %v2805, %v2805
    %2872 = vset.pattern.permute.xlu0 0
    %2873 = vperm.xlu0 %2872, %v2807
    %v2874 = vpop.permute.xlu0 %2873
    %v2877 = vunpack.c.l.s4 839922192
    %v2878 = vunpack.c.0.s8 %v2877
    %v2879 = vperm.slane %v2874, %v2878
    %2881 = vset.pattern.permute.xlu0 0
    %2882 = vperm.xlu0 %2881, %v2808
    %v2883 = vpop.permute.xlu0 %2882
    %v2886 = vunpack.c.l.s4 839922192
    %v2887 = vunpack.c.0.s8 %v2886
    %v2888 = vperm.slane %v2883, %v2887
    %2890 = vset.pattern.permute.xlu0 0
    %2891 = vperm.xlu0 %2890, %v2809
    %v2892 = vpop.permute.xlu0 %2891
    %v2895 = vunpack.c.l.s4 839922192
    %v2896 = vunpack.c.0.s8 %v2895
    %v2897 = vperm.slane %v2892, %v2896
    %2899 = vset.pattern.permute.xlu0 0
    %2900 = vperm.xlu0 %2899, %v2810
    %v2901 = vpop.permute.xlu0 %2900
    %v2904 = vunpack.c.l.s4 839922192
    %v2905 = vunpack.c.0.s8 %v2904
    %v2906 = vperm.slane %v2901, %v2905
    %2908 = vset.pattern.permute.xlu0 0
    %2909 = vperm.xlu0 %2908, %v2811
    %v2910 = vpop.permute.xlu0 %2909
    %v2913 = vunpack.c.l.s4 839922192
    %v2914 = vunpack.c.0.s8 %v2913
    %v2915 = vperm.slane %v2910, %v2914
    %2917 = vset.pattern.permute.xlu0 0
    %2918 = vperm.xlu0 %2917, %v2812
    %v2919 = vpop.permute.xlu0 %2918
    %v2922 = vunpack.c.l.s4 839922192
    %v2923 = vunpack.c.0.s8 %v2922
    %v2924 = vperm.slane %v2919, %v2923
    %2926 = vset.pattern.permute.xlu0 0
    %2927 = vperm.xlu0 %2926, %v2813
    %v2928 = vpop.permute.xlu0 %2927
    %v2931 = vunpack.c.l.s4 839922192
    %v2932 = vunpack.c.0.s8 %v2931
    %v2933 = vperm.slane %v2928, %v2932
    %2935 = vset.pattern.permute.xlu0 0
    %2936 = vperm.xlu0 %2935, %v2814
    %v2937 = vpop.permute.xlu0 %2936
    %v2940 = vunpack.c.l.s4 839922192
    %v2941 = vunpack.c.0.s8 %v2940
    %v2942 = vperm.slane %v2937, %v2941
    %2944 = vset.pattern.permute.xlu0 0
    %2945 = vperm.xlu0 %2944, %v2815
    %v2946 = vpop.permute.xlu0 %2945
    %v2949 = vunpack.c.l.s4 839922192
    %v2950 = vunpack.c.0.s8 %v2949
    %v2951 = vperm.slane %v2946, %v2950
    %2953 = vset.pattern.permute.xlu0 0
    %2954 = vperm.xlu0 %2953, %v2816
    %v2955 = vpop.permute.xlu0 %2954
    %v2958 = vunpack.c.l.s4 839922192
    %v2959 = vunpack.c.0.s8 %v2958
    %v2960 = vperm.slane %v2955, %v2959
    %2962 = vset.pattern.permute.xlu0 0
    %2963 = vperm.xlu0 %2962, %v2817
    %v2964 = vpop.permute.xlu0 %2963
    %v2967 = vunpack.c.l.s4 839922192
    %v2968 = vunpack.c.0.s8 %v2967
    %v2969 = vperm.slane %v2964, %v2968
    %2971 = vset.pattern.permute.xlu0 0
    %2972 = vperm.xlu0 %2971, %v2818
    %v2973 = vpop.permute.xlu0 %2972
    %v2976 = vunpack.c.l.s4 839922192
    %v2977 = vunpack.c.0.s8 %v2976
    %v2978 = vperm.slane %v2973, %v2977
    %2980 = vset.pattern.permute.xlu0 0
    %2981 = vperm.xlu0 %2980, %v2819
    %v2982 = vpop.permute.xlu0 %2981
    %v2985 = vunpack.c.l.s4 839922192
    %v2986 = vunpack.c.0.s8 %v2985
    %v2987 = vperm.slane %v2982, %v2986
    %2989 = vset.pattern.permute.xlu0 0
    %2990 = vperm.xlu0 %2989, %v2820
    %v2991 = vpop.permute.xlu0 %2990
    %v2994 = vunpack.c.l.s4 839922192
    %v2995 = vunpack.c.0.s8 %v2994
    %v2996 = vperm.slane %v2991, %v2995
    %2998 = vset.pattern.permute.xlu0 0
    %2999 = vperm.xlu0 %2998, %v2821
    %v3000 = vpop.permute.xlu0 %2999
    %v3003 = vunpack.c.l.s4 839922192
    %v3004 = vunpack.c.0.s8 %v3003
    %v3005 = vperm.slane %v3000, %v3004
    %3007 = vset.pattern.permute.xlu0 0
    %3008 = vperm.xlu0 %3007, %v2822
    %v3009 = vpop.permute.xlu0 %3008
    %v3012 = vunpack.c.l.s4 839922192
    %v3013 = vunpack.c.0.s8 %v3012
    %v3014 = vperm.slane %v3009, %v3013
    %3016 = vset.pattern.permute.xlu0 0
    %3017 = vperm.xlu0 %3016, %v2823
    %v3018 = vpop.permute.xlu0 %3017
    %v3021 = vunpack.c.l.s4 839922192
    %v3022 = vunpack.c.0.s8 %v3021
    %v3023 = vperm.slane %v3018, %v3022
    %3025 = vset.pattern.permute.xlu0 0
    %3026 = vperm.xlu0 %3025, %v2824
    %v3027 = vpop.permute.xlu0 %3026
    %v3030 = vunpack.c.l.s4 839922192
    %v3031 = vunpack.c.0.s8 %v3030
    %v3032 = vperm.slane %v3027, %v3031
    %3034 = vset.pattern.permute.xlu0 0
    %3035 = vperm.xlu0 %3034, %v2825
    %v3036 = vpop.permute.xlu0 %3035
    %v3039 = vunpack.c.l.s4 839922192
    %v3040 = vunpack.c.0.s8 %v3039
    %v3041 = vperm.slane %v3036, %v3040
    %3043 = vset.pattern.permute.xlu0 0
    %3044 = vperm.xlu0 %3043, %v2826
    %v3045 = vpop.permute.xlu0 %3044
    %v3048 = vunpack.c.l.s4 839922192
    %v3049 = vunpack.c.0.s8 %v3048
    %v3050 = vperm.slane %v3045, %v3049
    %3052 = vset.pattern.permute.xlu0 0
    %3053 = vperm.xlu0 %3052, %v2827
    %v3054 = vpop.permute.xlu0 %3053
    %v3057 = vunpack.c.l.s4 839922192
    %v3058 = vunpack.c.0.s8 %v3057
    %v3059 = vperm.slane %v3054, %v3058
    %3061 = vset.pattern.permute.xlu0 0
    %3062 = vperm.xlu0 %3061, %v2828
    %v3063 = vpop.permute.xlu0 %3062
    %v3066 = vunpack.c.l.s4 839922192
    %v3067 = vunpack.c.0.s8 %v3066
    %v3068 = vperm.slane %v3063, %v3067
    %3070 = vset.pattern.permute.xlu0 0
    %3071 = vperm.xlu0 %3070, %v2829
    %v3072 = vpop.permute.xlu0 %3071
    %v3075 = vunpack.c.l.s4 839922192
    %v3076 = vunpack.c.0.s8 %v3075
    %v3077 = vperm.slane %v3072, %v3076
    %3079 = vset.pattern.permute.xlu0 0
    %3080 = vperm.xlu0 %3079, %v2830
    %v3081 = vpop.permute.xlu0 %3080
    %v3084 = vunpack.c.l.s4 839922192
    %v3085 = vunpack.c.0.s8 %v3084
    %v3086 = vperm.slane %v3081, %v3085
    %3088 = vset.pattern.permute.xlu0 0
    %3089 = vperm.xlu0 %3088, %v2831
    %v3090 = vpop.permute.xlu0 %3089
    %v3093 = vunpack.c.l.s4 839922192
    %v3094 = vunpack.c.0.s8 %v3093
    %v3095 = vperm.slane %v3090, %v3094
    %3097 = vset.pattern.permute.xlu0 0
    %3098 = vperm.xlu0 %3097, %v2832
    %v3099 = vpop.permute.xlu0 %3098
    %v3102 = vunpack.c.l.s4 839922192
    %v3103 = vunpack.c.0.s8 %v3102
    %v3104 = vperm.slane %v3099, %v3103
    %3106 = vset.pattern.permute.xlu0 0
    %3107 = vperm.xlu0 %3106, %v2833
    %v3108 = vpop.permute.xlu0 %3107
    %v3111 = vunpack.c.l.s4 839922192
    %v3112 = vunpack.c.0.s8 %v3111
    %v3113 = vperm.slane %v3108, %v3112
    %3115 = vset.pattern.permute.xlu0 0
    %3116 = vperm.xlu0 %3115, %v2834
    %v3117 = vpop.permute.xlu0 %3116
    %v3120 = vunpack.c.l.s4 839922192
    %v3121 = vunpack.c.0.s8 %v3120
    %v3122 = vperm.slane %v3117, %v3121
    %3124 = vset.pattern.permute.xlu0 0
    %3125 = vperm.xlu0 %3124, %v2835
    %v3126 = vpop.permute.xlu0 %3125
    %v3129 = vunpack.c.l.s4 839922192
    %v3130 = vunpack.c.0.s8 %v3129
    %v3131 = vperm.slane %v3126, %v3130
    %3133 = vset.pattern.permute.xlu0 0
    %3134 = vperm.xlu0 %3133, %v2836
    %v3135 = vpop.permute.xlu0 %3134
    %v3138 = vunpack.c.l.s4 839922192
    %v3139 = vunpack.c.0.s8 %v3138
    %v3140 = vperm.slane %v3135, %v3139
    %3142 = vset.pattern.permute.xlu0 0
    %3143 = vperm.xlu0 %3142, %v2837
    %v3144 = vpop.permute.xlu0 %3143
    %v3147 = vunpack.c.l.s4 839922192
    %v3148 = vunpack.c.0.s8 %v3147
    %v3149 = vperm.slane %v3144, %v3148
    %3151 = vset.pattern.permute.xlu0 0
    %3152 = vperm.xlu0 %3151, %v2838
    %v3153 = vpop.permute.xlu0 %3152
    %v3156 = vunpack.c.l.s4 839922192
    %v3157 = vunpack.c.0.s8 %v3156
    %v3158 = vperm.slane %v3153, %v3157
    %v3159 = vunpack.c.l.bf16 %v2839
    %v3160 = vunpack.c.l.bf16 %v2840
    %v3161 = vunpack.c.l.bf16 %v2841
    %v3162 = vunpack.c.l.bf16 %v2842
    %v3163 = vunpack.c.l.bf16 %v2843
    %v3164 = vunpack.c.l.bf16 %v2844
    %v3165 = vunpack.c.l.bf16 %v2845
    %v3166 = vunpack.c.l.bf16 %v2846
    %v3167 = vunpack.c.l.bf16 %v2847
    %v3168 = vunpack.c.l.bf16 %v2848
    %v3169 = vunpack.c.l.bf16 %v2849
    %v3170 = vunpack.c.l.bf16 %v2850
    %v3171 = vunpack.c.l.bf16 %v2851
    %v3172 = vunpack.c.l.bf16 %v2852
    %v3173 = vunpack.c.l.bf16 %v2853
    %v3174 = vunpack.c.l.bf16 %v2854
    %v3175 = vunpack.c.l.bf16 %v2855
    %v3176 = vunpack.c.l.bf16 %v2856
    %v3177 = vunpack.c.l.bf16 %v2857
    %v3178 = vunpack.c.l.bf16 %v2858
    %v3179 = vunpack.c.l.bf16 %v2859
    %v3180 = vunpack.c.l.bf16 %v2860
    %v3181 = vunpack.c.l.bf16 %v2861
    %v3182 = vunpack.c.l.bf16 %v2862
    %v3183 = vunpack.c.l.bf16 %v2863
    %v3184 = vunpack.c.l.bf16 %v2864
    %v3185 = vunpack.c.l.bf16 %v2865
    %v3186 = vunpack.c.l.bf16 %v2866
    %v3187 = vunpack.c.l.bf16 %v2867
    %v3188 = vunpack.c.l.bf16 %v2868
    %v3189 = vunpack.c.l.bf16 %v2869
    %v3190 = vunpack.c.l.bf16 %v2870
    %v3191 = vunpack.c.l.bf16 %v2879
    %v3192 = vunpack.c.l.bf16 %v2888
    %v3193 = vunpack.c.l.bf16 %v2897
    %v3194 = vunpack.c.l.bf16 %v2906
    %v3195 = vunpack.c.l.bf16 %v2915
    %v3196 = vunpack.c.l.bf16 %v2924
    %v3197 = vunpack.c.l.bf16 %v2933
    %v3198 = vunpack.c.l.bf16 %v2942
    %v3199 = vunpack.c.l.bf16 %v2951
    %v3200 = vunpack.c.l.bf16 %v2960
    %v3201 = vunpack.c.l.bf16 %v2969
    %v3202 = vunpack.c.l.bf16 %v2978
    %v3203 = vunpack.c.l.bf16 %v2987
    %v3204 = vunpack.c.l.bf16 %v2996
    %v3205 = vunpack.c.l.bf16 %v3005
    %v3206 = vunpack.c.l.bf16 %v3014
    %v3207 = vunpack.c.l.bf16 %v3023
    %v3208 = vunpack.c.l.bf16 %v3032
    %v3209 = vunpack.c.l.bf16 %v3041
    %v3210 = vunpack.c.l.bf16 %v3050
    %v3211 = vunpack.c.l.bf16 %v3059
    %v3212 = vunpack.c.l.bf16 %v3068
    %v3213 = vunpack.c.l.bf16 %v3077
    %v3214 = vunpack.c.l.bf16 %v3086
    %v3215 = vunpack.c.l.bf16 %v3095
    %v3216 = vunpack.c.l.bf16 %v3104
    %v3217 = vunpack.c.l.bf16 %v3113
    %v3218 = vunpack.c.l.bf16 %v3122
    %v3219 = vunpack.c.l.bf16 %v3131
    %v3220 = vunpack.c.l.bf16 %v3140
    %v3221 = vunpack.c.l.bf16 %v3149
    %v3222 = vunpack.c.l.bf16 %v3158
    %v3223 = vadd.f32 %v3159, %v3191
    %v3224 = vadd.f32 %v3160, %v3192
    %v3225 = vadd.f32 %v3161, %v3193
    %v3226 = vadd.f32 %v3162, %v3194
    %v3227 = vadd.f32 %v3163, %v3195
    %v3228 = vadd.f32 %v3164, %v3196
    %v3229 = vadd.f32 %v3165, %v3197
    %v3230 = vadd.f32 %v3166, %v3198
    %v3231 = vadd.f32 %v3167, %v3199
    %v3232 = vadd.f32 %v3168, %v3200
    %v3233 = vadd.f32 %v3169, %v3201
    %v3234 = vadd.f32 %v3170, %v3202
    %v3235 = vadd.f32 %v3171, %v3203
    %v3236 = vadd.f32 %v3172, %v3204
    %v3237 = vadd.f32 %v3173, %v3205
    %v3238 = vadd.f32 %v3174, %v3206
    %v3239 = vadd.f32 %v3175, %v3207
    %v3240 = vadd.f32 %v3176, %v3208
    %v3241 = vadd.f32 %v3177, %v3209
    %v3242 = vadd.f32 %v3178, %v3210
    %v3243 = vadd.f32 %v3179, %v3211
    %v3244 = vadd.f32 %v3180, %v3212
    %v3245 = vadd.f32 %v3181, %v3213
    %v3246 = vadd.f32 %v3182, %v3214
    %v3247 = vadd.f32 %v3183, %v3215
    %v3248 = vadd.f32 %v3184, %v3216
    %v3249 = vadd.f32 %v3185, %v3217
    %v3250 = vadd.f32 %v3186, %v3218
    %v3251 = vadd.f32 %v3187, %v3219
    %v3252 = vadd.f32 %v3188, %v3220
    %v3253 = vadd.f32 %v3189, %v3221
    %v3254 = vadd.f32 %v3190, %v3222
    %v3255 = vpack.c.bf16 %v3223, %v3223
    %v3256 = vpack.c.bf16 %v3224, %v3224
    %v3257 = vpack.c.bf16 %v3225, %v3225
    %v3258 = vpack.c.bf16 %v3226, %v3226
    %v3259 = vpack.c.bf16 %v3227, %v3227
    %v3260 = vpack.c.bf16 %v3228, %v3228
    %v3261 = vpack.c.bf16 %v3229, %v3229
    %v3262 = vpack.c.bf16 %v3230, %v3230
    %v3263 = vpack.c.bf16 %v3231, %v3231
    %v3264 = vpack.c.bf16 %v3232, %v3232
    %v3265 = vpack.c.bf16 %v3233, %v3233
    %v3266 = vpack.c.bf16 %v3234, %v3234
    %v3267 = vpack.c.bf16 %v3235, %v3235
    %v3268 = vpack.c.bf16 %v3236, %v3236
    %v3269 = vpack.c.bf16 %v3237, %v3237
    %v3270 = vpack.c.bf16 %v3238, %v3238
    %v3271 = vpack.c.bf16 %v3239, %v3239
    %v3272 = vpack.c.bf16 %v3240, %v3240
    %v3273 = vpack.c.bf16 %v3241, %v3241
    %v3274 = vpack.c.bf16 %v3242, %v3242
    %v3275 = vpack.c.bf16 %v3243, %v3243
    %v3276 = vpack.c.bf16 %v3244, %v3244
    %v3277 = vpack.c.bf16 %v3245, %v3245
    %v3278 = vpack.c.bf16 %v3246, %v3246
    %v3279 = vpack.c.bf16 %v3247, %v3247
    %v3280 = vpack.c.bf16 %v3248, %v3248
    %v3281 = vpack.c.bf16 %v3249, %v3249
    %v3282 = vpack.c.bf16 %v3250, %v3250
    %v3283 = vpack.c.bf16 %v3251, %v3251
    %v3284 = vpack.c.bf16 %v3252, %v3252
    %v3285 = vpack.c.bf16 %v3253, %v3253
    %v3286 = vpack.c.bf16 %v3254, %v3254
    %v3287 = vunpack.c.l.bf16 %v3255
    %v3288 = vunpack.c.l.bf16 %v3256
    %v3289 = vunpack.c.l.bf16 %v3257
    %v3290 = vunpack.c.l.bf16 %v3258
    %v3291 = vunpack.c.l.bf16 %v3259
    %v3292 = vunpack.c.l.bf16 %v3260
    %v3293 = vunpack.c.l.bf16 %v3261
    %v3294 = vunpack.c.l.bf16 %v3262
    %v3295 = vunpack.c.l.bf16 %v3263
    %v3296 = vunpack.c.l.bf16 %v3264
    %v3297 = vunpack.c.l.bf16 %v3265
    %v3298 = vunpack.c.l.bf16 %v3266
    %v3299 = vunpack.c.l.bf16 %v3267
    %v3300 = vunpack.c.l.bf16 %v3268
    %v3301 = vunpack.c.l.bf16 %v3269
    %v3302 = vunpack.c.l.bf16 %v3270
    %v3303 = vunpack.c.l.bf16 %v3271
    %v3304 = vunpack.c.l.bf16 %v3272
    %v3305 = vunpack.c.l.bf16 %v3273
    %v3306 = vunpack.c.l.bf16 %v3274
    %v3307 = vunpack.c.l.bf16 %v3275
    %v3308 = vunpack.c.l.bf16 %v3276
    %v3309 = vunpack.c.l.bf16 %v3277
    %v3310 = vunpack.c.l.bf16 %v3278
    %v3311 = vunpack.c.l.bf16 %v3279
    %v3312 = vunpack.c.l.bf16 %v3280
    %v3313 = vunpack.c.l.bf16 %v3281
    %v3314 = vunpack.c.l.bf16 %v3282
    %v3315 = vunpack.c.l.bf16 %v3283
    %v3316 = vunpack.c.l.bf16 %v3284
    %v3317 = vunpack.c.l.bf16 %v3285
    %v3318 = vunpack.c.l.bf16 %v3286
    %vm3319 = vcmp.gt.f32.partialorder %v3287, 0.0
    %vm3320 = vcmp.gt.f32.partialorder %v3288, 0.0
    %vm3321 = vcmp.gt.f32.partialorder %v3289, 0.0
    %vm3322 = vcmp.gt.f32.partialorder %v3290, 0.0
    %vm3323 = vcmp.gt.f32.partialorder %v3291, 0.0
    %vm3324 = vcmp.gt.f32.partialorder %v3292, 0.0
    %vm3325 = vcmp.gt.f32.partialorder %v3293, 0.0
    %vm3326 = vcmp.gt.f32.partialorder %v3294, 0.0
    %vm3327 = vcmp.gt.f32.partialorder %v3295, 0.0
    %vm3328 = vcmp.gt.f32.partialorder %v3296, 0.0
    %vm3329 = vcmp.gt.f32.partialorder %v3297, 0.0
    %vm3330 = vcmp.gt.f32.partialorder %v3298, 0.0
    %vm3331 = vcmp.gt.f32.partialorder %v3299, 0.0
    %vm3332 = vcmp.gt.f32.partialorder %v3300, 0.0
    %vm3333 = vcmp.gt.f32.partialorder %v3301, 0.0
    %vm3334 = vcmp.gt.f32.partialorder %v3302, 0.0
    %vm3335 = vcmp.gt.f32.partialorder %v3303, 0.0
    %vm3336 = vcmp.gt.f32.partialorder %v3304, 0.0
    %vm3337 = vcmp.gt.f32.partialorder %v3305, 0.0
    %vm3338 = vcmp.gt.f32.partialorder %v3306, 0.0
    %vm3339 = vcmp.gt.f32.partialorder %v3307, 0.0
    %vm3340 = vcmp.gt.f32.partialorder %v3308, 0.0
    %vm3341 = vcmp.gt.f32.partialorder %v3309, 0.0
    %vm3342 = vcmp.gt.f32.partialorder %v3310, 0.0
    %vm3343 = vcmp.gt.f32.partialorder %v3311, 0.0
    %vm3344 = vcmp.gt.f32.partialorder %v3312, 0.0
    %vm3345 = vcmp.gt.f32.partialorder %v3313, 0.0
    %vm3346 = vcmp.gt.f32.partialorder %v3314, 0.0
    %vm3347 = vcmp.gt.f32.partialorder %v3315, 0.0
    %vm3348 = vcmp.gt.f32.partialorder %v3316, 0.0
    %vm3349 = vcmp.gt.f32.partialorder %v3317, 0.0
    %vm3350 = vcmp.gt.f32.partialorder %v3318, 0.0
    %v3351 = vmul.f32 %v3287, 0.010009766
    %v3352 = vmul.f32 %v3288, 0.010009766
    %v3353 = vmul.f32 %v3289, 0.010009766
    %v3354 = vmul.f32 %v3290, 0.010009766
    %v3355 = vmul.f32 %v3291, 0.010009766
    %v3356 = vmul.f32 %v3292, 0.010009766
    %v3357 = vmul.f32 %v3293, 0.010009766
    %v3358 = vmul.f32 %v3294, 0.010009766
    %v3359 = vmul.f32 %v3295, 0.010009766
    %v3360 = vmul.f32 %v3296, 0.010009766
    %v3361 = vmul.f32 %v3297, 0.010009766
    %v3362 = vmul.f32 %v3298, 0.010009766
    %v3363 = vmul.f32 %v3299, 0.010009766
    %v3364 = vmul.f32 %v3300, 0.010009766
    %v3365 = vmul.f32 %v3301, 0.010009766
    %v3366 = vmul.f32 %v3302, 0.010009766
    %v3367 = vmul.f32 %v3303, 0.010009766
    %v3368 = vmul.f32 %v3304, 0.010009766
    %v3369 = vmul.f32 %v3305, 0.010009766
    %v3370 = vmul.f32 %v3306, 0.010009766
    %v3371 = vmul.f32 %v3307, 0.010009766
    %v3372 = vmul.f32 %v3308, 0.010009766
    %v3373 = vmul.f32 %v3309, 0.010009766
    %v3374 = vmul.f32 %v3310, 0.010009766
    %v3375 = vmul.f32 %v3311, 0.010009766
    %v3376 = vmul.f32 %v3312, 0.010009766
    %v3377 = vmul.f32 %v3313, 0.010009766
    %v3378 = vmul.f32 %v3314, 0.010009766
    %v3379 = vmul.f32 %v3315, 0.010009766
    %v3380 = vmul.f32 %v3316, 0.010009766
    %v3381 = vmul.f32 %v3317, 0.010009766
    %v3382 = vmul.f32 %v3318, 0.010009766
    %v3383 = vpack.c.bf16 %v3351, %v3351
    %v3384 = vpack.c.bf16 %v3352, %v3352
    %v3385 = vpack.c.bf16 %v3353, %v3353
    %v3386 = vpack.c.bf16 %v3354, %v3354
    %v3387 = vpack.c.bf16 %v3355, %v3355
    %v3388 = vpack.c.bf16 %v3356, %v3356
    %v3389 = vpack.c.bf16 %v3357, %v3357
    %v3390 = vpack.c.bf16 %v3358, %v3358
    %v3391 = vpack.c.bf16 %v3359, %v3359
    %v3392 = vpack.c.bf16 %v3360, %v3360
    %v3393 = vpack.c.bf16 %v3361, %v3361
    %v3394 = vpack.c.bf16 %v3362, %v3362
    %v3395 = vpack.c.bf16 %v3363, %v3363
    %v3396 = vpack.c.bf16 %v3364, %v3364
    %v3397 = vpack.c.bf16 %v3365, %v3365
    %v3398 = vpack.c.bf16 %v3366, %v3366
    %v3399 = vpack.c.bf16 %v3367, %v3367
    %v3400 = vpack.c.bf16 %v3368, %v3368
    %v3401 = vpack.c.bf16 %v3369, %v3369
    %v3402 = vpack.c.bf16 %v3370, %v3370
    %v3403 = vpack.c.bf16 %v3371, %v3371
    %v3404 = vpack.c.bf16 %v3372, %v3372
    %v3405 = vpack.c.bf16 %v3373, %v3373
    %v3406 = vpack.c.bf16 %v3374, %v3374
    %v3407 = vpack.c.bf16 %v3375, %v3375
    %v3408 = vpack.c.bf16 %v3376, %v3376
    %v3409 = vpack.c.bf16 %v3377, %v3377
    %v3410 = vpack.c.bf16 %v3378, %v3378
    %v3411 = vpack.c.bf16 %v3379, %v3379
    %v3412 = vpack.c.bf16 %v3380, %v3380
    %v3413 = vpack.c.bf16 %v3381, %v3381
    %v3414 = vpack.c.bf16 %v3382, %v3382
    %vm3415 = vmpackc.low %vm3319, %vm3319
    %vm3416 = vmpackc.low %vm3320, %vm3320
    %vm3417 = vmpackc.low %vm3321, %vm3321
    %vm3418 = vmpackc.low %vm3322, %vm3322
    %vm3419 = vmpackc.low %vm3323, %vm3323
    %vm3420 = vmpackc.low %vm3324, %vm3324
    %vm3421 = vmpackc.low %vm3325, %vm3325
    %vm3422 = vmpackc.low %vm3326, %vm3326
    %vm3423 = vmpackc.low %vm3327, %vm3327
    %vm3424 = vmpackc.low %vm3328, %vm3328
    %vm3425 = vmpackc.low %vm3329, %vm3329
    %vm3426 = vmpackc.low %vm3330, %vm3330
    %vm3427 = vmpackc.low %vm3331, %vm3331
    %vm3428 = vmpackc.low %vm3332, %vm3332
    %vm3429 = vmpackc.low %vm3333, %vm3333
    %vm3430 = vmpackc.low %vm3334, %vm3334
    %vm3431 = vmpackc.low %vm3335, %vm3335
    %vm3432 = vmpackc.low %vm3336, %vm3336
    %vm3433 = vmpackc.low %vm3337, %vm3337
    %vm3434 = vmpackc.low %vm3338, %vm3338
    %vm3435 = vmpackc.low %vm3339, %vm3339
    %vm3436 = vmpackc.low %vm3340, %vm3340
    %vm3437 = vmpackc.low %vm3341, %vm3341
    %vm3438 = vmpackc.low %vm3342, %vm3342
    %vm3439 = vmpackc.low %vm3343, %vm3343
    %vm3440 = vmpackc.low %vm3344, %vm3344
    %vm3441 = vmpackc.low %vm3345, %vm3345
    %vm3442 = vmpackc.low %vm3346, %vm3346
    %vm3443 = vmpackc.low %vm3347, %vm3347
    %vm3444 = vmpackc.low %vm3348, %vm3348
    %vm3445 = vmpackc.low %vm3349, %vm3349
    %vm3446 = vmpackc.low %vm3350, %vm3350
    %v3447 = vsel %vm3415, %v3255, %v3383
    %v3448 = vsel %vm3416, %v3256, %v3384
    %v3449 = vsel %vm3417, %v3257, %v3385
    %v3450 = vsel %vm3418, %v3258, %v3386
    %v3451 = vsel %vm3419, %v3259, %v3387
    %v3452 = vsel %vm3420, %v3260, %v3388
    %v3453 = vsel %vm3421, %v3261, %v3389
    %v3454 = vsel %vm3422, %v3262, %v3390
    %v3455 = vsel %vm3423, %v3263, %v3391
    %v3456 = vsel %vm3424, %v3264, %v3392
    %v3457 = vsel %vm3425, %v3265, %v3393
    %v3458 = vsel %vm3426, %v3266, %v3394
    %v3459 = vsel %vm3427, %v3267, %v3395
    %v3460 = vsel %vm3428, %v3268, %v3396
    %v3461 = vsel %vm3429, %v3269, %v3397
    %v3462 = vsel %vm3430, %v3270, %v3398
    %v3463 = vsel %vm3431, %v3271, %v3399
    %v3464 = vsel %vm3432, %v3272, %v3400
    %v3465 = vsel %vm3433, %v3273, %v3401
    %v3466 = vsel %vm3434, %v3274, %v3402
    %v3467 = vsel %vm3435, %v3275, %v3403
    %v3468 = vsel %vm3436, %v3276, %v3404
    %v3469 = vsel %vm3437, %v3277, %v3405
    %v3470 = vsel %vm3438, %v3278, %v3406
    %v3471 = vsel %vm3439, %v3279, %v3407
    %v3472 = vsel %vm3440, %v3280, %v3408
    %v3473 = vsel %vm3441, %v3281, %v3409
    %v3474 = vsel %vm3442, %v3282, %v3410
    %v3475 = vsel %vm3443, %v3283, %v3411
    %v3476 = vsel %vm3444, %v3284, %v3412
    %v3477 = vsel %vm3445, %v3285, %v3413
    %v3478 = vsel %vm3446, %v3286, %v3414
    %v3479 = vld [vmem:[%s5] sm:$0xff]
    %v3480 = vld [vmem:[%s5 + $0x8] sm:$0xff]
    %v3481 = vld [vmem:[%s5 + $0x10] sm:$0xff]
    %v3482 = vld [vmem:[%s5 + $0x18] sm:$0xff]
    %v3483 = vld [vmem:[%s5 + $0x20] sm:$0xff]
    %v3484 = vld [vmem:[%s5 + $0x28] sm:$0xff]
    %v3485 = vld [vmem:[%s5 + $0x30] sm:$0xff]
    %v3486 = vld [vmem:[%s5 + $0x38] sm:$0xff]
    %v3487 = vld [vmem:[%s5 + $0x40] sm:$0xff]
    %v3488 = vld [vmem:[%s5 + $0x48] sm:$0xff]
    %v3489 = vld [vmem:[%s5 + $0x50] sm:$0xff]
    %v3490 = vld [vmem:[%s5 + $0x58] sm:$0xff]
    %v3491 = vld [vmem:[%s5 + $0x60] sm:$0xff]
    %v3492 = vld [vmem:[%s5 + $0x68] sm:$0xff]
    %v3493 = vld [vmem:[%s5 + $0x70] sm:$0xff]
    %v3494 = vld [vmem:[%s5 + $0x78] sm:$0xff]
    %v3511 = vunpack.c.l.b16 %v3479
    %v3512 = vunpack.c.h.b16 %v3479
    %v3513 = vunpack.c.l.b16 %v3480
    %v3514 = vunpack.c.h.b16 %v3480
    %v3515 = vunpack.c.l.b16 %v3481
    %v3516 = vunpack.c.h.b16 %v3481
    %v3517 = vunpack.c.l.b16 %v3482
    %v3518 = vunpack.c.h.b16 %v3482
    %v3519 = vunpack.c.l.b16 %v3483
    %v3520 = vunpack.c.h.b16 %v3483
    %v3521 = vunpack.c.l.b16 %v3484
    %v3522 = vunpack.c.h.b16 %v3484
    %v3523 = vunpack.c.l.b16 %v3485
    %v3524 = vunpack.c.h.b16 %v3485
    %v3525 = vunpack.c.l.b16 %v3486
    %v3526 = vunpack.c.h.b16 %v3486
    %v3527 = vunpack.c.l.b16 %v3487
    %v3528 = vunpack.c.h.b16 %v3487
    %v3529 = vunpack.c.l.b16 %v3488
    %v3530 = vunpack.c.h.b16 %v3488
    %v3531 = vunpack.c.l.b16 %v3489
    %v3532 = vunpack.c.h.b16 %v3489
    %v3533 = vunpack.c.l.b16 %v3490
    %v3534 = vunpack.c.h.b16 %v3490
    %v3535 = vunpack.c.l.b16 %v3491
    %v3536 = vunpack.c.h.b16 %v3491
    %v3537 = vunpack.c.l.b16 %v3492
    %v3538 = vunpack.c.h.b16 %v3492
    %v3539 = vunpack.c.l.b16 %v3493
    %v3540 = vunpack.c.h.b16 %v3493
    %v3541 = vunpack.c.l.b16 %v3494
    %v3542 = vunpack.c.h.b16 %v3494
    %v3543 = vpack.c.b16 %v3513, %v3511
    %v3544 = vpack.c.b16 %v3514, %v3512
    %v3545 = vpack.c.b16 %v3517, %v3515
    %v3546 = vpack.c.b16 %v3518, %v3516
    %v3547 = vpack.c.b16 %v3521, %v3519
    %v3548 = vpack.c.b16 %v3522, %v3520
    %v3549 = vpack.c.b16 %v3525, %v3523
    %v3550 = vpack.c.b16 %v3526, %v3524
    %v3551 = vpack.c.b16 %v3529, %v3527
    %v3552 = vpack.c.b16 %v3530, %v3528
    %v3553 = vpack.c.b16 %v3533, %v3531
    %v3554 = vpack.c.b16 %v3534, %v3532
    %v3555 = vpack.c.b16 %v3537, %v3535
    %v3556 = vpack.c.b16 %v3538, %v3536
    %v3557 = vpack.c.b16 %v3541, %v3539
    %v3558 = vpack.c.b16 %v3542, %v3540
    %v3607 = vunpack.c.l.b16 %v3447
    %v3608 = vunpack.c.l.b16 %v3448
    %v3609 = vunpack.c.l.b16 %v3449
    %v3610 = vunpack.c.l.b16 %v3450
    %v3611 = vunpack.c.l.b16 %v3451
    %v3612 = vunpack.c.l.b16 %v3452
    %v3613 = vunpack.c.l.b16 %v3453
    %v3614 = vunpack.c.l.b16 %v3454
    %v3615 = vunpack.c.l.b16 %v3455
    %v3616 = vunpack.c.l.b16 %v3456
    %v3617 = vunpack.c.l.b16 %v3457
    %v3618 = vunpack.c.l.b16 %v3458
    %v3619 = vunpack.c.l.b16 %v3459
    %v3620 = vunpack.c.l.b16 %v3460
    %v3621 = vunpack.c.l.b16 %v3461
    %v3622 = vunpack.c.l.b16 %v3462
    %v3623 = vunpack.c.l.b16 %v3463
    %v3624 = vunpack.c.l.b16 %v3464
    %v3625 = vunpack.c.l.b16 %v3465
    %v3626 = vunpack.c.l.b16 %v3466
    %v3627 = vunpack.c.l.b16 %v3467
    %v3628 = vunpack.c.l.b16 %v3468
    %v3629 = vunpack.c.l.b16 %v3469
    %v3630 = vunpack.c.l.b16 %v3470
    %v3631 = vunpack.c.l.b16 %v3471
    %v3632 = vunpack.c.l.b16 %v3472
    %v3633 = vunpack.c.l.b16 %v3473
    %v3634 = vunpack.c.l.b16 %v3474
    %v3635 = vunpack.c.l.b16 %v3475
    %v3636 = vunpack.c.l.b16 %v3476
    %v3637 = vunpack.c.l.b16 %v3477
    %v3638 = vunpack.c.l.b16 %v3478
    %v3639 = vpack.c.b16 %v3608, %v3607
    %v3640 = vpack.c.b16 %v3610, %v3609
    %v3641 = vpack.c.b16 %v3612, %v3611
    %v3642 = vpack.c.b16 %v3614, %v3613
    %v3643 = vpack.c.b16 %v3616, %v3615
    %v3644 = vpack.c.b16 %v3618, %v3617
    %v3645 = vpack.c.b16 %v3620, %v3619
    %v3646 = vpack.c.b16 %v3622, %v3621
    %v3647 = vpack.c.b16 %v3624, %v3623
    %v3648 = vpack.c.b16 %v3626, %v3625
    %v3649 = vpack.c.b16 %v3628, %v3627
    %v3650 = vpack.c.b16 %v3630, %v3629
    %v3651 = vpack.c.b16 %v3632, %v3631
    %v3652 = vpack.c.b16 %v3634, %v3633
    %v3653 = vpack.c.b16 %v3636, %v3635
    %v3654 = vpack.c.b16 %v3638, %v3637
    %3671 = vmatpush.bf16.msra.mxu0 %v3646
    %3672 = vmatpush.bf16.msra.mxu0 %v3645
    %3673 = vmatpush.bf16.msra.mxu0 %v3644
    %3674 = vmatpush.bf16.msra.mxu0 %v3643
    %3675 = vmatpush.bf16.msra.mxu0 %v3642
    %3676 = vmatpush.bf16.msra.mxu0 %v3641
    %3677 = vmatpush.bf16.msra.mxu0 %v3640
    %3678 = vmatpush.bf16.msra.mxu0 %v3639
    %3679 = vmatmul.bf16.gmra.mxu0 %v3543
    %v3680 = vpop.f32.mrf.mxu0
    %v3681 = vadd.f32 0.0, %v3680
    %v3682 = vpop.f32.mrf.mxu0
    %v3683 = vadd.f32 0.0, %v3682
    %3684 = vmatmul.bf16.gmra.mxu0 %v3545
    %v3685 = vpop.f32.mrf.mxu0
    %v3686 = vadd.f32 0.0, %v3685
    %v3687 = vpop.f32.mrf.mxu0
    %v3688 = vadd.f32 0.0, %v3687
    %3689 = vmatmul.bf16.gmra.mxu0 %v3547
    %v3690 = vpop.f32.mrf.mxu0
    %v3691 = vadd.f32 0.0, %v3690
    %v3692 = vpop.f32.mrf.mxu0
    %v3693 = vadd.f32 0.0, %v3692
    %3694 = vmatmul.bf16.gmra.mxu0 %v3549
    %v3695 = vpop.f32.mrf.mxu0
    %v3696 = vadd.f32 0.0, %v3695
    %v3697 = vpop.f32.mrf.mxu0
    %v3698 = vadd.f32 0.0, %v3697
    %3699 = vmatmul.bf16.gmra.mxu0 %v3551
    %v3700 = vpop.f32.mrf.mxu0
    %v3701 = vadd.f32 0.0, %v3700
    %v3702 = vpop.f32.mrf.mxu0
    %v3703 = vadd.f32 0.0, %v3702
    %3704 = vmatmul.bf16.gmra.mxu0 %v3553
    %v3705 = vpop.f32.mrf.mxu0
    %v3706 = vadd.f32 0.0, %v3705
    %v3707 = vpop.f32.mrf.mxu0
    %v3708 = vadd.f32 0.0, %v3707
    %3709 = vmatmul.bf16.gmra.mxu0 %v3555
    %v3710 = vpop.f32.mrf.mxu0
    %v3711 = vadd.f32 0.0, %v3710
    %v3712 = vpop.f32.mrf.mxu0
    %v3713 = vadd.f32 0.0, %v3712
    %3714 = vmatmul.bf16.gmra.mxu0 %v3557
    %v3715 = vpop.f32.mrf.mxu0
    %v3716 = vadd.f32 0.0, %v3715
    %v3717 = vpop.f32.mrf.mxu0
    %v3718 = vadd.f32 0.0, %v3717
    %3719 = vdwg.mxu0
    %3720 = vmatpush.bf16.msra.mxu0 %v3654
    %3721 = vmatpush.bf16.msra.mxu0 %v3653
    %3722 = vmatpush.bf16.msra.mxu0 %v3652
    %3723 = vmatpush.bf16.msra.mxu0 %v3651
    %3724 = vmatpush.bf16.msra.mxu0 %v3650
    %3725 = vmatpush.bf16.msra.mxu0 %v3649
    %3726 = vmatpush.bf16.msra.mxu0 %v3648
    %3727 = vmatpush.bf16.msra.mxu0 %v3647
    %3728 = vmatmul.bf16.gmra.mxu0 %v3544
    %v3729 = vpop.f32.mrf.mxu0
    %v3730 = vadd.f32 %v3681, %v3729
    %v3731 = vpop.f32.mrf.mxu0
    %v3732 = vadd.f32 %v3683, %v3731
    %3733 = vmatmul.bf16.gmra.mxu0 %v3546
    %v3734 = vpop.f32.mrf.mxu0
    %v3735 = vadd.f32 %v3686, %v3734
    %v3736 = vpop.f32.mrf.mxu0
    %v3737 = vadd.f32 %v3688, %v3736
    %3738 = vmatmul.bf16.gmra.mxu0 %v3548
    %v3739 = vpop.f32.mrf.mxu0
    %v3740 = vadd.f32 %v3691, %v3739
    %v3741 = vpop.f32.mrf.mxu0
    %v3742 = vadd.f32 %v3693, %v3741
    %3743 = vmatmul.bf16.gmra.mxu0 %v3550
    %v3744 = vpop.f32.mrf.mxu0
    %v3745 = vadd.f32 %v3696, %v3744
    %v3746 = vpop.f32.mrf.mxu0
    %v3747 = vadd.f32 %v3698, %v3746
    %3748 = vmatmul.bf16.gmra.mxu0 %v3552
    %v3749 = vpop.f32.mrf.mxu0
    %v3750 = vadd.f32 %v3701, %v3749
    %v3751 = vpop.f32.mrf.mxu0
    %v3752 = vadd.f32 %v3703, %v3751
    %3753 = vmatmul.bf16.gmra.mxu0 %v3554
    %v3754 = vpop.f32.mrf.mxu0
    %v3755 = vadd.f32 %v3706, %v3754
    %v3756 = vpop.f32.mrf.mxu0
    %v3757 = vadd.f32 %v3708, %v3756
    %3758 = vmatmul.bf16.gmra.mxu0 %v3556
    %v3759 = vpop.f32.mrf.mxu0
    %v3760 = vadd.f32 %v3711, %v3759
    %v3761 = vpop.f32.mrf.mxu0
    %v3762 = vadd.f32 %v3713, %v3761
    %3763 = vmatmul.bf16.gmra.mxu0 %v3558
    %v3764 = vpop.f32.mrf.mxu0
    %v3765 = vadd.f32 %v3716, %v3764
    %v3766 = vpop.f32.mrf.mxu0
    %v3767 = vadd.f32 %v3718, %v3766
    %3768 = vdwg.mxu0
    %v3769 = vld [vmem:[%s6] sm:$0xf]
    %v3770 = vld [vmem:[%s6 + $0x4] sm:$0xf]
    %v3771 = vld [vmem:[%s6 + $0x8] sm:$0xf]
    %v3772 = vld [vmem:[%s6 + $0xc] sm:$0xf]
    %v3773 = vld [vmem:[%s6 + $0x10] sm:$0xf]
    %v3774 = vld [vmem:[%s6 + $0x14] sm:$0xf]
    %v3775 = vld [vmem:[%s6 + $0x18] sm:$0xf]
    %v3776 = vld [vmem:[%s6 + $0x1c] sm:$0xf]
    %v3777 = vld [vmem:[%s6 + $0x20] sm:$0xf]
    %v3778 = vld [vmem:[%s6 + $0x24] sm:$0xf]
    %v3779 = vld [vmem:[%s6 + $0x28] sm:$0xf]
    %v3780 = vld [vmem:[%s6 + $0x2c] sm:$0xf]
    %v3781 = vld [vmem:[%s6 + $0x30] sm:$0xf]
    %v3782 = vld [vmem:[%s6 + $0x34] sm:$0xf]
    %v3783 = vld [vmem:[%s6 + $0x38] sm:$0xf]
    %v3784 = vld [vmem:[%s6 + $0x3c] sm:$0xf]
    %v3785 = vpack.c.bf16 %v3730, %v3730
    %v3786 = vpack.c.bf16 %v3732, %v3732
    %v3787 = vpack.c.bf16 %v3735, %v3735
    %v3788 = vpack.c.bf16 %v3737, %v3737
    %v3789 = vpack.c.bf16 %v3740, %v3740
    %v3790 = vpack.c.bf16 %v3742, %v3742
    %v3791 = vpack.c.bf16 %v3745, %v3745
    %v3792 = vpack.c.bf16 %v3747, %v3747
    %v3793 = vpack.c.bf16 %v3750, %v3750
    %v3794 = vpack.c.bf16 %v3752, %v3752
    %v3795 = vpack.c.bf16 %v3755, %v3755
    %v3796 = vpack.c.bf16 %v3757, %v3757
    %v3797 = vpack.c.bf16 %v3760, %v3760
    %v3798 = vpack.c.bf16 %v3762, %v3762
    %v3799 = vpack.c.bf16 %v3765, %v3765
    %v3800 = vpack.c.bf16 %v3767, %v3767
    %3802 = vset.pattern.permute.xlu0 0
    %3803 = vperm.xlu0 %3802, %v3769
    %v3804 = vpop.permute.xlu0 %3803
    %v3807 = vunpack.c.l.s4 839922192
    %v3808 = vunpack.c.0.s8 %v3807
    %v3809 = vperm.slane %v3804, %v3808
    %3811 = vset.pattern.permute.xlu0 0
    %3812 = vperm.xlu0 %3811, %v3770
    %v3813 = vpop.permute.xlu0 %3812
    %v3816 = vunpack.c.l.s4 839922192
    %v3817 = vunpack.c.0.s8 %v3816
    %v3818 = vperm.slane %v3813, %v3817
    %3820 = vset.pattern.permute.xlu0 0
    %3821 = vperm.xlu0 %3820, %v3771
    %v3822 = vpop.permute.xlu0 %3821
    %v3825 = vunpack.c.l.s4 839922192
    %v3826 = vunpack.c.0.s8 %v3825
    %v3827 = vperm.slane %v3822, %v3826
    %3829 = vset.pattern.permute.xlu0 0
    %3830 = vperm.xlu0 %3829, %v3772
    %v3831 = vpop.permute.xlu0 %3830
    %v3834 = vunpack.c.l.s4 839922192
    %v3835 = vunpack.c.0.s8 %v3834
    %v3836 = vperm.slane %v3831, %v3835
    %3838 = vset.pattern.permute.xlu0 0
    %3839 = vperm.xlu0 %3838, %v3773
    %v3840 = vpop.permute.xlu0 %3839
    %v3843 = vunpack.c.l.s4 839922192
    %v3844 = vunpack.c.0.s8 %v3843
    %v3845 = vperm.slane %v3840, %v3844
    %3847 = vset.pattern.permute.xlu0 0
    %3848 = vperm.xlu0 %3847, %v3774
    %v3849 = vpop.permute.xlu0 %3848
    %v3852 = vunpack.c.l.s4 839922192
    %v3853 = vunpack.c.0.s8 %v3852
    %v3854 = vperm.slane %v3849, %v3853
    %3856 = vset.pattern.permute.xlu0 0
    %3857 = vperm.xlu0 %3856, %v3775
    %v3858 = vpop.permute.xlu0 %3857
    %v3861 = vunpack.c.l.s4 839922192
    %v3862 = vunpack.c.0.s8 %v3861
    %v3863 = vperm.slane %v3858, %v3862
    %3865 = vset.pattern.permute.xlu0 0
    %3866 = vperm.xlu0 %3865, %v3776
    %v3867 = vpop.permute.xlu0 %3866
    %v3870 = vunpack.c.l.s4 839922192
    %v3871 = vunpack.c.0.s8 %v3870
    %v3872 = vperm.slane %v3867, %v3871
    %3874 = vset.pattern.permute.xlu0 0
    %3875 = vperm.xlu0 %3874, %v3777
    %v3876 = vpop.permute.xlu0 %3875
    %v3879 = vunpack.c.l.s4 839922192
    %v3880 = vunpack.c.0.s8 %v3879
    %v3881 = vperm.slane %v3876, %v3880
    %3883 = vset.pattern.permute.xlu0 0
    %3884 = vperm.xlu0 %3883, %v3778
    %v3885 = vpop.permute.xlu0 %3884
    %v3888 = vunpack.c.l.s4 839922192
    %v3889 = vunpack.c.0.s8 %v3888
    %v3890 = vperm.slane %v3885, %v3889
    %3892 = vset.pattern.permute.xlu0 0
    %3893 = vperm.xlu0 %3892, %v3779
    %v3894 = vpop.permute.xlu0 %3893
    %v3897 = vunpack.c.l.s4 839922192
    %v3898 = vunpack.c.0.s8 %v3897
    %v3899 = vperm.slane %v3894, %v3898
    %3901 = vset.pattern.permute.xlu0 0
    %3902 = vperm.xlu0 %3901, %v3780
    %v3903 = vpop.permute.xlu0 %3902
    %v3906 = vunpack.c.l.s4 839922192
    %v3907 = vunpack.c.0.s8 %v3906
    %v3908 = vperm.slane %v3903, %v3907
    %3910 = vset.pattern.permute.xlu0 0
    %3911 = vperm.xlu0 %3910, %v3781
    %v3912 = vpop.permute.xlu0 %3911
    %v3915 = vunpack.c.l.s4 839922192
    %v3916 = vunpack.c.0.s8 %v3915
    %v3917 = vperm.slane %v3912, %v3916
    %3919 = vset.pattern.permute.xlu0 0
    %3920 = vperm.xlu0 %3919, %v3782
    %v3921 = vpop.permute.xlu0 %3920
    %v3924 = vunpack.c.l.s4 839922192
    %v3925 = vunpack.c.0.s8 %v3924
    %v3926 = vperm.slane %v3921, %v3925
    %3928 = vset.pattern.permute.xlu0 0
    %3929 = vperm.xlu0 %3928, %v3783
    %v3930 = vpop.permute.xlu0 %3929
    %v3933 = vunpack.c.l.s4 839922192
    %v3934 = vunpack.c.0.s8 %v3933
    %v3935 = vperm.slane %v3930, %v3934
    %3937 = vset.pattern.permute.xlu0 0
    %3938 = vperm.xlu0 %3937, %v3784
    %v3939 = vpop.permute.xlu0 %3938
    %v3942 = vunpack.c.l.s4 839922192
    %v3943 = vunpack.c.0.s8 %v3942
    %v3944 = vperm.slane %v3939, %v3943
    %v3945 = vunpack.c.l.bf16 %v3785
    %v3946 = vunpack.c.l.bf16 %v3786
    %v3947 = vunpack.c.l.bf16 %v3787
    %v3948 = vunpack.c.l.bf16 %v3788
    %v3949 = vunpack.c.l.bf16 %v3789
    %v3950 = vunpack.c.l.bf16 %v3790
    %v3951 = vunpack.c.l.bf16 %v3791
    %v3952 = vunpack.c.l.bf16 %v3792
    %v3953 = vunpack.c.l.bf16 %v3793
    %v3954 = vunpack.c.l.bf16 %v3794
    %v3955 = vunpack.c.l.bf16 %v3795
    %v3956 = vunpack.c.l.bf16 %v3796
    %v3957 = vunpack.c.l.bf16 %v3797
    %v3958 = vunpack.c.l.bf16 %v3798
    %v3959 = vunpack.c.l.bf16 %v3799
    %v3960 = vunpack.c.l.bf16 %v3800
    %v3961 = vunpack.c.l.bf16 %v3809
    %v3962 = vunpack.c.l.bf16 %v3818
    %v3963 = vunpack.c.l.bf16 %v3827
    %v3964 = vunpack.c.l.bf16 %v3836
    %v3965 = vunpack.c.l.bf16 %v3845
    %v3966 = vunpack.c.l.bf16 %v3854
    %v3967 = vunpack.c.l.bf16 %v3863
    %v3968 = vunpack.c.l.bf16 %v3872
    %v3969 = vunpack.c.l.bf16 %v3881
    %v3970 = vunpack.c.l.bf16 %v3890
    %v3971 = vunpack.c.l.bf16 %v3899
    %v3972 = vunpack.c.l.bf16 %v3908
    %v3973 = vunpack.c.l.bf16 %v3917
    %v3974 = vunpack.c.l.bf16 %v3926
    %v3975 = vunpack.c.l.bf16 %v3935
    %v3976 = vunpack.c.l.bf16 %v3944
    %v3977 = vadd.f32 %v3945, %v3961
    %v3978 = vadd.f32 %v3946, %v3962
    %v3979 = vadd.f32 %v3947, %v3963
    %v3980 = vadd.f32 %v3948, %v3964
    %v3981 = vadd.f32 %v3949, %v3965
    %v3982 = vadd.f32 %v3950, %v3966
    %v3983 = vadd.f32 %v3951, %v3967
    %v3984 = vadd.f32 %v3952, %v3968
    %v3985 = vadd.f32 %v3953, %v3969
    %v3986 = vadd.f32 %v3954, %v3970
    %v3987 = vadd.f32 %v3955, %v3971
    %v3988 = vadd.f32 %v3956, %v3972
    %v3989 = vadd.f32 %v3957, %v3973
    %v3990 = vadd.f32 %v3958, %v3974
    %v3991 = vadd.f32 %v3959, %v3975
    %v3992 = vadd.f32 %v3960, %v3976
    %v3993 = vpack.c.bf16 %v3977, %v3977
    %v3994 = vpack.c.bf16 %v3978, %v3978
    %v3995 = vpack.c.bf16 %v3979, %v3979
    %v3996 = vpack.c.bf16 %v3980, %v3980
    %v3997 = vpack.c.bf16 %v3981, %v3981
    %v3998 = vpack.c.bf16 %v3982, %v3982
    %v3999 = vpack.c.bf16 %v3983, %v3983
    %v4000 = vpack.c.bf16 %v3984, %v3984
    %v4001 = vpack.c.bf16 %v3985, %v3985
    %v4002 = vpack.c.bf16 %v3986, %v3986
    %v4003 = vpack.c.bf16 %v3987, %v3987
    %v4004 = vpack.c.bf16 %v3988, %v3988
    %v4005 = vpack.c.bf16 %v3989, %v3989
    %v4006 = vpack.c.bf16 %v3990, %v3990
    %v4007 = vpack.c.bf16 %v3991, %v3991
    %v4008 = vpack.c.bf16 %v3992, %v3992
    %v4009 = vunpack.c.l.bf16 %v3993
    %v4010 = vunpack.c.l.bf16 %v3994
    %v4011 = vunpack.c.l.bf16 %v3995
    %v4012 = vunpack.c.l.bf16 %v3996
    %v4013 = vunpack.c.l.bf16 %v3997
    %v4014 = vunpack.c.l.bf16 %v3998
    %v4015 = vunpack.c.l.bf16 %v3999
    %v4016 = vunpack.c.l.bf16 %v4000
    %v4017 = vunpack.c.l.bf16 %v4001
    %v4018 = vunpack.c.l.bf16 %v4002
    %v4019 = vunpack.c.l.bf16 %v4003
    %v4020 = vunpack.c.l.bf16 %v4004
    %v4021 = vunpack.c.l.bf16 %v4005
    %v4022 = vunpack.c.l.bf16 %v4006
    %v4023 = vunpack.c.l.bf16 %v4007
    %v4024 = vunpack.c.l.bf16 %v4008
    %vm4025 = vcmp.gt.f32.partialorder %v4009, 0.0
    %vm4026 = vcmp.gt.f32.partialorder %v4010, 0.0
    %vm4027 = vcmp.gt.f32.partialorder %v4011, 0.0
    %vm4028 = vcmp.gt.f32.partialorder %v4012, 0.0
    %vm4029 = vcmp.gt.f32.partialorder %v4013, 0.0
    %vm4030 = vcmp.gt.f32.partialorder %v4014, 0.0
    %vm4031 = vcmp.gt.f32.partialorder %v4015, 0.0
    %vm4032 = vcmp.gt.f32.partialorder %v4016, 0.0
    %vm4033 = vcmp.gt.f32.partialorder %v4017, 0.0
    %vm4034 = vcmp.gt.f32.partialorder %v4018, 0.0
    %vm4035 = vcmp.gt.f32.partialorder %v4019, 0.0
    %vm4036 = vcmp.gt.f32.partialorder %v4020, 0.0
    %vm4037 = vcmp.gt.f32.partialorder %v4021, 0.0
    %vm4038 = vcmp.gt.f32.partialorder %v4022, 0.0
    %vm4039 = vcmp.gt.f32.partialorder %v4023, 0.0
    %vm4040 = vcmp.gt.f32.partialorder %v4024, 0.0
    %v4041 = vmul.f32 %v4009, 0.010009766
    %v4042 = vmul.f32 %v4010, 0.010009766
    %v4043 = vmul.f32 %v4011, 0.010009766
    %v4044 = vmul.f32 %v4012, 0.010009766
    %v4045 = vmul.f32 %v4013, 0.010009766
    %v4046 = vmul.f32 %v4014, 0.010009766
    %v4047 = vmul.f32 %v4015, 0.010009766
    %v4048 = vmul.f32 %v4016, 0.010009766
    %v4049 = vmul.f32 %v4017, 0.010009766
    %v4050 = vmul.f32 %v4018, 0.010009766
    %v4051 = vmul.f32 %v4019, 0.010009766
    %v4052 = vmul.f32 %v4020, 0.010009766
    %v4053 = vmul.f32 %v4021, 0.010009766
    %v4054 = vmul.f32 %v4022, 0.010009766
    %v4055 = vmul.f32 %v4023, 0.010009766
    %v4056 = vmul.f32 %v4024, 0.010009766
    %v4057 = vpack.c.bf16 %v4041, %v4041
    %v4058 = vpack.c.bf16 %v4042, %v4042
    %v4059 = vpack.c.bf16 %v4043, %v4043
    %v4060 = vpack.c.bf16 %v4044, %v4044
    %v4061 = vpack.c.bf16 %v4045, %v4045
    %v4062 = vpack.c.bf16 %v4046, %v4046
    %v4063 = vpack.c.bf16 %v4047, %v4047
    %v4064 = vpack.c.bf16 %v4048, %v4048
    %v4065 = vpack.c.bf16 %v4049, %v4049
    %v4066 = vpack.c.bf16 %v4050, %v4050
    %v4067 = vpack.c.bf16 %v4051, %v4051
    %v4068 = vpack.c.bf16 %v4052, %v4052
    %v4069 = vpack.c.bf16 %v4053, %v4053
    %v4070 = vpack.c.bf16 %v4054, %v4054
    %v4071 = vpack.c.bf16 %v4055, %v4055
    %v4072 = vpack.c.bf16 %v4056, %v4056
    %vm4073 = vmpackc.low %vm4025, %vm4025
    %vm4074 = vmpackc.low %vm4026, %vm4026
    %vm4075 = vmpackc.low %vm4027, %vm4027
    %vm4076 = vmpackc.low %vm4028, %vm4028
    %vm4077 = vmpackc.low %vm4029, %vm4029
    %vm4078 = vmpackc.low %vm4030, %vm4030
    %vm4079 = vmpackc.low %vm4031, %vm4031
    %vm4080 = vmpackc.low %vm4032, %vm4032
    %vm4081 = vmpackc.low %vm4033, %vm4033
    %vm4082 = vmpackc.low %vm4034, %vm4034
    %vm4083 = vmpackc.low %vm4035, %vm4035
    %vm4084 = vmpackc.low %vm4036, %vm4036
    %vm4085 = vmpackc.low %vm4037, %vm4037
    %vm4086 = vmpackc.low %vm4038, %vm4038
    %vm4087 = vmpackc.low %vm4039, %vm4039
    %vm4088 = vmpackc.low %vm4040, %vm4040
    %v4089 = vsel %vm4073, %v3993, %v4057
    %v4090 = vsel %vm4074, %v3994, %v4058
    %v4091 = vsel %vm4075, %v3995, %v4059
    %v4092 = vsel %vm4076, %v3996, %v4060
    %v4093 = vsel %vm4077, %v3997, %v4061
    %v4094 = vsel %vm4078, %v3998, %v4062
    %v4095 = vsel %vm4079, %v3999, %v4063
    %v4096 = vsel %vm4080, %v4000, %v4064
    %v4097 = vsel %vm4081, %v4001, %v4065
    %v4098 = vsel %vm4082, %v4002, %v4066
    %v4099 = vsel %vm4083, %v4003, %v4067
    %v4100 = vsel %vm4084, %v4004, %v4068
    %v4101 = vsel %vm4085, %v4005, %v4069
    %v4102 = vsel %vm4086, %v4006, %v4070
    %v4103 = vsel %vm4087, %v4007, %v4071
    %v4104 = vsel %vm4088, %v4008, %v4072
    %v4105 = vunpack.c.l.bf16 %v4089
    %v4106 = vunpack.c.l.bf16 %v4090
    %v4107 = vunpack.c.l.bf16 %v4091
    %v4108 = vunpack.c.l.bf16 %v4092
    %v4109 = vunpack.c.l.bf16 %v4093
    %v4110 = vunpack.c.l.bf16 %v4094
    %v4111 = vunpack.c.l.bf16 %v4095
    %v4112 = vunpack.c.l.bf16 %v4096
    %v4113 = vunpack.c.l.bf16 %v4097
    %v4114 = vunpack.c.l.bf16 %v4098
    %v4115 = vunpack.c.l.bf16 %v4099
    %v4116 = vunpack.c.l.bf16 %v4100
    %v4117 = vunpack.c.l.bf16 %v4101
    %v4118 = vunpack.c.l.bf16 %v4102
    %v4119 = vunpack.c.l.bf16 %v4103
    %v4120 = vunpack.c.l.bf16 %v4104
    %v4121 = vld [vmem:[%s7] sm:$0xff]
    %v4122 = vld [vmem:[%s7 + $0x8] sm:$0xff]
    %v4123 = vld [vmem:[%s7 + $0x10] sm:$0xff]
    %v4124 = vld [vmem:[%s7 + $0x18] sm:$0xff]
    %v4125 = vld [vmem:[%s7 + $0x20] sm:$0xff]
    %v4126 = vld [vmem:[%s7 + $0x28] sm:$0xff]
    %v4127 = vld [vmem:[%s7 + $0x30] sm:$0xff]
    %v4128 = vld [vmem:[%s7 + $0x38] sm:$0xff]
    %v4129 = vld [vmem:[%s7 + $0x40] sm:$0xff]
    %v4130 = vld [vmem:[%s7 + $0x48] sm:$0xff]
    %v4131 = vld [vmem:[%s7 + $0x50] sm:$0xff]
    %v4132 = vld [vmem:[%s7 + $0x58] sm:$0xff]
    %v4133 = vld [vmem:[%s7 + $0x60] sm:$0xff]
    %v4134 = vld [vmem:[%s7 + $0x68] sm:$0xff]
    %v4135 = vld [vmem:[%s7 + $0x70] sm:$0xff]
    %v4136 = vld [vmem:[%s7 + $0x78] sm:$0xff]
    %4138 = vset.pattern.permute.xlu0 0
    %4139 = vperm.xlu0 %4138, %v4121
    %v4140 = vpop.permute.xlu0 %4139
    %4143 = vset.pattern.permute.xlu0 0
    %4144 = vperm.xlu0 %4143, %v4122
    %v4145 = vpop.permute.xlu0 %4144
    %4148 = vset.pattern.permute.xlu0 0
    %4149 = vperm.xlu0 %4148, %v4123
    %v4150 = vpop.permute.xlu0 %4149
    %4153 = vset.pattern.permute.xlu0 0
    %4154 = vperm.xlu0 %4153, %v4124
    %v4155 = vpop.permute.xlu0 %4154
    %4158 = vset.pattern.permute.xlu0 0
    %4159 = vperm.xlu0 %4158, %v4125
    %v4160 = vpop.permute.xlu0 %4159
    %4163 = vset.pattern.permute.xlu0 0
    %4164 = vperm.xlu0 %4163, %v4126
    %v4165 = vpop.permute.xlu0 %4164
    %4168 = vset.pattern.permute.xlu0 0
    %4169 = vperm.xlu0 %4168, %v4127
    %v4170 = vpop.permute.xlu0 %4169
    %4173 = vset.pattern.permute.xlu0 0
    %4174 = vperm.xlu0 %4173, %v4128
    %v4175 = vpop.permute.xlu0 %4174
    %4178 = vset.pattern.permute.xlu0 0
    %4179 = vperm.xlu0 %4178, %v4129
    %v4180 = vpop.permute.xlu0 %4179
    %4183 = vset.pattern.permute.xlu0 0
    %4184 = vperm.xlu0 %4183, %v4130
    %v4185 = vpop.permute.xlu0 %4184
    %4188 = vset.pattern.permute.xlu0 0
    %4189 = vperm.xlu0 %4188, %v4131
    %v4190 = vpop.permute.xlu0 %4189
    %4193 = vset.pattern.permute.xlu0 0
    %4194 = vperm.xlu0 %4193, %v4132
    %v4195 = vpop.permute.xlu0 %4194
    %4198 = vset.pattern.permute.xlu0 0
    %4199 = vperm.xlu0 %4198, %v4133
    %v4200 = vpop.permute.xlu0 %4199
    %4203 = vset.pattern.permute.xlu0 0
    %4204 = vperm.xlu0 %4203, %v4134
    %v4205 = vpop.permute.xlu0 %4204
    %4208 = vset.pattern.permute.xlu0 0
    %4209 = vperm.xlu0 %4208, %v4135
    %v4210 = vpop.permute.xlu0 %4209
    %4213 = vset.pattern.permute.xlu0 0
    %4214 = vperm.xlu0 %4213, %v4136
    %v4215 = vpop.permute.xlu0 %4214
    %v4217 = vmul.f32 %v4105, %v4140
    %v4218 = vmul.f32 %v4106, %v4145
    %v4219 = vmul.f32 %v4107, %v4150
    %v4220 = vmul.f32 %v4108, %v4155
    %v4221 = vmul.f32 %v4109, %v4160
    %v4222 = vmul.f32 %v4110, %v4165
    %v4223 = vmul.f32 %v4111, %v4170
    %v4224 = vmul.f32 %v4112, %v4175
    %v4225 = vmul.f32 %v4113, %v4180
    %v4226 = vmul.f32 %v4114, %v4185
    %v4227 = vmul.f32 %v4115, %v4190
    %v4228 = vmul.f32 %v4116, %v4195
    %v4229 = vmul.f32 %v4117, %v4200
    %v4230 = vmul.f32 %v4118, %v4205
    %v4231 = vmul.f32 %v4119, %v4210
    %v4232 = vmul.f32 %v4120, %v4215
    %v4233 = vadd.f32 %v4217, %v4218
    %v4234 = vadd.f32 %v4233, %v4219
    %v4235 = vadd.f32 %v4234, %v4220
    %v4236 = vadd.f32 %v4235, %v4221
    %v4237 = vadd.f32 %v4236, %v4222
    %v4238 = vadd.f32 %v4237, %v4223
    %v4239 = vadd.f32 %v4238, %v4224
    %v4240 = vadd.f32 %v4239, %v4225
    %v4241 = vadd.f32 %v4240, %v4226
    %v4242 = vadd.f32 %v4241, %v4227
    %v4243 = vadd.f32 %v4242, %v4228
    %v4244 = vadd.f32 %v4243, %v4229
    %v4245 = vadd.f32 %v4244, %v4230
    %v4246 = vadd.f32 %v4245, %v4231
    %v4247 = vadd.f32 %v4246, %v4232
    %v4248 = vrot.slane %v4247, 4
    %v4249 = vadd.f32 %v4247, %v4248
    %v4250 = vrot.slane %v4249, 2
    %v4251 = vadd.f32 %v4249, %v4250
    %v4252 = vrot.slane %v4251, 1
    %v4253 = vadd.f32 %v4251, %v4252
    %v4254 = vld [vmem:[#allocation2] sm:$0x1]
    %4256 = vset.pattern.permute.xlu0 0
    %4257 = vperm.xlu0 %4256, %v4254
    %v4258 = vpop.permute.xlu0 %4257
    %v4260 = vperm.slane %v4258, 0
    %v4261 = vadd.f32 %v4253, %v4260
    %v4262 = vand.u32 2147483647, %v4261
    %v4263 = vsub.f32 0.0, %v4262
    %v4264 = vmul.f32 %v4263, 1.442695
    %v4265 = vpow.pop %v4264
    %vm4266 = vcmp.ge.f32.partialorder %v4261, 0.0
    %v4267 = vadd.f32 %v4265, 1.0
    %v4268 = vrcp.pop %v4267
    %v4269 = vmul.f32 %v4267, %v4268
    %v4270 = vsub.f32 1.0, %v4269
    %v4271 = vmul.f32 %v4268, %v4270
    %v4272 = vadd.f32 %v4268, %v4271
    %vm4273 = vweird.f32 %v4267
    %vm4274 = vweird.f32 %v4268
    %vm4275 = vmor %vm4273, %vm4274
    %v4276 = vsel %vm4275, %v4268, %v4272
    %v4277 = vand.u32 2147483647, %v4267
    %vm4278 = vcmp.eq.f32.partialorder %v4277, 8.507059e+37
    %v4279 = vand.u32 %v4267, 2147483648
    %v4280 = vor.u32 1.1754944e-38, %v4279
    %v4281 = vsel %vm4278, %v4280, %v4276
    %v4282 = vmul.f32 1.0, %v4281
    %v4283 = vmul.f32 %v4265, %v4281
    %v4284 = vsel %vm4266, %v4282, %v4283
    %4285 = vst [vmem:[#allocation3] sm:$0x1] %v4284
    // Predicated region
    $region38: #{tpu_custom_call.1} parent=1 // pred_check
      _
    $region39: #{tpu_custom_call.1} parent=1 // pred_check_branch
      %4287 = sbr.rel (0) target = $region41
    $region40: #{tpu_custom_call.1} parent=1 // pred_region
      %4289 = vsyncadd [#allocation4], 0
      %s4291 = sshll.u32 [#allocation3], 4
      %s4292 = int_to_ptr.vmem [resolvable:$true] %s4291
      %s4293 = sshll.u32 %s9, 4
      %s4294 = int_to_ptr.hbm [resolvable:$true] %s4293
      %4296 = dma.vmem_to_hbm [thread:$0]  %s4292, 16, %s4294, [#allocation4]
    $region41: #{tpu_custom_call.1} parent=1 // pred_fallthru
      _
    // Predicated region
    $region42: #{tpu_custom_call.1} parent=1 // pred_check
      _
    $region43: #{tpu_custom_call.1} parent=1 // pred_check_branch
      %4298 = sbr.rel (0) target = $region45
    $region44: #{tpu_custom_call.1} parent=1 // pred_region
      %4300 = dma.done [#allocation4], 16
    $region45: #{tpu_custom_call.1} parent=1 // pred_fallthru
      _
    %4301 = vsyncpa [#allocation4], 1

</llo_original>
